<compile_context>
chip_gen: v6e
topology: v6e:2x2x1
jax: 0.10.0
libtpu: 0.0.40
codegen_flags: <defaults>
</compile_context>

<pallas_src>
import functools

import jax
import jax.numpy as jnp
import numpy as np
from jax.experimental import pallas as pl
from jax.experimental.pallas import tpu as pltpu


def _largest_divisor_leq(n, target):
    """Largest divisor of n that is <= target (at least 1)."""
    target = max(1, min(n, int(target)))
    for d in range(target, 0, -1):
        if n % d == 0:
            return d
    return 1


def _spatial_attention_kernel(w_ref, x_ref, o_ref, rmax_ref, rsum_ref, pad_ref,
                              *, H, W, K, P, inv_c):
    # w_ref   : SMEM, flat conv weight (2*K*K,) f32, order [in_ch, kh, kw]
    # x_ref   : VMEM, (Bb, Cb, H, W) unpadded input block (native dtype)
    # o_ref   : VMEM, (Bb, H, W) output block
    # rmax_ref: VMEM, (Bb, H, W) f32 running channel-max
    # rsum_ref: VMEM, (Bb, H, W) f32 running channel-sum
    # pad_ref : VMEM, (2, Bb, H+2P, W+2P) f32 zero-padded reduced planes
    ci = pl.program_id(1)
    nc = pl.num_programs(1)

    # --- single pass over this channel block: max and sum together ---------
    xb = x_ref[...]                                       # (Bb, Cb, H, W)
    blk_max = jnp.max(xb, axis=1).astype(jnp.float32)     # (Bb, H, W)
    blk_sum = jnp.sum(xb.astype(jnp.float32), axis=1)     # (Bb, H, W)

    @pl.when(ci == 0)
    def _init():
        rmax_ref[...] = blk_max
        rsum_ref[...] = blk_sum

    @pl.when(ci > 0)
    def _update():
        rmax_ref[...] = jnp.maximum(rmax_ref[...], blk_max)
        rsum_ref[...] = rsum_ref[...] + blk_sum

    # --- finalize: pad, KxK conv (shift-and-accumulate), sigmoid, store ----
    @pl.when(ci == nc - 1)
    def _finalize():
        # Zero-padded 2-channel reduced map; border zeros == Conv2d zero pad.
        pad_ref[...] = jnp.zeros_like(pad_ref)
        pad_ref[0, :, P:P + H, P:P + W] = rmax_ref[...]
        pad_ref[1, :, P:P + H, P:P + W] = rsum_ref[...] * inv_c

        acc = jnp.zeros(o_ref.shape, jnp.float32)         # (Bb, H, W)
        for c in range(2):
            for kj in range(K):
                # One lane-shifted slab per (channel, kj); the inner loop is
                # sublane-offset slices + multiply-add only.
                slab = pad_ref[c, :, :, kj:kj + W]         # (Bb, H+2P, W)
                for ki in range(K):
                    wv = w_ref[c * K * K + ki * K + kj]    # SMEM scalar read
                    acc = acc + wv * slab[:, ki:ki + H, :]

        o_ref[...] = jax.nn.sigmoid(acc).astype(o_ref.dtype)


def spatial_attention(x, weight):
    """x: (B, C, H, W). weight: (1, 2, K, K) conv weight (bias=False).

    Returns sigmoid(conv2d(concat([max_c(x), mean_c(x)], ch), weight)) of
    shape (B, 1, H, W).
    """
    B, C, H, W = x.shape
    K = weight.shape[-1]
    # Module: padding = 3 if kernel_size == 7 else 1 (only odd K keeps H, W).
    assert K in (3, 7), "SptialAttention only uses kernel_size 3 or 7"
    P = 3 if K == 7 else 1

    w_flat = weight.reshape(-1).astype(jnp.float32)        # (2*K*K,)

    # Block sizing: bounded per-step VMEM (fits v7x's smaller budget) while
    # being big enough to amortize per-grid-step overhead.
    itemsize = jnp.dtype(x.dtype).itemsize
    plane_bytes = H * W * itemsize
    cb = _largest_divisor_leq(C, (2 * 1024 * 1024) // max(plane_bytes, 1))
    bb = _largest_divisor_leq(B, (4 * 1024 * 1024) // max(cb * plane_bytes, 1))
    n_b, n_c = B // bb, C // cb

    kernel = functools.partial(_spatial_attention_kernel,
                               H=H, W=W, K=K, P=P, inv_c=1.0 / C)

    out = pl.pallas_call(
        kernel,
        out_shape=jax.ShapeDtypeStruct((B, H, W), x.dtype),
        grid_spec=pltpu.PrefetchScalarGridSpec(
            num_scalar_prefetch=0,
            grid=(n_b, n_c),                               # reduction axis last
            in_specs=[
                # Tiny conv weights live in SMEM for cheap scalar reads.
                pl.BlockSpec(memory_space=pltpu.MemorySpace.SMEM),
                # Unpadded input block: Bb batch elements x Cb channels.
                pl.BlockSpec((bb, cb, H, W), lambda bi, ci: (bi, ci, 0, 0)),
            ],
            # Output block constant across the channel axis (accumulator).
            out_specs=pl.BlockSpec((bb, H, W), lambda bi, ci: (bi, 0, 0)),
            scratch_shapes=[
                pltpu.VMEM((bb, H, W), jnp.float32),                   # run max
                pltpu.VMEM((bb, H, W), jnp.float32),                   # run sum
                pltpu.VMEM((2, bb, H + 2 * P, W + 2 * P), jnp.float32),  # pad
            ],
        ),
        compiler_params=pltpu.CompilerParams(
            dimension_semantics=("parallel", "arbitrary")),
    )(w_flat, x)

    # Free metadata reshape to the PyTorch NCHW output layout.
    return out.reshape(B, 1, H, W)


def _reference(x, weight, P):
    max_x = jnp.max(x, axis=1, keepdims=True)
    avg_x = jnp.mean(x, axis=1, keepdims=True)
    cat = jnp.concatenate([max_x, avg_x], axis=1)
    out = jax.lax.conv_general_dilated(
        cat, weight, window_strides=(1, 1), padding=((P, P), (P, P)),
        dimension_numbers=("NCHW", "OIHW", "NCHW"))
    return jax.nn.sigmoid(out)


if __name__ == "__main__":
    B, C, H, W = 2, 4, 16, 16
    K = 7                        # model_cfg.kernel_size == 7 -> padding 3
    P = 3

    key = jax.random.PRNGKey(0)
    kx, kw = jax.random.split(key)
    x = jax.random.normal(kx, (B, C, H, W), dtype=jnp.float32)

    # Deterministic Conv2d-style init: U(-1/sqrt(fan_in), 1/sqrt(fan_in)),
    # weight shape (out_ch=1, in_ch=2, K, K), bias=False.
    fan_in = 2 * K * K
    bound = 1.0 / np.sqrt(fan_in)
    weight = jax.random.uniform(kw, (1, 2, K, K), jnp.float32, -bound, bound)

    out = jax.block_until_ready(spatial_attention(x, weight))

    ref = _reference(x, weight, P)
    assert out.shape == (B, 1, H, W)
    np.testing.assert_allclose(np.asarray(out), np.asarray(ref),
                               atol=1e-5, rtol=1e-5)
    print("KERNEL_OK")
</pallas_src>

<mosaic_0001>
module attributes {stable_mosaic.version = 11 : i64} {
  func.func @_spatial_attention_kernel(%arg0: i32, %arg1: i32, %arg2: memref<98xf32, #tpu.memory_space<smem>>, %arg3: memref<2x4x16x16xf32, #tpu.memory_space<vmem>>, %arg4: memref<2x16x16xf32, #tpu.memory_space<vmem>>, %arg5: memref<2x16x16xf32, #tpu.memory_space<vmem>>, %arg6: memref<2x16x16xf32, #tpu.memory_space<vmem>>, %arg7: memref<2x2x22x22xf32, #tpu.memory_space<vmem>>) attributes {dimension_semantics = [#tpu.dimension_semantics<parallel>, #tpu.dimension_semantics<arbitrary>], iteration_bounds = array<i64: 1, 1>, scalar_prefetch = 0 : i64, scratch_operands = 3 : i64, tpu.core_type = #tpu.core_type<tc>, window_params = [{transform_indices = @transform_0, window_bounds = array<i64: 98>}, {transform_indices = @transform_1, window_bounds = array<i64: 2, 4, 16, 16>}, {transform_indices = @transform_2, window_bounds = array<i64: 2, 16, 16>}]} {
    %c0 = arith.constant 0 : index
    %c0_0 = arith.constant 0 : index
    %c0_1 = arith.constant 0 : index
    %c0_2 = arith.constant 0 : index
    %0 = vector.load %arg3[%c0, %c0_0, %c0_1, %c0_2] : memref<2x4x16x16xf32, #tpu.memory_space<vmem>>, vector<2x4x16x16xf32>
    %cst = arith.constant dense<0xFF800000> : vector<2x16x16xf32>
    %1 = vector.multi_reduction <maximumf>, %0, %cst [1] : vector<2x4x16x16xf32> to vector<2x16x16xf32>
    %cst_3 = arith.constant dense<0.000000e+00> : vector<2x16x16xf32>
    %2 = vector.multi_reduction <add>, %0, %cst_3 [1] : vector<2x4x16x16xf32> to vector<2x16x16xf32>
    %c0_i32 = arith.constant 0 : i32
    %3 = arith.cmpi eq, %arg1, %c0_i32 : i32
    %4 = arith.extui %3 : i1 to i32
    %c0_i32_4 = arith.constant 0 : i32
    %5 = arith.cmpi ne, %4, %c0_i32_4 : i32
    scf.if %5 {
      %c0_9 = arith.constant 0 : index
      %c0_10 = arith.constant 0 : index
      %c0_11 = arith.constant 0 : index
      %12 = vector.load %arg5[%c0_9, %c0_10, %c0_11] : memref<2x16x16xf32, #tpu.memory_space<vmem>>, vector<2x16x16xf32>
      tpu.vector_store %arg5[%c0_9, %c0_10, %c0_11], %1 {strides = array<i32>} : memref<2x16x16xf32, #tpu.memory_space<vmem>>, vector<2x16x16xf32>,
      %c0_12 = arith.constant 0 : index
      %c0_13 = arith.constant 0 : index
      %c0_14 = arith.constant 0 : index
      %13 = vector.load %arg6[%c0_12, %c0_13, %c0_14] : memref<2x16x16xf32, #tpu.memory_space<vmem>>, vector<2x16x16xf32>
      tpu.vector_store %arg6[%c0_12, %c0_13, %c0_14], %2 {strides = array<i32>} : memref<2x16x16xf32, #tpu.memory_space<vmem>>, vector<2x16x16xf32>,
    } else {
    }
    %c0_i32_5 = arith.constant 0 : i32
    %6 = arith.cmpi sgt, %arg1, %c0_i32_5 : i32
    %7 = arith.extui %6 : i1 to i32
    %c0_i32_6 = arith.constant 0 : i32
    %8 = arith.cmpi ne, %7, %c0_i32_6 : i32
    scf.if %8 {
      %c0_9 = arith.constant 0 : index
      %c0_10 = arith.constant 0 : index
      %c0_11 = arith.constant 0 : index
      %12 = vector.load %arg5[%c0_9, %c0_10, %c0_11] : memref<2x16x16xf32, #tpu.memory_space<vmem>>, vector<2x16x16xf32>
      %13 = arith.maximumf %12, %1 : vector<2x16x16xf32>
      %c0_12 = arith.constant 0 : index
      %c0_13 = arith.constant 0 : index
      %c0_14 = arith.constant 0 : index
      %14 = vector.load %arg5[%c0_12, %c0_13, %c0_14] : memref<2x16x16xf32, #tpu.memory_space<vmem>>, vector<2x16x16xf32>
      tpu.vector_store %arg5[%c0_12, %c0_13, %c0_14], %13 {strides = array<i32>} : memref<2x16x16xf32, #tpu.memory_space<vmem>>, vector<2x16x16xf32>,
      %c0_15 = arith.constant 0 : index
      %c0_16 = arith.constant 0 : index
      %c0_17 = arith.constant 0 : index
      %15 = vector.load %arg6[%c0_15, %c0_16, %c0_17] : memref<2x16x16xf32, #tpu.memory_space<vmem>>, vector<2x16x16xf32>
      %16 = arith.addf %15, %2 : vector<2x16x16xf32>
      %c0_18 = arith.constant 0 : index
      %c0_19 = arith.constant 0 : index
      %c0_20 = arith.constant 0 : index
      %17 = vector.load %arg6[%c0_18, %c0_19, %c0_20] : memref<2x16x16xf32, #tpu.memory_space<vmem>>, vector<2x16x16xf32>
      tpu.vector_store %arg6[%c0_18, %c0_19, %c0_20], %16 {strides = array<i32>} : memref<2x16x16xf32, #tpu.memory_space<vmem>>, vector<2x16x16xf32>,
    } else {
    }
    %c0_i32_7 = arith.constant 0 : i32
    %9 = arith.cmpi eq, %arg1, %c0_i32_7 : i32
    %10 = arith.extui %9 : i1 to i32
    %c0_i32_8 = arith.constant 0 : i32
    %11 = arith.cmpi ne, %10, %c0_i32_8 : i32
    scf.if %11 {
      %cst_9 = arith.constant 0.000000e+00 : f32
      %12 = vector.broadcast %cst_9 : f32 to vector<2x2x22x22xf32>
      %c0_10 = arith.constant 0 : index
      %c0_11 = arith.constant 0 : index
      %c0_12 = arith.constant 0 : index
      %c0_13 = arith.constant 0 : index
      %13 = vector.load %arg7[%c0_10, %c0_11, %c0_12, %c0_13] : memref<2x2x22x22xf32, #tpu.memory_space<vmem>>, vector<2x2x22x22xf32>
      tpu.vector_store %arg7[%c0_10, %c0_11, %c0_12, %c0_13], %12 {strides = array<i32>} : memref<2x2x22x22xf32, #tpu.memory_space<vmem>>, vector<2x2x22x22xf32>,
      %c0_14 = arith.constant 0 : index
      %c0_15 = arith.constant 0 : index
      %c0_16 = arith.constant 0 : index
      %14 = vector.load %arg5[%c0_14, %c0_15, %c0_16] : memref<2x16x16xf32, #tpu.memory_space<vmem>>, vector<2x16x16xf32>
      %c0_17 = arith.constant 0 : index
      %c0_18 = arith.constant 0 : index
      %c3 = arith.constant 3 : index
      %c3_19 = arith.constant 3 : index
      %15 = vector.load %arg7[%c0_17, %c0_18, %c3, %c3_19] : memref<2x2x22x22xf32, #tpu.memory_space<vmem>>, vector<1x2x16x16xf32>
      %16 = vector.shape_cast %15 : vector<1x2x16x16xf32> to vector<2x16x16xf32>
      %17 = vector.shape_cast %14 : vector<2x16x16xf32> to vector<1x2x16x16xf32>
      tpu.vector_store %arg7[%c0_17, %c0_18, %c3, %c3_19], %17 {strides = array<i32>} : memref<2x2x22x22xf32, #tpu.memory_space<vmem>>, vector<1x2x16x16xf32>,
      %c0_20 = arith.constant 0 : index
      %c0_21 = arith.constant 0 : index
      %c0_22 = arith.constant 0 : index
      %18 = vector.load %arg6[%c0_20, %c0_21, %c0_22] : memref<2x16x16xf32, #tpu.memory_space<vmem>>, vector<2x16x16xf32>
      %cst_23 = arith.constant 2.500000e-01 : f32
      %19 = vector.broadcast %cst_23 : f32 to vector<2x16x16xf32>
      %20 = arith.mulf %18, %19 : vector<2x16x16xf32>
      %c1 = arith.constant 1 : index
      %c0_24 = arith.constant 0 : index
      %c3_25 = arith.constant 3 : index
      %c3_26 = arith.constant 3 : index
      %21 = vector.load %arg7[%c1, %c0_24, %c3_25, %c3_26] : memref<2x2x22x22xf32, #tpu.memory_space<vmem>>, vector<1x2x16x16xf32>
      %22 = vector.shape_cast %21 : vector<1x2x16x16xf32> to vector<2x16x16xf32>
      %23 = vector.shape_cast %20 : vector<2x16x16xf32> to vector<1x2x16x16xf32>
      tpu.vector_store %arg7[%c1, %c0_24, %c3_25, %c3_26], %23 {strides = array<i32>} : memref<2x2x22x22xf32, #tpu.memory_space<vmem>>, vector<1x2x16x16xf32>,
      %cst_27 = arith.constant 0.000000e+00 : f32
      %24 = vector.broadcast %cst_27 : f32 to vector<2x16x16xf32>
      %c0_28 = arith.constant 0 : index
      %c0_29 = arith.constant 0 : index
      %c0_30 = arith.constant 0 : index
      %c0_31 = arith.constant 0 : index
      %25 = vector.load %arg7[%c0_28, %c0_29, %c0_30, %c0_31] : memref<2x2x22x22xf32, #tpu.memory_space<vmem>>, vector<1x2x22x16xf32>
      %26 = vector.shape_cast %25 : vector<1x2x22x16xf32> to vector<2x22x16xf32>
      %c0_32 = arith.constant 0 : index
      %27 = memref.load %arg2[%c0_32] : memref<98xf32, #tpu.memory_space<smem>>
      %28 = vector.extract_strided_slice %26 {offsets = [0, 0, 0], sizes = [2, 16, 16], strides = [1, 1, 1]} : vector<2x22x16xf32> to vector<2x16x16xf32>
      %29 = vector.broadcast %27 : f32 to vector<2x16x16xf32>
      %30 = arith.mulf %29, %28 : vector<2x16x16xf32>
      %31 = arith.addf %24, %30 : vector<2x16x16xf32>
      %c7 = arith.constant 7 : index
      %32 = memref.load %arg2[%c7] : memref<98xf32, #tpu.memory_space<smem>>
      %33 = vector.extract_strided_slice %26 {offsets = [0, 1, 0], sizes = [2, 16, 16], strides = [1, 1, 1]} : vector<2x22x16xf32> to vector<2x16x16xf32>
      %34 = vector.broadcast %32 : f32 to vector<2x16x16xf32>
      %35 = arith.mulf %34, %33 : vector<2x16x16xf32>
      %36 = arith.addf %31, %35 : vector<2x16x16xf32>
      %c14 = arith.constant 14 : index
      %37 = memref.load %arg2[%c14] : memref<98xf32, #tpu.memory_space<smem>>
      %38 = vector.extract_strided_slice %26 {offsets = [0, 2, 0], sizes = [2, 16, 16], strides = [1, 1, 1]} : vector<2x22x16xf32> to vector<2x16x16xf32>
      %39 = vector.broadcast %37 : f32 to vector<2x16x16xf32>
      %40 = arith.mulf %39, %38 : vector<2x16x16xf32>
      %41 = arith.addf %36, %40 : vector<2x16x16xf32>
      %c21 = arith.constant 21 : index
      %42 = memref.load %arg2[%c21] : memref<98xf32, #tpu.memory_space<smem>>
      %43 = vector.extract_strided_slice %26 {offsets = [0, 3, 0], sizes = [2, 16, 16], strides = [1, 1, 1]} : vector<2x22x16xf32> to vector<2x16x16xf32>
      %44 = vector.broadcast %42 : f32 to vector<2x16x16xf32>
      %45 = arith.mulf %44, %43 : vector<2x16x16xf32>
      %46 = arith.addf %41, %45 : vector<2x16x16xf32>
      %c28 = arith.constant 28 : index
      %47 = memref.load %arg2[%c28] : memref<98xf32, #tpu.memory_space<smem>>
      %48 = vector.extract_strided_slice %26 {offsets = [0, 4, 0], sizes = [2, 16, 16], strides = [1, 1, 1]} : vector<2x22x16xf32> to vector<2x16x16xf32>
      %49 = vector.broadcast %47 : f32 to vector<2x16x16xf32>
      %50 = arith.mulf %49, %48 : vector<2x16x16xf32>
      %51 = arith.addf %46, %50 : vector<2x16x16xf32>
      %c35 = arith.constant 35 : index
      %52 = memref.load %arg2[%c35] : memref<98xf32, #tpu.memory_space<smem>>
      %53 = vector.extract_strided_slice %26 {offsets = [0, 5, 0], sizes = [2, 16, 16], strides = [1, 1, 1]} : vector<2x22x16xf32> to vector<2x16x16xf32>
      %54 = vector.broadcast %52 : f32 to vector<2x16x16xf32>
      %55 = arith.mulf %54, %53 : vector<2x16x16xf32>
      %56 = arith.addf %51, %55 : vector<2x16x16xf32>
      %c42 = arith.constant 42 : index
      %57 = memref.load %arg2[%c42] : memref<98xf32, #tpu.memory_space<smem>>
      %58 = vector.extract_strided_slice %26 {offsets = [0, 6, 0], sizes = [2, 16, 16], strides = [1, 1, 1]} : vector<2x22x16xf32> to vector<2x16x16xf32>
      %59 = vector.broadcast %57 : f32 to vector<2x16x16xf32>
      %60 = arith.mulf %59, %58 : vector<2x16x16xf32>
      %61 = arith.addf %56, %60 : vector<2x16x16xf32>
      %c0_33 = arith.constant 0 : index
      %c0_34 = arith.constant 0 : index
      %c0_35 = arith.constant 0 : index
      %c1_36 = arith.constant 1 : index
      %62 = vector.load %arg7[%c0_33, %c0_34, %c0_35, %c1_36] : memref<2x2x22x22xf32, #tpu.memory_space<vmem>>, vector<1x2x22x16xf32>
      %63 = vector.shape_cast %62 : vector<1x2x22x16xf32> to vector<2x22x16xf32>
      %c1_37 = arith.constant 1 : index
      %64 = memref.load %arg2[%c1_37] : memref<98xf32, #tpu.memory_space<smem>>
      %65 = vector.extract_strided_slice %63 {offsets = [0, 0, 0], sizes = [2, 16, 16], strides = [1, 1, 1]} : vector<2x22x16xf32> to vector<2x16x16xf32>
      %66 = vector.broadcast %64 : f32 to vector<2x16x16xf32>
      %67 = arith.mulf %66, %65 : vector<2x16x16xf32>
      %68 = arith.addf %61, %67 : vector<2x16x16xf32>
      %c8 = arith.constant 8 : index
      %69 = memref.load %arg2[%c8] : memref<98xf32, #tpu.memory_space<smem>>
      %70 = vector.extract_strided_slice %63 {offsets = [0, 1, 0], sizes = [2, 16, 16], strides = [1, 1, 1]} : vector<2x22x16xf32> to vector<2x16x16xf32>
      %71 = vector.broadcast %69 : f32 to vector<2x16x16xf32>
      %72 = arith.mulf %71, %70 : vector<2x16x16xf32>
      %73 = arith.addf %68, %72 : vector<2x16x16xf32>
      %c15 = arith.constant 15 : index
      %74 = memref.load %arg2[%c15] : memref<98xf32, #tpu.memory_space<smem>>
      %75 = vector.extract_strided_slice %63 {offsets = [0, 2, 0], sizes = [2, 16, 16], strides = [1, 1, 1]} : vector<2x22x16xf32> to vector<2x16x16xf32>
      %76 = vector.broadcast %74 : f32 to vector<2x16x16xf32>
      %77 = arith.mulf %76, %75 : vector<2x16x16xf32>
      %78 = arith.addf %73, %77 : vector<2x16x16xf32>
      %c22 = arith.constant 22 : index
      %79 = memref.load %arg2[%c22] : memref<98xf32, #tpu.memory_space<smem>>
      %80 = vector.extract_strided_slice %63 {offsets = [0, 3, 0], sizes = [2, 16, 16], strides = [1, 1, 1]} : vector<2x22x16xf32> to vector<2x16x16xf32>
      %81 = vector.broadcast %79 : f32 to vector<2x16x16xf32>
      %82 = arith.mulf %81, %80 : vector<2x16x16xf32>
      %83 = arith.addf %78, %82 : vector<2x16x16xf32>
      %c29 = arith.constant 29 : index
      %84 = memref.load %arg2[%c29] : memref<98xf32, #tpu.memory_space<smem>>
      %85 = vector.extract_strided_slice %63 {offsets = [0, 4, 0], sizes = [2, 16, 16], strides = [1, 1, 1]} : vector<2x22x16xf32> to vector<2x16x16xf32>
      %86 = vector.broadcast %84 : f32 to vector<2x16x16xf32>
      %87 = arith.mulf %86, %85 : vector<2x16x16xf32>
      %88 = arith.addf %83, %87 : vector<2x16x16xf32>
      %c36 = arith.constant 36 : index
      %89 = memref.load %arg2[%c36] : memref<98xf32, #tpu.memory_space<smem>>
      %90 = vector.extract_strided_slice %63 {offsets = [0, 5, 0], sizes = [2, 16, 16], strides = [1, 1, 1]} : vector<2x22x16xf32> to vector<2x16x16xf32>
      %91 = vector.broadcast %89 : f32 to vector<2x16x16xf32>
      %92 = arith.mulf %91, %90 : vector<2x16x16xf32>
      %93 = arith.addf %88, %92 : vector<2x16x16xf32>
      %c43 = arith.constant 43 : index
      %94 = memref.load %arg2[%c43] : memref<98xf32, #tpu.memory_space<smem>>
      %95 = vector.extract_strided_slice %63 {offsets = [0, 6, 0], sizes = [2, 16, 16], strides = [1, 1, 1]} : vector<2x22x16xf32> to vector<2x16x16xf32>
      %96 = vector.broadcast %94 : f32 to vector<2x16x16xf32>
      %97 = arith.mulf %96, %95 : vector<2x16x16xf32>
      %98 = arith.addf %93, %97 : vector<2x16x16xf32>
      %c0_38 = arith.constant 0 : index
      %c0_39 = arith.constant 0 : index
      %c0_40 = arith.constant 0 : index
      %c2 = arith.constant 2 : index
      %99 = vector.load %arg7[%c0_38, %c0_39, %c0_40, %c2] : memref<2x2x22x22xf32, #tpu.memory_space<vmem>>, vector<1x2x22x16xf32>
      %100 = vector.shape_cast %99 : vector<1x2x22x16xf32> to vector<2x22x16xf32>
      %c2_41 = arith.constant 2 : index
      %101 = memref.load %arg2[%c2_41] : memref<98xf32, #tpu.memory_space<smem>>
      %102 = vector.extract_strided_slice %100 {offsets = [0, 0, 0], sizes = [2, 16, 16], strides = [1, 1, 1]} : vector<2x22x16xf32> to vector<2x16x16xf32>
      %103 = vector.broadcast %101 : f32 to vector<2x16x16xf32>
      %104 = arith.mulf %103, %102 : vector<2x16x16xf32>
      %105 = arith.addf %98, %104 : vector<2x16x16xf32>
      %c9 = arith.constant 9 : index
      %106 = memref.load %arg2[%c9] : memref<98xf32, #tpu.memory_space<smem>>
      %107 = vector.extract_strided_slice %100 {offsets = [0, 1, 0], sizes = [2, 16, 16], strides = [1, 1, 1]} : vector<2x22x16xf32> to vector<2x16x16xf32>
      %108 = vector.broadcast %106 : f32 to vector<2x16x16xf32>
      %109 = arith.mulf %108, %107 : vector<2x16x16xf32>
      %110 = arith.addf %105, %109 : vector<2x16x16xf32>
      %c16 = arith.constant 16 : index
      %111 = memref.load %arg2[%c16] : memref<98xf32, #tpu.memory_space<smem>>
      %112 = vector.extract_strided_slice %100 {offsets = [0, 2, 0], sizes = [2, 16, 16], strides = [1, 1, 1]} : vector<2x22x16xf32> to vector<2x16x16xf32>
      %113 = vector.broadcast %111 : f32 to vector<2x16x16xf32>
      %114 = arith.mulf %113, %112 : vector<2x16x16xf32>
      %115 = arith.addf %110, %114 : vector<2x16x16xf32>
      %c23 = arith.constant 23 : index
      %116 = memref.load %arg2[%c23] : memref<98xf32, #tpu.memory_space<smem>>
      %117 = vector.extract_strided_slice %100 {offsets = [0, 3, 0], sizes = [2, 16, 16], strides = [1, 1, 1]} : vector<2x22x16xf32> to vector<2x16x16xf32>
      %118 = vector.broadcast %116 : f32 to vector<2x16x16xf32>
      %119 = arith.mulf %118, %117 : vector<2x16x16xf32>
      %120 = arith.addf %115, %119 : vector<2x16x16xf32>
      %c30 = arith.constant 30 : index
      %121 = memref.load %arg2[%c30] : memref<98xf32, #tpu.memory_space<smem>>
      %122 = vector.extract_strided_slice %100 {offsets = [0, 4, 0], sizes = [2, 16, 16], strides = [1, 1, 1]} : vector<2x22x16xf32> to vector<2x16x16xf32>
      %123 = vector.broadcast %121 : f32 to vector<2x16x16xf32>
      %124 = arith.mulf %123, %122 : vector<2x16x16xf32>
      %125 = arith.addf %120, %124 : vector<2x16x16xf32>
      %c37 = arith.constant 37 : index
      %126 = memref.load %arg2[%c37] : memref<98xf32, #tpu.memory_space<smem>>
      %127 = vector.extract_strided_slice %100 {offsets = [0, 5, 0], sizes = [2, 16, 16], strides = [1, 1, 1]} : vector<2x22x16xf32> to vector<2x16x16xf32>
      %128 = vector.broadcast %126 : f32 to vector<2x16x16xf32>
      %129 = arith.mulf %128, %127 : vector<2x16x16xf32>
      %130 = arith.addf %125, %129 : vector<2x16x16xf32>
      %c44 = arith.constant 44 : index
      %131 = memref.load %arg2[%c44] : memref<98xf32, #tpu.memory_space<smem>>
      %132 = vector.extract_strided_slice %100 {offsets = [0, 6, 0], sizes = [2, 16, 16], strides = [1, 1, 1]} : vector<2x22x16xf32> to vector<2x16x16xf32>
      %133 = vector.broadcast %131 : f32 to vector<2x16x16xf32>
      %134 = arith.mulf %133, %132 : vector<2x16x16xf32>
      %135 = arith.addf %130, %134 : vector<2x16x16xf32>
      %c0_42 = arith.constant 0 : index
      %c0_43 = arith.constant 0 : index
      %c0_44 = arith.constant 0 : index
      %c3_45 = arith.constant 3 : index
      %136 = vector.load %arg7[%c0_42, %c0_43, %c0_44, %c3_45] : memref<2x2x22x22xf32, #tpu.memory_space<vmem>>, vector<1x2x22x16xf32>
      %137 = vector.shape_cast %136 : vector<1x2x22x16xf32> to vector<2x22x16xf32>
      %c3_46 = arith.constant 3 : index
      %138 = memref.load %arg2[%c3_46] : memref<98xf32, #tpu.memory_space<smem>>
      %139 = vector.extract_strided_slice %137 {offsets = [0, 0, 0], sizes = [2, 16, 16], strides = [1, 1, 1]} : vector<2x22x16xf32> to vector<2x16x16xf32>
      %140 = vector.broadcast %138 : f32 to vector<2x16x16xf32>
      %141 = arith.mulf %140, %139 : vector<2x16x16xf32>
      %142 = arith.addf %135, %141 : vector<2x16x16xf32>
      %c10 = arith.constant 10 : index
      %143 = memref.load %arg2[%c10] : memref<98xf32, #tpu.memory_space<smem>>
      %144 = vector.extract_strided_slice %137 {offsets = [0, 1, 0], sizes = [2, 16, 16], strides = [1, 1, 1]} : vector<2x22x16xf32> to vector<2x16x16xf32>
      %145 = vector.broadcast %143 : f32 to vector<2x16x16xf32>
      %146 = arith.mulf %145, %144 : vector<2x16x16xf32>
      %147 = arith.addf %142, %146 : vector<2x16x16xf32>
      %c17 = arith.constant 17 : index
      %148 = memref.load %arg2[%c17] : memref<98xf32, #tpu.memory_space<smem>>
      %149 = vector.extract_strided_slice %137 {offsets = [0, 2, 0], sizes = [2, 16, 16], strides = [1, 1, 1]} : vector<2x22x16xf32> to vector<2x16x16xf32>
      %150 = vector.broadcast %148 : f32 to vector<2x16x16xf32>
      %151 = arith.mulf %150, %149 : vector<2x16x16xf32>
      %152 = arith.addf %147, %151 : vector<2x16x16xf32>
      %c24 = arith.constant 24 : index
      %153 = memref.load %arg2[%c24] : memref<98xf32, #tpu.memory_space<smem>>
      %154 = vector.extract_strided_slice %137 {offsets = [0, 3, 0], sizes = [2, 16, 16], strides = [1, 1, 1]} : vector<2x22x16xf32> to vector<2x16x16xf32>
      %155 = vector.broadcast %153 : f32 to vector<2x16x16xf32>
      %156 = arith.mulf %155, %154 : vector<2x16x16xf32>
      %157 = arith.addf %152, %156 : vector<2x16x16xf32>
      %c31 = arith.constant 31 : index
      %158 = memref.load %arg2[%c31] : memref<98xf32, #tpu.memory_space<smem>>
      %159 = vector.extract_strided_slice %137 {offsets = [0, 4, 0], sizes = [2, 16, 16], strides = [1, 1, 1]} : vector<2x22x16xf32> to vector<2x16x16xf32>
      %160 = vector.broadcast %158 : f32 to vector<2x16x16xf32>
      %161 = arith.mulf %160, %159 : vector<2x16x16xf32>
      %162 = arith.addf %157, %161 : vector<2x16x16xf32>
      %c38 = arith.constant 38 : index
      %163 = memref.load %arg2[%c38] : memref<98xf32, #tpu.memory_space<smem>>
      %164 = vector.extract_strided_slice %137 {offsets = [0, 5, 0], sizes = [2, 16, 16], strides = [1, 1, 1]} : vector<2x22x16xf32> to vector<2x16x16xf32>
      %165 = vector.broadcast %163 : f32 to vector<2x16x16xf32>
      %166 = arith.mulf %165, %164 : vector<2x16x16xf32>
      %167 = arith.addf %162, %166 : vector<2x16x16xf32>
      %c45 = arith.constant 45 : index
      %168 = memref.load %arg2[%c45] : memref<98xf32, #tpu.memory_space<smem>>
      %169 = vector.extract_strided_slice %137 {offsets = [0, 6, 0], sizes = [2, 16, 16], strides = [1, 1, 1]} : vector<2x22x16xf32> to vector<2x16x16xf32>
      %170 = vector.broadcast %168 : f32 to vector<2x16x16xf32>
      %171 = arith.mulf %170, %169 : vector<2x16x16xf32>
      %172 = arith.addf %167, %171 : vector<2x16x16xf32>
      %c0_47 = arith.constant 0 : index
      %c0_48 = arith.constant 0 : index
      %c0_49 = arith.constant 0 : index
      %c4 = arith.constant 4 : index
      %173 = vector.load %arg7[%c0_47, %c0_48, %c0_49, %c4] : memref<2x2x22x22xf32, #tpu.memory_space<vmem>>, vector<1x2x22x16xf32>
      %174 = vector.shape_cast %173 : vector<1x2x22x16xf32> to vector<2x22x16xf32>
      %c4_50 = arith.constant 4 : index
      %175 = memref.load %arg2[%c4_50] : memref<98xf32, #tpu.memory_space<smem>>
      %176 = vector.extract_strided_slice %174 {offsets = [0, 0, 0], sizes = [2, 16, 16], strides = [1, 1, 1]} : vector<2x22x16xf32> to vector<2x16x16xf32>
      %177 = vector.broadcast %175 : f32 to vector<2x16x16xf32>
      %178 = arith.mulf %177, %176 : vector<2x16x16xf32>
      %179 = arith.addf %172, %178 : vector<2x16x16xf32>
      %c11 = arith.constant 11 : index
      %180 = memref.load %arg2[%c11] : memref<98xf32, #tpu.memory_space<smem>>
      %181 = vector.extract_strided_slice %174 {offsets = [0, 1, 0], sizes = [2, 16, 16], strides = [1, 1, 1]} : vector<2x22x16xf32> to vector<2x16x16xf32>
      %182 = vector.broadcast %180 : f32 to vector<2x16x16xf32>
      %183 = arith.mulf %182, %181 : vector<2x16x16xf32>
      %184 = arith.addf %179, %183 : vector<2x16x16xf32>
      %c18 = arith.constant 18 : index
      %185 = memref.load %arg2[%c18] : memref<98xf32, #tpu.memory_space<smem>>
      %186 = vector.extract_strided_slice %174 {offsets = [0, 2, 0], sizes = [2, 16, 16], strides = [1, 1, 1]} : vector<2x22x16xf32> to vector<2x16x16xf32>
      %187 = vector.broadcast %185 : f32 to vector<2x16x16xf32>
      %188 = arith.mulf %187, %186 : vector<2x16x16xf32>
      %189 = arith.addf %184, %188 : vector<2x16x16xf32>
      %c25 = arith.constant 25 : index
      %190 = memref.load %arg2[%c25] : memref<98xf32, #tpu.memory_space<smem>>
      %191 = vector.extract_strided_slice %174 {offsets = [0, 3, 0], sizes = [2, 16, 16], strides = [1, 1, 1]} : vector<2x22x16xf32> to vector<2x16x16xf32>
      %192 = vector.broadcast %190 : f32 to vector<2x16x16xf32>
      %193 = arith.mulf %192, %191 : vector<2x16x16xf32>
      %194 = arith.addf %189, %193 : vector<2x16x16xf32>
      %c32 = arith.constant 32 : index
      %195 = memref.load %arg2[%c32] : memref<98xf32, #tpu.memory_space<smem>>
      %196 = vector.extract_strided_slice %174 {offsets = [0, 4, 0], sizes = [2, 16, 16], strides = [1, 1, 1]} : vector<2x22x16xf32> to vector<2x16x16xf32>
      %197 = vector.broadcast %195 : f32 to vector<2x16x16xf32>
      %198 = arith.mulf %197, %196 : vector<2x16x16xf32>
      %199 = arith.addf %194, %198 : vector<2x16x16xf32>
      %c39 = arith.constant 39 : index
      %200 = memref.load %arg2[%c39] : memref<98xf32, #tpu.memory_space<smem>>
      %201 = vector.extract_strided_slice %174 {offsets = [0, 5, 0], sizes = [2, 16, 16], strides = [1, 1, 1]} : vector<2x22x16xf32> to vector<2x16x16xf32>
      %202 = vector.broadcast %200 : f32 to vector<2x16x16xf32>
      %203 = arith.mulf %202, %201 : vector<2x16x16xf32>
      %204 = arith.addf %199, %203 : vector<2x16x16xf32>
      %c46 = arith.constant 46 : index
      %205 = memref.load %arg2[%c46] : memref<98xf32, #tpu.memory_space<smem>>
      %206 = vector.extract_strided_slice %174 {offsets = [0, 6, 0], sizes = [2, 16, 16], strides = [1, 1, 1]} : vector<2x22x16xf32> to vector<2x16x16xf32>
      %207 = vector.broadcast %205 : f32 to vector<2x16x16xf32>
      %208 = arith.mulf %207, %206 : vector<2x16x16xf32>
      %209 = arith.addf %204, %208 : vector<2x16x16xf32>
      %c0_51 = arith.constant 0 : index
      %c0_52 = arith.constant 0 : index
      %c0_53 = arith.constant 0 : index
      %c5 = arith.constant 5 : index
      %210 = vector.load %arg7[%c0_51, %c0_52, %c0_53, %c5] : memref<2x2x22x22xf32, #tpu.memory_space<vmem>>, vector<1x2x22x16xf32>
      %211 = vector.shape_cast %210 : vector<1x2x22x16xf32> to vector<2x22x16xf32>
      %c5_54 = arith.constant 5 : index
      %212 = memref.load %arg2[%c5_54] : memref<98xf32, #tpu.memory_space<smem>>
      %213 = vector.extract_strided_slice %211 {offsets = [0, 0, 0], sizes = [2, 16, 16], strides = [1, 1, 1]} : vector<2x22x16xf32> to vector<2x16x16xf32>
      %214 = vector.broadcast %212 : f32 to vector<2x16x16xf32>
      %215 = arith.mulf %214, %213 : vector<2x16x16xf32>
      %216 = arith.addf %209, %215 : vector<2x16x16xf32>
      %c12 = arith.constant 12 : index
      %217 = memref.load %arg2[%c12] : memref<98xf32, #tpu.memory_space<smem>>
      %218 = vector.extract_strided_slice %211 {offsets = [0, 1, 0], sizes = [2, 16, 16], strides = [1, 1, 1]} : vector<2x22x16xf32> to vector<2x16x16xf32>
      %219 = vector.broadcast %217 : f32 to vector<2x16x16xf32>
      %220 = arith.mulf %219, %218 : vector<2x16x16xf32>
      %221 = arith.addf %216, %220 : vector<2x16x16xf32>
      %c19 = arith.constant 19 : index
      %222 = memref.load %arg2[%c19] : memref<98xf32, #tpu.memory_space<smem>>
      %223 = vector.extract_strided_slice %211 {offsets = [0, 2, 0], sizes = [2, 16, 16], strides = [1, 1, 1]} : vector<2x22x16xf32> to vector<2x16x16xf32>
      %224 = vector.broadcast %222 : f32 to vector<2x16x16xf32>
      %225 = arith.mulf %224, %223 : vector<2x16x16xf32>
      %226 = arith.addf %221, %225 : vector<2x16x16xf32>
      %c26 = arith.constant 26 : index
      %227 = memref.load %arg2[%c26] : memref<98xf32, #tpu.memory_space<smem>>
      %228 = vector.extract_strided_slice %211 {offsets = [0, 3, 0], sizes = [2, 16, 16], strides = [1, 1, 1]} : vector<2x22x16xf32> to vector<2x16x16xf32>
      %229 = vector.broadcast %227 : f32 to vector<2x16x16xf32>
      %230 = arith.mulf %229, %228 : vector<2x16x16xf32>
      %231 = arith.addf %226, %230 : vector<2x16x16xf32>
      %c33 = arith.constant 33 : index
      %232 = memref.load %arg2[%c33] : memref<98xf32, #tpu.memory_space<smem>>
      %233 = vector.extract_strided_slice %211 {offsets = [0, 4, 0], sizes = [2, 16, 16], strides = [1, 1, 1]} : vector<2x22x16xf32> to vector<2x16x16xf32>
      %234 = vector.broadcast %232 : f32 to vector<2x16x16xf32>
      %235 = arith.mulf %234, %233 : vector<2x16x16xf32>
      %236 = arith.addf %231, %235 : vector<2x16x16xf32>
      %c40 = arith.constant 40 : index
      %237 = memref.load %arg2[%c40] : memref<98xf32, #tpu.memory_space<smem>>
      %238 = vector.extract_strided_slice %211 {offsets = [0, 5, 0], sizes = [2, 16, 16], strides = [1, 1, 1]} : vector<2x22x16xf32> to vector<2x16x16xf32>
      %239 = vector.broadcast %237 : f32 to vector<2x16x16xf32>
      %240 = arith.mulf %239, %238 : vector<2x16x16xf32>
      %241 = arith.addf %236, %240 : vector<2x16x16xf32>
      %c47 = arith.constant 47 : index
      %242 = memref.load %arg2[%c47] : memref<98xf32, #tpu.memory_space<smem>>
      %243 = vector.extract_strided_slice %211 {offsets = [0, 6, 0], sizes = [2, 16, 16], strides = [1, 1, 1]} : vector<2x22x16xf32> to vector<2x16x16xf32>
      %244 = vector.broadcast %242 : f32 to vector<2x16x16xf32>
      %245 = arith.mulf %244, %243 : vector<2x16x16xf32>
      %246 = arith.addf %241, %245 : vector<2x16x16xf32>
      %c0_55 = arith.constant 0 : index
      %c0_56 = arith.constant 0 : index
      %c0_57 = arith.constant 0 : index
      %c6 = arith.constant 6 : index
      %247 = vector.load %arg7[%c0_55, %c0_56, %c0_57, %c6] : memref<2x2x22x22xf32, #tpu.memory_space<vmem>>, vector<1x2x22x16xf32>
      %248 = vector.shape_cast %247 : vector<1x2x22x16xf32> to vector<2x22x16xf32>
      %c6_58 = arith.constant 6 : index
      %249 = memref.load %arg2[%c6_58] : memref<98xf32, #tpu.memory_space<smem>>
      %250 = vector.extract_strided_slice %248 {offsets = [0, 0, 0], sizes = [2, 16, 16], strides = [1, 1, 1]} : vector<2x22x16xf32> to vector<2x16x16xf32>
      %251 = vector.broadcast %249 : f32 to vector<2x16x16xf32>
      %252 = arith.mulf %251, %250 : vector<2x16x16xf32>
      %253 = arith.addf %246, %252 : vector<2x16x16xf32>
      %c13 = arith.constant 13 : index
      %254 = memref.load %arg2[%c13] : memref<98xf32, #tpu.memory_space<smem>>
      %255 = vector.extract_strided_slice %248 {offsets = [0, 1, 0], sizes = [2, 16, 16], strides = [1, 1, 1]} : vector<2x22x16xf32> to vector<2x16x16xf32>
      %256 = vector.broadcast %254 : f32 to vector<2x16x16xf32>
      %257 = arith.mulf %256, %255 : vector<2x16x16xf32>
      %258 = arith.addf %253, %257 : vector<2x16x16xf32>
      %c20 = arith.constant 20 : index
      %259 = memref.load %arg2[%c20] : memref<98xf32, #tpu.memory_space<smem>>
      %260 = vector.extract_strided_slice %248 {offsets = [0, 2, 0], sizes = [2, 16, 16], strides = [1, 1, 1]} : vector<2x22x16xf32> to vector<2x16x16xf32>
      %261 = vector.broadcast %259 : f32 to vector<2x16x16xf32>
      %262 = arith.mulf %261, %260 : vector<2x16x16xf32>
      %263 = arith.addf %258, %262 : vector<2x16x16xf32>
      %c27 = arith.constant 27 : index
      %264 = memref.load %arg2[%c27] : memref<98xf32, #tpu.memory_space<smem>>
      %265 = vector.extract_strided_slice %248 {offsets = [0, 3, 0], sizes = [2, 16, 16], strides = [1, 1, 1]} : vector<2x22x16xf32> to vector<2x16x16xf32>
      %266 = vector.broadcast %264 : f32 to vector<2x16x16xf32>
      %267 = arith.mulf %266, %265 : vector<2x16x16xf32>
      %268 = arith.addf %263, %267 : vector<2x16x16xf32>
      %c34 = arith.constant 34 : index
      %269 = memref.load %arg2[%c34] : memref<98xf32, #tpu.memory_space<smem>>
      %270 = vector.extract_strided_slice %248 {offsets = [0, 4, 0], sizes = [2, 16, 16], strides = [1, 1, 1]} : vector<2x22x16xf32> to vector<2x16x16xf32>
      %271 = vector.broadcast %269 : f32 to vector<2x16x16xf32>
      %272 = arith.mulf %271, %270 : vector<2x16x16xf32>
      %273 = arith.addf %268, %272 : vector<2x16x16xf32>
      %c41 = arith.constant 41 : index
      %274 = memref.load %arg2[%c41] : memref<98xf32, #tpu.memory_space<smem>>
      %275 = vector.extract_strided_slice %248 {offsets = [0, 5, 0], sizes = [2, 16, 16], strides = [1, 1, 1]} : vector<2x22x16xf32> to vector<2x16x16xf32>
      %276 = vector.broadcast %274 : f32 to vector<2x16x16xf32>
      %277 = arith.mulf %276, %275 : vector<2x16x16xf32>
      %278 = arith.addf %273, %277 : vector<2x16x16xf32>
      %c48 = arith.constant 48 : index
      %279 = memref.load %arg2[%c48] : memref<98xf32, #tpu.memory_space<smem>>
      %280 = vector.extract_strided_slice %248 {offsets = [0, 6, 0], sizes = [2, 16, 16], strides = [1, 1, 1]} : vector<2x22x16xf32> to vector<2x16x16xf32>
      %281 = vector.broadcast %279 : f32 to vector<2x16x16xf32>
      %282 = arith.mulf %281, %280 : vector<2x16x16xf32>
      %283 = arith.addf %278, %282 : vector<2x16x16xf32>
      %c1_59 = arith.constant 1 : index
      %c0_60 = arith.constant 0 : index
      %c0_61 = arith.constant 0 : index
      %c0_62 = arith.constant 0 : index
      %284 = vector.load %arg7[%c1_59, %c0_60, %c0_61, %c0_62] : memref<2x2x22x22xf32, #tpu.memory_space<vmem>>, vector<1x2x22x16xf32>
      %285 = vector.shape_cast %284 : vector<1x2x22x16xf32> to vector<2x22x16xf32>
      %c49 = arith.constant 49 : index
      %286 = memref.load %arg2[%c49] : memref<98xf32, #tpu.memory_space<smem>>
      %287 = vector.extract_strided_slice %285 {offsets = [0, 0, 0], sizes = [2, 16, 16], strides = [1, 1, 1]} : vector<2x22x16xf32> to vector<2x16x16xf32>
      %288 = vector.broadcast %286 : f32 to vector<2x16x16xf32>
      %289 = arith.mulf %288, %287 : vector<2x16x16xf32>
      %290 = arith.addf %283, %289 : vector<2x16x16xf32>
      %c56 = arith.constant 56 : index
      %291 = memref.load %arg2[%c56] : memref<98xf32, #tpu.memory_space<smem>>
      %292 = vector.extract_strided_slice %285 {offsets = [0, 1, 0], sizes = [2, 16, 16], strides = [1, 1, 1]} : vector<2x22x16xf32> to vector<2x16x16xf32>
      %293 = vector.broadcast %291 : f32 to vector<2x16x16xf32>
      %294 = arith.mulf %293, %292 : vector<2x16x16xf32>
      %295 = arith.addf %290, %294 : vector<2x16x16xf32>
      %c63 = arith.constant 63 : index
      %296 = memref.load %arg2[%c63] : memref<98xf32, #tpu.memory_space<smem>>
      %297 = vector.extract_strided_slice %285 {offsets = [0, 2, 0], sizes = [2, 16, 16], strides = [1, 1, 1]} : vector<2x22x16xf32> to vector<2x16x16xf32>
      %298 = vector.broadcast %296 : f32 to vector<2x16x16xf32>
      %299 = arith.mulf %298, %297 : vector<2x16x16xf32>
      %300 = arith.addf %295, %299 : vector<2x16x16xf32>
      %c70 = arith.constant 70 : index
      %301 = memref.load %arg2[%c70] : memref<98xf32, #tpu.memory_space<smem>>
      %302 = vector.extract_strided_slice %285 {offsets = [0, 3, 0], sizes = [2, 16, 16], strides = [1, 1, 1]} : vector<2x22x16xf32> to vector<2x16x16xf32>
      %303 = vector.broadcast %301 : f32 to vector<2x16x16xf32>
      %304 = arith.mulf %303, %302 : vector<2x16x16xf32>
      %305 = arith.addf %300, %304 : vector<2x16x16xf32>
      %c77 = arith.constant 77 : index
      %306 = memref.load %arg2[%c77] : memref<98xf32, #tpu.memory_space<smem>>
      %307 = vector.extract_strided_slice %285 {offsets = [0, 4, 0], sizes = [2, 16, 16], strides = [1, 1, 1]} : vector<2x22x16xf32> to vector<2x16x16xf32>
      %308 = vector.broadcast %306 : f32 to vector<2x16x16xf32>
      %309 = arith.mulf %308, %307 : vector<2x16x16xf32>
      %310 = arith.addf %305, %309 : vector<2x16x16xf32>
      %c84 = arith.constant 84 : index
      %311 = memref.load %arg2[%c84] : memref<98xf32, #tpu.memory_space<smem>>
      %312 = vector.extract_strided_slice %285 {offsets = [0, 5, 0], sizes = [2, 16, 16], strides = [1, 1, 1]} : vector<2x22x16xf32> to vector<2x16x16xf32>
      %313 = vector.broadcast %311 : f32 to vector<2x16x16xf32>
      %314 = arith.mulf %313, %312 : vector<2x16x16xf32>
      %315 = arith.addf %310, %314 : vector<2x16x16xf32>
      %c91 = arith.constant 91 : index
      %316 = memref.load %arg2[%c91] : memref<98xf32, #tpu.memory_space<smem>>
      %317 = vector.extract_strided_slice %285 {offsets = [0, 6, 0], sizes = [2, 16, 16], strides = [1, 1, 1]} : vector<2x22x16xf32> to vector<2x16x16xf32>
      %318 = vector.broadcast %316 : f32 to vector<2x16x16xf32>
      %319 = arith.mulf %318, %317 : vector<2x16x16xf32>
      %320 = arith.addf %315, %319 : vector<2x16x16xf32>
      %c1_63 = arith.constant 1 : index
      %c0_64 = arith.constant 0 : index
      %c0_65 = arith.constant 0 : index
      %c1_66 = arith.constant 1 : index
      %321 = vector.load %arg7[%c1_63, %c0_64, %c0_65, %c1_66] : memref<2x2x22x22xf32, #tpu.memory_space<vmem>>, vector<1x2x22x16xf32>
      %322 = vector.shape_cast %321 : vector<1x2x22x16xf32> to vector<2x22x16xf32>
      %c50 = arith.constant 50 : index
      %323 = memref.load %arg2[%c50] : memref<98xf32, #tpu.memory_space<smem>>
      %324 = vector.extract_strided_slice %322 {offsets = [0, 0, 0], sizes = [2, 16, 16], strides = [1, 1, 1]} : vector<2x22x16xf32> to vector<2x16x16xf32>
      %325 = vector.broadcast %323 : f32 to vector<2x16x16xf32>
      %326 = arith.mulf %325, %324 : vector<2x16x16xf32>
      %327 = arith.addf %320, %326 : vector<2x16x16xf32>
      %c57 = arith.constant 57 : index
      %328 = memref.load %arg2[%c57] : memref<98xf32, #tpu.memory_space<smem>>
      %329 = vector.extract_strided_slice %322 {offsets = [0, 1, 0], sizes = [2, 16, 16], strides = [1, 1, 1]} : vector<2x22x16xf32> to vector<2x16x16xf32>
      %330 = vector.broadcast %328 : f32 to vector<2x16x16xf32>
      %331 = arith.mulf %330, %329 : vector<2x16x16xf32>
      %332 = arith.addf %327, %331 : vector<2x16x16xf32>
      %c64 = arith.constant 64 : index
      %333 = memref.load %arg2[%c64] : memref<98xf32, #tpu.memory_space<smem>>
      %334 = vector.extract_strided_slice %322 {offsets = [0, 2, 0], sizes = [2, 16, 16], strides = [1, 1, 1]} : vector<2x22x16xf32> to vector<2x16x16xf32>
      %335 = vector.broadcast %333 : f32 to vector<2x16x16xf32>
      %336 = arith.mulf %335, %334 : vector<2x16x16xf32>
      %337 = arith.addf %332, %336 : vector<2x16x16xf32>
      %c71 = arith.constant 71 : index
      %338 = memref.load %arg2[%c71] : memref<98xf32, #tpu.memory_space<smem>>
      %339 = vector.extract_strided_slice %322 {offsets = [0, 3, 0], sizes = [2, 16, 16], strides = [1, 1, 1]} : vector<2x22x16xf32> to vector<2x16x16xf32>
      %340 = vector.broadcast %338 : f32 to vector<2x16x16xf32>
      %341 = arith.mulf %340, %339 : vector<2x16x16xf32>
      %342 = arith.addf %337, %341 : vector<2x16x16xf32>
      %c78 = arith.constant 78 : index
      %343 = memref.load %arg2[%c78] : memref<98xf32, #tpu.memory_space<smem>>
      %344 = vector.extract_strided_slice %322 {offsets = [0, 4, 0], sizes = [2, 16, 16], strides = [1, 1, 1]} : vector<2x22x16xf32> to vector<2x16x16xf32>
      %345 = vector.broadcast %343 : f32 to vector<2x16x16xf32>
      %346 = arith.mulf %345, %344 : vector<2x16x16xf32>
      %347 = arith.addf %342, %346 : vector<2x16x16xf32>
      %c85 = arith.constant 85 : index
      %348 = memref.load %arg2[%c85] : memref<98xf32, #tpu.memory_space<smem>>
      %349 = vector.extract_strided_slice %322 {offsets = [0, 5, 0], sizes = [2, 16, 16], strides = [1, 1, 1]} : vector<2x22x16xf32> to vector<2x16x16xf32>
      %350 = vector.broadcast %348 : f32 to vector<2x16x16xf32>
      %351 = arith.mulf %350, %349 : vector<2x16x16xf32>
      %352 = arith.addf %347, %351 : vector<2x16x16xf32>
      %c92 = arith.constant 92 : index
      %353 = memref.load %arg2[%c92] : memref<98xf32, #tpu.memory_space<smem>>
      %354 = vector.extract_strided_slice %322 {offsets = [0, 6, 0], sizes = [2, 16, 16], strides = [1, 1, 1]} : vector<2x22x16xf32> to vector<2x16x16xf32>
      %355 = vector.broadcast %353 : f32 to vector<2x16x16xf32>
      %356 = arith.mulf %355, %354 : vector<2x16x16xf32>
      %357 = arith.addf %352, %356 : vector<2x16x16xf32>
      %c1_67 = arith.constant 1 : index
      %c0_68 = arith.constant 0 : index
      %c0_69 = arith.constant 0 : index
      %c2_70 = arith.constant 2 : index
      %358 = vector.load %arg7[%c1_67, %c0_68, %c0_69, %c2_70] : memref<2x2x22x22xf32, #tpu.memory_space<vmem>>, vector<1x2x22x16xf32>
      %359 = vector.shape_cast %358 : vector<1x2x22x16xf32> to vector<2x22x16xf32>
      %c51 = arith.constant 51 : index
      %360 = memref.load %arg2[%c51] : memref<98xf32, #tpu.memory_space<smem>>
      %361 = vector.extract_strided_slice %359 {offsets = [0, 0, 0], sizes = [2, 16, 16], strides = [1, 1, 1]} : vector<2x22x16xf32> to vector<2x16x16xf32>
      %362 = vector.broadcast %360 : f32 to vector<2x16x16xf32>
      %363 = arith.mulf %362, %361 : vector<2x16x16xf32>
      %364 = arith.addf %357, %363 : vector<2x16x16xf32>
      %c58 = arith.constant 58 : index
      %365 = memref.load %arg2[%c58] : memref<98xf32, #tpu.memory_space<smem>>
      %366 = vector.extract_strided_slice %359 {offsets = [0, 1, 0], sizes = [2, 16, 16], strides = [1, 1, 1]} : vector<2x22x16xf32> to vector<2x16x16xf32>
      %367 = vector.broadcast %365 : f32 to vector<2x16x16xf32>
      %368 = arith.mulf %367, %366 : vector<2x16x16xf32>
      %369 = arith.addf %364, %368 : vector<2x16x16xf32>
      %c65 = arith.constant 65 : index
      %370 = memref.load %arg2[%c65] : memref<98xf32, #tpu.memory_space<smem>>
      %371 = vector.extract_strided_slice %359 {offsets = [0, 2, 0], sizes = [2, 16, 16], strides = [1, 1, 1]} : vector<2x22x16xf32> to vector<2x16x16xf32>
      %372 = vector.broadcast %370 : f32 to vector<2x16x16xf32>
      %373 = arith.mulf %372, %371 : vector<2x16x16xf32>
      %374 = arith.addf %369, %373 : vector<2x16x16xf32>
      %c72 = arith.constant 72 : index
      %375 = memref.load %arg2[%c72] : memref<98xf32, #tpu.memory_space<smem>>
      %376 = vector.extract_strided_slice %359 {offsets = [0, 3, 0], sizes = [2, 16, 16], strides = [1, 1, 1]} : vector<2x22x16xf32> to vector<2x16x16xf32>
      %377 = vector.broadcast %375 : f32 to vector<2x16x16xf32>
      %378 = arith.mulf %377, %376 : vector<2x16x16xf32>
      %379 = arith.addf %374, %378 : vector<2x16x16xf32>
      %c79 = arith.constant 79 : index
      %380 = memref.load %arg2[%c79] : memref<98xf32, #tpu.memory_space<smem>>
      %381 = vector.extract_strided_slice %359 {offsets = [0, 4, 0], sizes = [2, 16, 16], strides = [1, 1, 1]} : vector<2x22x16xf32> to vector<2x16x16xf32>
      %382 = vector.broadcast %380 : f32 to vector<2x16x16xf32>
      %383 = arith.mulf %382, %381 : vector<2x16x16xf32>
      %384 = arith.addf %379, %383 : vector<2x16x16xf32>
      %c86 = arith.constant 86 : index
      %385 = memref.load %arg2[%c86] : memref<98xf32, #tpu.memory_space<smem>>
      %386 = vector.extract_strided_slice %359 {offsets = [0, 5, 0], sizes = [2, 16, 16], strides = [1, 1, 1]} : vector<2x22x16xf32> to vector<2x16x16xf32>
      %387 = vector.broadcast %385 : f32 to vector<2x16x16xf32>
      %388 = arith.mulf %387, %386 : vector<2x16x16xf32>
      %389 = arith.addf %384, %388 : vector<2x16x16xf32>
      %c93 = arith.constant 93 : index
      %390 = memref.load %arg2[%c93] : memref<98xf32, #tpu.memory_space<smem>>
      %391 = vector.extract_strided_slice %359 {offsets = [0, 6, 0], sizes = [2, 16, 16], strides = [1, 1, 1]} : vector<2x22x16xf32> to vector<2x16x16xf32>
      %392 = vector.broadcast %390 : f32 to vector<2x16x16xf32>
      %393 = arith.mulf %392, %391 : vector<2x16x16xf32>
      %394 = arith.addf %389, %393 : vector<2x16x16xf32>
      %c1_71 = arith.constant 1 : index
      %c0_72 = arith.constant 0 : index
      %c0_73 = arith.constant 0 : index
      %c3_74 = arith.constant 3 : index
      %395 = vector.load %arg7[%c1_71, %c0_72, %c0_73, %c3_74] : memref<2x2x22x22xf32, #tpu.memory_space<vmem>>, vector<1x2x22x16xf32>
      %396 = vector.shape_cast %395 : vector<1x2x22x16xf32> to vector<2x22x16xf32>
      %c52 = arith.constant 52 : index
      %397 = memref.load %arg2[%c52] : memref<98xf32, #tpu.memory_space<smem>>
      %398 = vector.extract_strided_slice %396 {offsets = [0, 0, 0], sizes = [2, 16, 16], strides = [1, 1, 1]} : vector<2x22x16xf32> to vector<2x16x16xf32>
      %399 = vector.broadcast %397 : f32 to vector<2x16x16xf32>
      %400 = arith.mulf %399, %398 : vector<2x16x16xf32>
      %401 = arith.addf %394, %400 : vector<2x16x16xf32>
      %c59 = arith.constant 59 : index
      %402 = memref.load %arg2[%c59] : memref<98xf32, #tpu.memory_space<smem>>
      %403 = vector.extract_strided_slice %396 {offsets = [0, 1, 0], sizes = [2, 16, 16], strides = [1, 1, 1]} : vector<2x22x16xf32> to vector<2x16x16xf32>
      %404 = vector.broadcast %402 : f32 to vector<2x16x16xf32>
      %405 = arith.mulf %404, %403 : vector<2x16x16xf32>
      %406 = arith.addf %401, %405 : vector<2x16x16xf32>
      %c66 = arith.constant 66 : index
      %407 = memref.load %arg2[%c66] : memref<98xf32, #tpu.memory_space<smem>>
      %408 = vector.extract_strided_slice %396 {offsets = [0, 2, 0], sizes = [2, 16, 16], strides = [1, 1, 1]} : vector<2x22x16xf32> to vector<2x16x16xf32>
      %409 = vector.broadcast %407 : f32 to vector<2x16x16xf32>
      %410 = arith.mulf %409, %408 : vector<2x16x16xf32>
      %411 = arith.addf %406, %410 : vector<2x16x16xf32>
      %c73 = arith.constant 73 : index
      %412 = memref.load %arg2[%c73] : memref<98xf32, #tpu.memory_space<smem>>
      %413 = vector.extract_strided_slice %396 {offsets = [0, 3, 0], sizes = [2, 16, 16], strides = [1, 1, 1]} : vector<2x22x16xf32> to vector<2x16x16xf32>
      %414 = vector.broadcast %412 : f32 to vector<2x16x16xf32>
      %415 = arith.mulf %414, %413 : vector<2x16x16xf32>
      %416 = arith.addf %411, %415 : vector<2x16x16xf32>
      %c80 = arith.constant 80 : index
      %417 = memref.load %arg2[%c80] : memref<98xf32, #tpu.memory_space<smem>>
      %418 = vector.extract_strided_slice %396 {offsets = [0, 4, 0], sizes = [2, 16, 16], strides = [1, 1, 1]} : vector<2x22x16xf32> to vector<2x16x16xf32>
      %419 = vector.broadcast %417 : f32 to vector<2x16x16xf32>
      %420 = arith.mulf %419, %418 : vector<2x16x16xf32>
      %421 = arith.addf %416, %420 : vector<2x16x16xf32>
      %c87 = arith.constant 87 : index
      %422 = memref.load %arg2[%c87] : memref<98xf32, #tpu.memory_space<smem>>
      %423 = vector.extract_strided_slice %396 {offsets = [0, 5, 0], sizes = [2, 16, 16], strides = [1, 1, 1]} : vector<2x22x16xf32> to vector<2x16x16xf32>
      %424 = vector.broadcast %422 : f32 to vector<2x16x16xf32>
      %425 = arith.mulf %424, %423 : vector<2x16x16xf32>
      %426 = arith.addf %421, %425 : vector<2x16x16xf32>
      %c94 = arith.constant 94 : index
      %427 = memref.load %arg2[%c94] : memref<98xf32, #tpu.memory_space<smem>>
      %428 = vector.extract_strided_slice %396 {offsets = [0, 6, 0], sizes = [2, 16, 16], strides = [1, 1, 1]} : vector<2x22x16xf32> to vector<2x16x16xf32>
      %429 = vector.broadcast %427 : f32 to vector<2x16x16xf32>
      %430 = arith.mulf %429, %428 : vector<2x16x16xf32>
      %431 = arith.addf %426, %430 : vector<2x16x16xf32>
      %c1_75 = arith.constant 1 : index
      %c0_76 = arith.constant 0 : index
      %c0_77 = arith.constant 0 : index
      %c4_78 = arith.constant 4 : index
      %432 = vector.load %arg7[%c1_75, %c0_76, %c0_77, %c4_78] : memref<2x2x22x22xf32, #tpu.memory_space<vmem>>, vector<1x2x22x16xf32>
      %433 = vector.shape_cast %432 : vector<1x2x22x16xf32> to vector<2x22x16xf32>
      %c53 = arith.constant 53 : index
      %434 = memref.load %arg2[%c53] : memref<98xf32, #tpu.memory_space<smem>>
      %435 = vector.extract_strided_slice %433 {offsets = [0, 0, 0], sizes = [2, 16, 16], strides = [1, 1, 1]} : vector<2x22x16xf32> to vector<2x16x16xf32>
      %436 = vector.broadcast %434 : f32 to vector<2x16x16xf32>
      %437 = arith.mulf %436, %435 : vector<2x16x16xf32>
      %438 = arith.addf %431, %437 : vector<2x16x16xf32>
      %c60 = arith.constant 60 : index
      %439 = memref.load %arg2[%c60] : memref<98xf32, #tpu.memory_space<smem>>
      %440 = vector.extract_strided_slice %433 {offsets = [0, 1, 0], sizes = [2, 16, 16], strides = [1, 1, 1]} : vector<2x22x16xf32> to vector<2x16x16xf32>
      %441 = vector.broadcast %439 : f32 to vector<2x16x16xf32>
      %442 = arith.mulf %441, %440 : vector<2x16x16xf32>
      %443 = arith.addf %438, %442 : vector<2x16x16xf32>
      %c67 = arith.constant 67 : index
      %444 = memref.load %arg2[%c67] : memref<98xf32, #tpu.memory_space<smem>>
      %445 = vector.extract_strided_slice %433 {offsets = [0, 2, 0], sizes = [2, 16, 16], strides = [1, 1, 1]} : vector<2x22x16xf32> to vector<2x16x16xf32>
      %446 = vector.broadcast %444 : f32 to vector<2x16x16xf32>
      %447 = arith.mulf %446, %445 : vector<2x16x16xf32>
      %448 = arith.addf %443, %447 : vector<2x16x16xf32>
      %c74 = arith.constant 74 : index
      %449 = memref.load %arg2[%c74] : memref<98xf32, #tpu.memory_space<smem>>
      %450 = vector.extract_strided_slice %433 {offsets = [0, 3, 0], sizes = [2, 16, 16], strides = [1, 1, 1]} : vector<2x22x16xf32> to vector<2x16x16xf32>
      %451 = vector.broadcast %449 : f32 to vector<2x16x16xf32>
      %452 = arith.mulf %451, %450 : vector<2x16x16xf32>
      %453 = arith.addf %448, %452 : vector<2x16x16xf32>
      %c81 = arith.constant 81 : index
      %454 = memref.load %arg2[%c81] : memref<98xf32, #tpu.memory_space<smem>>
      %455 = vector.extract_strided_slice %433 {offsets = [0, 4, 0], sizes = [2, 16, 16], strides = [1, 1, 1]} : vector<2x22x16xf32> to vector<2x16x16xf32>
      %456 = vector.broadcast %454 : f32 to vector<2x16x16xf32>
      %457 = arith.mulf %456, %455 : vector<2x16x16xf32>
      %458 = arith.addf %453, %457 : vector<2x16x16xf32>
      %c88 = arith.constant 88 : index
      %459 = memref.load %arg2[%c88] : memref<98xf32, #tpu.memory_space<smem>>
      %460 = vector.extract_strided_slice %433 {offsets = [0, 5, 0], sizes = [2, 16, 16], strides = [1, 1, 1]} : vector<2x22x16xf32> to vector<2x16x16xf32>
      %461 = vector.broadcast %459 : f32 to vector<2x16x16xf32>
      %462 = arith.mulf %461, %460 : vector<2x16x16xf32>
      %463 = arith.addf %458, %462 : vector<2x16x16xf32>
      %c95 = arith.constant 95 : index
      %464 = memref.load %arg2[%c95] : memref<98xf32, #tpu.memory_space<smem>>
      %465 = vector.extract_strided_slice %433 {offsets = [0, 6, 0], sizes = [2, 16, 16], strides = [1, 1, 1]} : vector<2x22x16xf32> to vector<2x16x16xf32>
      %466 = vector.broadcast %464 : f32 to vector<2x16x16xf32>
      %467 = arith.mulf %466, %465 : vector<2x16x16xf32>
      %468 = arith.addf %463, %467 : vector<2x16x16xf32>
      %c1_79 = arith.constant 1 : index
      %c0_80 = arith.constant 0 : index
      %c0_81 = arith.constant 0 : index
      %c5_82 = arith.constant 5 : index
      %469 = vector.load %arg7[%c1_79, %c0_80, %c0_81, %c5_82] : memref<2x2x22x22xf32, #tpu.memory_space<vmem>>, vector<1x2x22x16xf32>
      %470 = vector.shape_cast %469 : vector<1x2x22x16xf32> to vector<2x22x16xf32>
      %c54 = arith.constant 54 : index
      %471 = memref.load %arg2[%c54] : memref<98xf32, #tpu.memory_space<smem>>
      %472 = vector.extract_strided_slice %470 {offsets = [0, 0, 0], sizes = [2, 16, 16], strides = [1, 1, 1]} : vector<2x22x16xf32> to vector<2x16x16xf32>
      %473 = vector.broadcast %471 : f32 to vector<2x16x16xf32>
      %474 = arith.mulf %473, %472 : vector<2x16x16xf32>
      %475 = arith.addf %468, %474 : vector<2x16x16xf32>
      %c61 = arith.constant 61 : index
      %476 = memref.load %arg2[%c61] : memref<98xf32, #tpu.memory_space<smem>>
      %477 = vector.extract_strided_slice %470 {offsets = [0, 1, 0], sizes = [2, 16, 16], strides = [1, 1, 1]} : vector<2x22x16xf32> to vector<2x16x16xf32>
      %478 = vector.broadcast %476 : f32 to vector<2x16x16xf32>
      %479 = arith.mulf %478, %477 : vector<2x16x16xf32>
      %480 = arith.addf %475, %479 : vector<2x16x16xf32>
      %c68 = arith.constant 68 : index
      %481 = memref.load %arg2[%c68] : memref<98xf32, #tpu.memory_space<smem>>
      %482 = vector.extract_strided_slice %470 {offsets = [0, 2, 0], sizes = [2, 16, 16], strides = [1, 1, 1]} : vector<2x22x16xf32> to vector<2x16x16xf32>
      %483 = vector.broadcast %481 : f32 to vector<2x16x16xf32>
      %484 = arith.mulf %483, %482 : vector<2x16x16xf32>
      %485 = arith.addf %480, %484 : vector<2x16x16xf32>
      %c75 = arith.constant 75 : index
      %486 = memref.load %arg2[%c75] : memref<98xf32, #tpu.memory_space<smem>>
      %487 = vector.extract_strided_slice %470 {offsets = [0, 3, 0], sizes = [2, 16, 16], strides = [1, 1, 1]} : vector<2x22x16xf32> to vector<2x16x16xf32>
      %488 = vector.broadcast %486 : f32 to vector<2x16x16xf32>
      %489 = arith.mulf %488, %487 : vector<2x16x16xf32>
      %490 = arith.addf %485, %489 : vector<2x16x16xf32>
      %c82 = arith.constant 82 : index
      %491 = memref.load %arg2[%c82] : memref<98xf32, #tpu.memory_space<smem>>
      %492 = vector.extract_strided_slice %470 {offsets = [0, 4, 0], sizes = [2, 16, 16], strides = [1, 1, 1]} : vector<2x22x16xf32> to vector<2x16x16xf32>
      %493 = vector.broadcast %491 : f32 to vector<2x16x16xf32>
      %494 = arith.mulf %493, %492 : vector<2x16x16xf32>
      %495 = arith.addf %490, %494 : vector<2x16x16xf32>
      %c89 = arith.constant 89 : index
      %496 = memref.load %arg2[%c89] : memref<98xf32, #tpu.memory_space<smem>>
      %497 = vector.extract_strided_slice %470 {offsets = [0, 5, 0], sizes = [2, 16, 16], strides = [1, 1, 1]} : vector<2x22x16xf32> to vector<2x16x16xf32>
      %498 = vector.broadcast %496 : f32 to vector<2x16x16xf32>
      %499 = arith.mulf %498, %497 : vector<2x16x16xf32>
      %500 = arith.addf %495, %499 : vector<2x16x16xf32>
      %c96 = arith.constant 96 : index
      %501 = memref.load %arg2[%c96] : memref<98xf32, #tpu.memory_space<smem>>
      %502 = vector.extract_strided_slice %470 {offsets = [0, 6, 0], sizes = [2, 16, 16], strides = [1, 1, 1]} : vector<2x22x16xf32> to vector<2x16x16xf32>
      %503 = vector.broadcast %501 : f32 to vector<2x16x16xf32>
      %504 = arith.mulf %503, %502 : vector<2x16x16xf32>
      %505 = arith.addf %500, %504 : vector<2x16x16xf32>
      %c1_83 = arith.constant 1 : index
      %c0_84 = arith.constant 0 : index
      %c0_85 = arith.constant 0 : index
      %c6_86 = arith.constant 6 : index
      %506 = vector.load %arg7[%c1_83, %c0_84, %c0_85, %c6_86] : memref<2x2x22x22xf32, #tpu.memory_space<vmem>>, vector<1x2x22x16xf32>
      %507 = vector.shape_cast %506 : vector<1x2x22x16xf32> to vector<2x22x16xf32>
      %c55 = arith.constant 55 : index
      %508 = memref.load %arg2[%c55] : memref<98xf32, #tpu.memory_space<smem>>
      %509 = vector.extract_strided_slice %507 {offsets = [0, 0, 0], sizes = [2, 16, 16], strides = [1, 1, 1]} : vector<2x22x16xf32> to vector<2x16x16xf32>
      %510 = vector.broadcast %508 : f32 to vector<2x16x16xf32>
      %511 = arith.mulf %510, %509 : vector<2x16x16xf32>
      %512 = arith.addf %505, %511 : vector<2x16x16xf32>
      %c62 = arith.constant 62 : index
      %513 = memref.load %arg2[%c62] : memref<98xf32, #tpu.memory_space<smem>>
      %514 = vector.extract_strided_slice %507 {offsets = [0, 1, 0], sizes = [2, 16, 16], strides = [1, 1, 1]} : vector<2x22x16xf32> to vector<2x16x16xf32>
      %515 = vector.broadcast %513 : f32 to vector<2x16x16xf32>
      %516 = arith.mulf %515, %514 : vector<2x16x16xf32>
      %517 = arith.addf %512, %516 : vector<2x16x16xf32>
      %c69 = arith.constant 69 : index
      %518 = memref.load %arg2[%c69] : memref<98xf32, #tpu.memory_space<smem>>
      %519 = vector.extract_strided_slice %507 {offsets = [0, 2, 0], sizes = [2, 16, 16], strides = [1, 1, 1]} : vector<2x22x16xf32> to vector<2x16x16xf32>
      %520 = vector.broadcast %518 : f32 to vector<2x16x16xf32>
      %521 = arith.mulf %520, %519 : vector<2x16x16xf32>
      %522 = arith.addf %517, %521 : vector<2x16x16xf32>
      %c76 = arith.constant 76 : index
      %523 = memref.load %arg2[%c76] : memref<98xf32, #tpu.memory_space<smem>>
      %524 = vector.extract_strided_slice %507 {offsets = [0, 3, 0], sizes = [2, 16, 16], strides = [1, 1, 1]} : vector<2x22x16xf32> to vector<2x16x16xf32>
      %525 = vector.broadcast %523 : f32 to vector<2x16x16xf32>
      %526 = arith.mulf %525, %524 : vector<2x16x16xf32>
      %527 = arith.addf %522, %526 : vector<2x16x16xf32>
      %c83 = arith.constant 83 : index
      %528 = memref.load %arg2[%c83] : memref<98xf32, #tpu.memory_space<smem>>
      %529 = vector.extract_strided_slice %507 {offsets = [0, 4, 0], sizes = [2, 16, 16], strides = [1, 1, 1]} : vector<2x22x16xf32> to vector<2x16x16xf32>
      %530 = vector.broadcast %528 : f32 to vector<2x16x16xf32>
      %531 = arith.mulf %530, %529 : vector<2x16x16xf32>
      %532 = arith.addf %527, %531 : vector<2x16x16xf32>
      %c90 = arith.constant 90 : index
      %533 = memref.load %arg2[%c90] : memref<98xf32, #tpu.memory_space<smem>>
      %534 = vector.extract_strided_slice %507 {offsets = [0, 5, 0], sizes = [2, 16, 16], strides = [1, 1, 1]} : vector<2x22x16xf32> to vector<2x16x16xf32>
      %535 = vector.broadcast %533 : f32 to vector<2x16x16xf32>
      %536 = arith.mulf %535, %534 : vector<2x16x16xf32>
      %537 = arith.addf %532, %536 : vector<2x16x16xf32>
      %c97 = arith.constant 97 : index
      %538 = memref.load %arg2[%c97] : memref<98xf32, #tpu.memory_space<smem>>
      %539 = vector.extract_strided_slice %507 {offsets = [0, 6, 0], sizes = [2, 16, 16], strides = [1, 1, 1]} : vector<2x22x16xf32> to vector<2x16x16xf32>
      %540 = vector.broadcast %538 : f32 to vector<2x16x16xf32>
      %541 = arith.mulf %540, %539 : vector<2x16x16xf32>
      %542 = arith.addf %537, %541 : vector<2x16x16xf32>
      %543 = arith.negf %542 : vector<2x16x16xf32>
      %544 = math.exp %543 : vector<2x16x16xf32>
      %cst_87 = arith.constant 1.000000e+00 : f32
      %545 = vector.broadcast %cst_87 : f32 to vector<2x16x16xf32>
      %546 = arith.addf %545, %544 : vector<2x16x16xf32>
      %547 = arith.divf %545, %546 : vector<2x16x16xf32>
      %c0_88 = arith.constant 0 : index
      %c0_89 = arith.constant 0 : index
      %c0_90 = arith.constant 0 : index
      %548 = vector.load %arg4[%c0_88, %c0_89, %c0_90] : memref<2x16x16xf32, #tpu.memory_space<vmem>>, vector<2x16x16xf32>
      tpu.vector_store %arg4[%c0_88, %c0_89, %c0_90], %547 {strides = array<i32>} : memref<2x16x16xf32, #tpu.memory_space<vmem>>, vector<2x16x16xf32>,
    } else {
    }
    return
  }
  func.func @transform_0(%arg0: i32, %arg1: i32) -> i32 {
    %c0_i32 = arith.constant 0 : i32
    %c0_i32_0 = arith.constant 0 : i32
    return %c0_i32 : i32
  }
  func.func @transform_1(%arg0: i32, %arg1: i32) -> (i32, i32, i32, i32) {
    %c0_i32 = arith.constant 0 : i32
    %c0_i32_0 = arith.constant 0 : i32
    %c0_i32_1 = arith.constant 0 : i32
    return %arg0, %arg1, %c0_i32, %c0_i32_0 : i32, i32, i32, i32
  }
  func.func @transform_2(%arg0: i32, %arg1: i32) -> (i32, i32, i32) {
    %c0_i32 = arith.constant 0 : i32
    %c0_i32_0 = arith.constant 0 : i32
    %c0_i32_1 = arith.constant 0 : i32
    return %arg0, %c0_i32, %c0_i32_0 : i32, i32, i32
  }
}

</mosaic_0001>

<llo_original>
// kernel: tpu_custom_call.1
$region0: #{tpu_custom_call.1}
  #allocation0 [shape = 'u32[]', space=smem, size = 0x4, offset = 0x4, fixed_abs, tag = 'smem constant byte address 0x4 - core index']
  #allocation1 [shape = 'u32[144,128]{1,0:T(1,128)}', space=vmem, size = 0x12000, scoped, tag = 'internal scratch']
  #allocation2 [shape = 'f32[2,16,16]{2,1,0:T(8,128)}', space=vmem, size = 0x4000, scoped, tag = 'scratch operand']
  #allocation3 [shape = 'f32[2,16,16]{2,1,0:T(8,128)}', space=vmem, size = 0x4000, scoped, tag = 'scratch operand']
  #allocation4 [shape = 'f32[2,2,22,22]{3,2,1,0:T(8,128)}', space=vmem, size = 0xc000, scoped, tag = 'scratch operand']
  %s0 = inlined_call_operand.hbm [shape: f32[98], index: 0, kind: input, shape index: {}]
  %s1 = inlined_call_operand.hbm [shape: f32[2,4,16,16], index: 1, kind: input, shape index: {}]
  %s2 = inlined_call_operand.hbm [shape: f32[2,16,16], index: 2, kind: output, shape index: {}]
  %s3 = sld [smem:[#allocation0]]
  $region38: #{tpu_custom_call.1} parent=0
    _
  %s5 = ssub.s32 1, %s3
  %s6 = scalar_select 0, %s5, %s3
  $region1: #{tpu_custom_call.1} parent=0
    #allocation5 [shape = 'u8[512]{0}', space=smem, size = 0x200, scoped, tag = 'input window, operand 0, single buffered']
    #allocation6 [shape = 's32[1]{0}', space=sflag, size = 0x4, scoped, tag = 'scoped memory for tpu_custom_call.1']
    #allocation7 [shape = 's32[1]{0}', space=sflag, size = 0x4, scoped, tag = 'scoped memory for tpu_custom_call.1']
    #allocation8 [shape = 's32[1]{0}', space=sflag, size = 0x4, scoped, tag = 'scoped memory for tpu_custom_call.1']
    #allocation9 [shape = 'u8[65536]{0}', space=vmem, size = 0x10000, scoped, tag = 'input window, operand 1, single buffered']
    #allocation10 [shape = 'u8[16384]{0}', space=vmem, size = 0x4000, scoped, tag = 'output window, operand 0, single buffered']
    %7 = vsyncpa [#allocation8], 0
    %8 = vsyncpa [#allocation6], 0
    %9 = vsyncpa [#allocation7], 0
    // Predicated region
    $region2: #{tpu_custom_call.1} parent=1 // pred_check
      _
    $region3: #{tpu_custom_call.1} parent=1 // pred_check_branch
      %11 = sbr.rel (0) target = $region5
    $region4: #{tpu_custom_call.1} parent=1 // pred_region
      %s13 = ssub.s32 16, 16
      %14 = vsyncadd [#allocation8], %s13
      %17 = dma.hbm_to_smem %s0, 16, [#allocation5], [#allocation8]
    $region5: #{tpu_custom_call.1} parent=1 // pred_fallthru
      _
    // Predicated region
    $region6: #{tpu_custom_call.1} parent=1 // pred_check
      _
    $region7: #{tpu_custom_call.1} parent=1 // pred_check_branch
      %19 = sbr.rel (0) target = $region9
    $region8: #{tpu_custom_call.1} parent=1 // pred_region
      %s21 = ssub.s32 2048, 2048
      %22 = vsyncadd [#allocation6], %s21
      %s23 = sshll.u32 [#allocation9], 4
      %s24 = int_to_ptr.vmem [resolvable:$true] %s23
      %29 = dma.hbm_to_vmem [thread:$0]  %s1, 2048, %s24, [#allocation6], 128, 128, 8
    $region9: #{tpu_custom_call.1} parent=1 // pred_fallthru
      _
    // Predicated region
    $region10: #{tpu_custom_call.1} parent=1 // pred_check
      _
    $region11: #{tpu_custom_call.1} parent=1 // pred_check_branch
      %31 = sbr.rel (0) target = $region13
    $region12: #{tpu_custom_call.1} parent=1 // pred_region
      %32 = dma.done [#allocation8], 16
    $region13: #{tpu_custom_call.1} parent=1 // pred_fallthru
      _
    // Predicated region
    $region14: #{tpu_custom_call.1} parent=1 // pred_check
      _
    $region15: #{tpu_custom_call.1} parent=1 // pred_check_branch
      %34 = sbr.rel (0) target = $region17
    $region16: #{tpu_custom_call.1} parent=1 // pred_region
      %35 = dma.done [#allocation6], 2048
    $region17: #{tpu_custom_call.1} parent=1 // pred_fallthru
      _
    %36 = sfence
    %v37 = vld [vmem:[#allocation9] sm:$0xff]
    %v38 = vld [vmem:[#allocation9 + $0x8] sm:$0xff]
    %v39 = vld [vmem:[#allocation9 + $0x10] sm:$0xff]
    %v40 = vld [vmem:[#allocation9 + $0x18] sm:$0xff]
    %v41 = vld [vmem:[#allocation9 + $0x20] sm:$0xff]
    %v42 = vld [vmem:[#allocation9 + $0x28] sm:$0xff]
    %v43 = vld [vmem:[#allocation9 + $0x30] sm:$0xff]
    %v44 = vld [vmem:[#allocation9 + $0x38] sm:$0xff]
    %v45 = vld [vmem:[#allocation9 + $0x40] sm:$0xff]
    %v46 = vld [vmem:[#allocation9 + $0x48] sm:$0xff]
    %v47 = vld [vmem:[#allocation9 + $0x50] sm:$0xff]
    %v48 = vld [vmem:[#allocation9 + $0x58] sm:$0xff]
    %v49 = vld [vmem:[#allocation9 + $0x60] sm:$0xff]
    %v50 = vld [vmem:[#allocation9 + $0x68] sm:$0xff]
    %v51 = vld [vmem:[#allocation9 + $0x70] sm:$0xff]
    %v52 = vld [vmem:[#allocation9 + $0x78] sm:$0xff]
    %vm53 = vcmask 130048
    %v54 = vsel %vm53, %v37, -inf
    %v55 = vsel %vm53, %v39, -inf
    %v56 = vmax.f32 %v54, %v55
    %v57 = vsel %vm53, %v41, -inf
    %v58 = vmax.f32 %v56, %v57
    %v59 = vsel %vm53, %v43, -inf
    %v60 = vmax.f32 %v58, %v59
    %v61 = vsel %vm53, %v38, -inf
    %v62 = vsel %vm53, %v40, -inf
    %v63 = vmax.f32 %v61, %v62
    %v64 = vsel %vm53, %v42, -inf
    %v65 = vmax.f32 %v63, %v64
    %v66 = vsel %vm53, %v44, -inf
    %v67 = vmax.f32 %v65, %v66
    %v68 = vsel %vm53, %v45, -inf
    %v69 = vsel %vm53, %v47, -inf
    %v70 = vmax.f32 %v68, %v69
    %v71 = vsel %vm53, %v49, -inf
    %v72 = vmax.f32 %v70, %v71
    %v73 = vsel %vm53, %v51, -inf
    %v74 = vmax.f32 %v72, %v73
    %v75 = vsel %vm53, %v46, -inf
    %v76 = vsel %vm53, %v48, -inf
    %v77 = vmax.f32 %v75, %v76
    %v78 = vsel %vm53, %v50, -inf
    %v79 = vmax.f32 %v77, %v78
    %v80 = vsel %vm53, %v52, -inf
    %v81 = vmax.f32 %v79, %v80
    %v82 = vsel %vm53, %v37, 0.0
    %v83 = vsel %vm53, %v39, 0.0
    %v84 = vadd.f32 %v82, %v83
    %v85 = vsel %vm53, %v41, 0.0
    %v86 = vadd.f32 %v84, %v85
    %v87 = vsel %vm53, %v43, 0.0
    %v88 = vadd.f32 %v86, %v87
    %v89 = vsel %vm53, %v38, 0.0
    %v90 = vsel %vm53, %v40, 0.0
    %v91 = vadd.f32 %v89, %v90
    %v92 = vsel %vm53, %v42, 0.0
    %v93 = vadd.f32 %v91, %v92
    %v94 = vsel %vm53, %v44, 0.0
    %v95 = vadd.f32 %v93, %v94
    %v96 = vsel %vm53, %v45, 0.0
    %v97 = vsel %vm53, %v47, 0.0
    %v98 = vadd.f32 %v96, %v97
    %v99 = vsel %vm53, %v49, 0.0
    %v100 = vadd.f32 %v98, %v99
    %v101 = vsel %vm53, %v51, 0.0
    %v102 = vadd.f32 %v100, %v101
    %v103 = vsel %vm53, %v46, 0.0
    %v104 = vsel %vm53, %v48, 0.0
    %v105 = vadd.f32 %v103, %v104
    %v106 = vsel %vm53, %v50, 0.0
    %v107 = vadd.f32 %v105, %v106
    %v108 = vsel %vm53, %v52, 0.0
    %v109 = vadd.f32 %v107, %v108
    %p110 = scmp.eq.s32.totalorder 0, 0
    // Predicated region
    $region18: #{tpu_custom_call.1} parent=1 // pred_check
      %p111 = pneg %p110
    $region19: #{tpu_custom_call.1} parent=1 // pred_check_branch
      %113 = sbr.rel (%p111) target = $region21
    $region20: #{tpu_custom_call.1} parent=1 // pred_region
      %114 = vst.msk [vmem:[#allocation2] sm:$0xff] %vm53, %v60
      %115 = vst.msk [vmem:[#allocation2 + $0x8] sm:$0xff] %vm53, %v67
      %116 = vst.msk [vmem:[#allocation2 + $0x10] sm:$0xff] %vm53, %v74
      %117 = vst.msk [vmem:[#allocation2 + $0x18] sm:$0xff] %vm53, %v81
      %118 = vst.msk [vmem:[#allocation3] sm:$0xff] %vm53, %v88
      %119 = vst.msk [vmem:[#allocation3 + $0x8] sm:$0xff] %vm53, %v95
      %120 = vst.msk [vmem:[#allocation3 + $0x10] sm:$0xff] %vm53, %v102
      %121 = vst.msk [vmem:[#allocation3 + $0x18] sm:$0xff] %vm53, %v109
    $region21: #{tpu_custom_call.1} parent=1 // pred_fallthru
      _
    %p122 = scmp.gt.s32.totalorder 0, 0
    // Predicated region
    $region22: #{tpu_custom_call.1} parent=1 // pred_check
      %p123 = pneg %p122
    $region23: #{tpu_custom_call.1} parent=1 // pred_check_branch
      %125 = sbr.rel (%p123) target = $region25
    $region24: #{tpu_custom_call.1} parent=1 // pred_region
      %v126 = vld [vmem:[#allocation2] sm:$0xff]
      %v127 = vld [vmem:[#allocation2 + $0x8] sm:$0xff]
      %v128 = vld [vmem:[#allocation2 + $0x10] sm:$0xff]
      %v129 = vld [vmem:[#allocation2 + $0x18] sm:$0xff]
      %v130 = vmax.f32 %v126, %v60
      %v131 = vmax.f32 %v127, %v67
      %v132 = vmax.f32 %v128, %v74
      %v133 = vmax.f32 %v129, %v81
      %134 = vst.msk [vmem:[#allocation2] sm:$0xff] %vm53, %v130
      %135 = vst.msk [vmem:[#allocation2 + $0x8] sm:$0xff] %vm53, %v131
      %136 = vst.msk [vmem:[#allocation2 + $0x10] sm:$0xff] %vm53, %v132
      %137 = vst.msk [vmem:[#allocation2 + $0x18] sm:$0xff] %vm53, %v133
      %v138 = vld [vmem:[#allocation3] sm:$0xff]
      %v139 = vld [vmem:[#allocation3 + $0x8] sm:$0xff]
      %v140 = vld [vmem:[#allocation3 + $0x10] sm:$0xff]
      %v141 = vld [vmem:[#allocation3 + $0x18] sm:$0xff]
      %v142 = vadd.f32 %v138, %v88
      %v143 = vadd.f32 %v139, %v95
      %v144 = vadd.f32 %v140, %v102
      %v145 = vadd.f32 %v141, %v109
      %146 = vst.msk [vmem:[#allocation3] sm:$0xff] %vm53, %v142
      %147 = vst.msk [vmem:[#allocation3 + $0x8] sm:$0xff] %vm53, %v143
      %148 = vst.msk [vmem:[#allocation3 + $0x10] sm:$0xff] %vm53, %v144
      %149 = vst.msk [vmem:[#allocation3 + $0x18] sm:$0xff] %vm53, %v145
    $region25: #{tpu_custom_call.1} parent=1 // pred_fallthru
      _
    // Predicated region
    $region26: #{tpu_custom_call.1} parent=1 // pred_check
      %p150 = pneg %p110
    $region27: #{tpu_custom_call.1} parent=1 // pred_check_branch
      %152 = sbr.rel (%p150) target = $region29
    $region28: #{tpu_custom_call.1} parent=1 // pred_region
      %vm153 = vcmask 179200
      %154 = vst.msk [vmem:[#allocation4] sm:$0xff] %vm153, 0.0
      %155 = vst.msk [vmem:[#allocation4 + $0x8] sm:$0xff] %vm153, 0.0
      %vm156 = vcmask 177152
      %157 = vst.msk [vmem:[#allocation4 + $0x10] sm:$0x3f] %vm156, 0.0
      %158 = vst.msk [vmem:[#allocation4 + $0x18] sm:$0xff] %vm153, 0.0
      %159 = vst.msk [vmem:[#allocation4 + $0x20] sm:$0xff] %vm153, 0.0
      %160 = vst.msk [vmem:[#allocation4 + $0x28] sm:$0x3f] %vm156, 0.0
      %161 = vst.msk [vmem:[#allocation4 + $0x30] sm:$0xff] %vm153, 0.0
      %162 = vst.msk [vmem:[#allocation4 + $0x38] sm:$0xff] %vm153, 0.0
      %163 = vst.msk [vmem:[#allocation4 + $0x40] sm:$0x3f] %vm156, 0.0
      %164 = vst.msk [vmem:[#allocation4 + $0x48] sm:$0xff] %vm153, 0.0
      %165 = vst.msk [vmem:[#allocation4 + $0x50] sm:$0xff] %vm153, 0.0
      %166 = vst.msk [vmem:[#allocation4 + $0x58] sm:$0x3f] %vm156, 0.0
      %v167 = vld [vmem:[#allocation2] sm:$0xff]
      %v168 = vld [vmem:[#allocation2 + $0x8] sm:$0xff]
      %v169 = vld [vmem:[#allocation2 + $0x10] sm:$0xff]
      %v170 = vld [vmem:[#allocation2 + $0x18] sm:$0xff]
      %175 = vrot.lane.b32.xlu0 %v167, 3
      %v176 = vpop.permute.xlu0 %175
      %177 = vrot.lane.b32.xlu0 %v168, 3
      %v178 = vpop.permute.xlu0 %177
      %179 = vrot.lane.b32.xlu0 %v169, 3
      %v180 = vpop.permute.xlu0 %179
      %181 = vrot.lane.b32.xlu0 %v170, 3
      %v182 = vpop.permute.xlu0 %181
      %vm187 = vcmask 154648
      %188 = vst.msk [vmem:[#allocation4 + $0x3] sm:$0xff] %vm187, %v176
      %189 = vst.msk [vmem:[#allocation4 + $0xb] sm:$0xff] %vm187, %v178
      %190 = vst.msk [vmem:[#allocation4 + $0x1b] sm:$0xff] %vm187, %v180
      %191 = vst.msk [vmem:[#allocation4 + $0x23] sm:$0xff] %vm187, %v182
      %v192 = vld [vmem:[#allocation3] sm:$0xff]
      %v193 = vld [vmem:[#allocation3 + $0x8] sm:$0xff]
      %v194 = vld [vmem:[#allocation3 + $0x10] sm:$0xff]
      %v195 = vld [vmem:[#allocation3 + $0x18] sm:$0xff]
      %v196 = vmul.f32 %v192, 0.25
      %v197 = vmul.f32 %v193, 0.25
      %v198 = vmul.f32 %v194, 0.25
      %v199 = vmul.f32 %v195, 0.25
      %204 = vrot.lane.b32.xlu0 %v196, 3
      %v205 = vpop.permute.xlu0 %204
      %206 = vrot.lane.b32.xlu0 %v197, 3
      %v207 = vpop.permute.xlu0 %206
      %208 = vrot.lane.b32.xlu0 %v198, 3
      %v209 = vpop.permute.xlu0 %208
      %210 = vrot.lane.b32.xlu0 %v199, 3
      %v211 = vpop.permute.xlu0 %210
      %s216 = scalar_lea.vmem [#allocation4], 48
      %217 = vst.msk [vmem:[%s216 + $0x3] sm:$0xff] %vm187, %v205
      %218 = vst.msk [vmem:[%s216 + $0xb] sm:$0xff] %vm187, %v207
      %219 = vst.msk [vmem:[%s216 + $0x1b] sm:$0xff] %vm187, %v209
      %220 = vst.msk [vmem:[%s216 + $0x23] sm:$0xff] %vm187, %v211
      %v221 = vld [vmem:[#allocation4] sm:$0xff]
      %v222 = vld [vmem:[#allocation4 + $0x8] sm:$0xff]
      %v223 = vld [vmem:[#allocation4 + $0x10] sm:$0x3f]
      %v224 = vld [vmem:[#allocation4 + $0x18] sm:$0xff]
      %v225 = vld [vmem:[#allocation4 + $0x20] sm:$0xff]
      %v226 = vld [vmem:[#allocation4 + $0x28] sm:$0x3f]
      %s227 = sld [smem:[#allocation5]]
      %v228 = vstv %s227
      %v229 = vmul.f32 %v228, %v221
      %v230 = vmul.f32 %v228, %v222
      %v231 = vmul.f32 %v228, %v224
      %v232 = vmul.f32 %v228, %v225
      %v233 = vadd.f32 %v229, 0.0
      %v234 = vadd.f32 %v230, 0.0
      %v235 = vadd.f32 %v231, 0.0
      %v236 = vadd.f32 %v232, 0.0
      %s237 = sld [smem:[#allocation5 + $0x7]]
      %v238 = vstv %s237
      %v239 = vmul.f32 %v238, %v221
      %v240 = vmul.f32 %v238, %v222
      %v241 = vmul.f32 %v238, %v223
      %v242 = vmul.f32 %v238, %v224
      %v243 = vmul.f32 %v238, %v225
      %v244 = vmul.f32 %v238, %v226
      %vm251 = vcmask 1046528
      %v252 = vrot.slane %v239, 1
      %v253 = vrot.slane %v240, 1
      %v254 = vsel %vm251, %v252, %v253
      %v255 = vrot.slane %v241, 1
      %v256 = vsel %vm251, %v253, %v255
      %v257 = vrot.slane %v242, 1
      %v258 = vrot.slane %v243, 1
      %v259 = vsel %vm251, %v257, %v258
      %v260 = vrot.slane %v244, 1
      %v261 = vsel %vm251, %v258, %v260
      %v266 = vadd.f32 %v233, %v254
      %v267 = vadd.f32 %v234, %v256
      %v268 = vadd.f32 %v235, %v259
      %v269 = vadd.f32 %v236, %v261
      %s270 = sld [smem:[#allocation5 + $0xe]]
      %v271 = vstv %s270
      %v272 = vmul.f32 %v271, %v221
      %v273 = vmul.f32 %v271, %v222
      %v274 = vmul.f32 %v271, %v223
      %v275 = vmul.f32 %v271, %v224
      %v276 = vmul.f32 %v271, %v225
      %v277 = vmul.f32 %v271, %v226
      %vm284 = vcmask 1045504
      %v285 = vrot.slane %v272, 2
      %v286 = vrot.slane %v273, 2
      %v287 = vsel %vm284, %v285, %v286
      %v288 = vrot.slane %v274, 2
      %v289 = vsel %vm284, %v286, %v288
      %v290 = vrot.slane %v275, 2
      %v291 = vrot.slane %v276, 2
      %v292 = vsel %vm284, %v290, %v291
      %v293 = vrot.slane %v277, 2
      %v294 = vsel %vm284, %v291, %v293
      %v299 = vadd.f32 %v266, %v287
      %v300 = vadd.f32 %v267, %v289
      %v301 = vadd.f32 %v268, %v292
      %v302 = vadd.f32 %v269, %v294
      %s303 = sld [smem:[#allocation5 + $0x15]]
      %v304 = vstv %s303
      %v305 = vmul.f32 %v304, %v221
      %v306 = vmul.f32 %v304, %v222
      %v307 = vmul.f32 %v304, %v223
      %v308 = vmul.f32 %v304, %v224
      %v309 = vmul.f32 %v304, %v225
      %v310 = vmul.f32 %v304, %v226
      %vm317 = vcmask 1044480
      %v318 = vrot.slane %v305, 3
      %v319 = vrot.slane %v306, 3
      %v320 = vsel %vm317, %v318, %v319
      %v321 = vrot.slane %v307, 3
      %v322 = vsel %vm317, %v319, %v321
      %v323 = vrot.slane %v308, 3
      %v324 = vrot.slane %v309, 3
      %v325 = vsel %vm317, %v323, %v324
      %v326 = vrot.slane %v310, 3
      %v327 = vsel %vm317, %v324, %v326
      %v332 = vadd.f32 %v299, %v320
      %v333 = vadd.f32 %v300, %v322
      %v334 = vadd.f32 %v301, %v325
      %v335 = vadd.f32 %v302, %v327
      %s336 = sld [smem:[#allocation5 + $0x1c]]
      %v337 = vstv %s336
      %v338 = vmul.f32 %v337, %v221
      %v339 = vmul.f32 %v337, %v222
      %v340 = vmul.f32 %v337, %v223
      %v341 = vmul.f32 %v337, %v224
      %v342 = vmul.f32 %v337, %v225
      %v343 = vmul.f32 %v337, %v226
      %vm350 = vcmask 1043456
      %v351 = vrot.slane %v338, 4
      %v352 = vrot.slane %v339, 4
      %v353 = vsel %vm350, %v351, %v352
      %v354 = vrot.slane %v340, 4
      %v355 = vsel %vm350, %v352, %v354
      %v356 = vrot.slane %v341, 4
      %v357 = vrot.slane %v342, 4
      %v358 = vsel %vm350, %v356, %v357
      %v359 = vrot.slane %v343, 4
      %v360 = vsel %vm350, %v357, %v359
      %v365 = vadd.f32 %v332, %v353
      %v366 = vadd.f32 %v333, %v355
      %v367 = vadd.f32 %v334, %v358
      %v368 = vadd.f32 %v335, %v360
      %s369 = sld [smem:[#allocation5 + $0x23]]
      %v370 = vstv %s369
      %v371 = vmul.f32 %v370, %v221
      %v372 = vmul.f32 %v370, %v222
      %v373 = vmul.f32 %v370, %v223
      %v374 = vmul.f32 %v370, %v224
      %v375 = vmul.f32 %v370, %v225
      %v376 = vmul.f32 %v370, %v226
      %vm383 = vcmask 1042432
      %v384 = vrot.slane %v371, 5
      %v385 = vrot.slane %v372, 5
      %v386 = vsel %vm383, %v384, %v385
      %v387 = vrot.slane %v373, 5
      %v388 = vsel %vm383, %v385, %v387
      %v389 = vrot.slane %v374, 5
      %v390 = vrot.slane %v375, 5
      %v391 = vsel %vm383, %v389, %v390
      %v392 = vrot.slane %v376, 5
      %v393 = vsel %vm383, %v390, %v392
      %v398 = vadd.f32 %v365, %v386
      %v399 = vadd.f32 %v366, %v388
      %v400 = vadd.f32 %v367, %v391
      %v401 = vadd.f32 %v368, %v393
      %s402 = sld [smem:[#allocation5 + $0x2a]]
      %v403 = vstv %s402
      %v404 = vmul.f32 %v403, %v221
      %v405 = vmul.f32 %v403, %v222
      %v406 = vmul.f32 %v403, %v223
      %v407 = vmul.f32 %v403, %v224
      %v408 = vmul.f32 %v403, %v225
      %v409 = vmul.f32 %v403, %v226
      %vm416 = vcmask 1041408
      %v417 = vrot.slane %v404, 6
      %v418 = vrot.slane %v405, 6
      %v419 = vsel %vm416, %v417, %v418
      %v420 = vrot.slane %v406, 6
      %v421 = vsel %vm416, %v418, %v420
      %v422 = vrot.slane %v407, 6
      %v423 = vrot.slane %v408, 6
      %v424 = vsel %vm416, %v422, %v423
      %v425 = vrot.slane %v409, 6
      %v426 = vsel %vm416, %v423, %v425
      %v431 = vadd.f32 %v398, %v419
      %v432 = vadd.f32 %v399, %v421
      %v433 = vadd.f32 %v400, %v424
      %v434 = vadd.f32 %v401, %v426
      %s435 = sld [smem:[#allocation5 + $0x1]]
      %v436 = vstv %s435
      %v437 = vmul.f32 %v436, %v221
      %v438 = vmul.f32 %v436, %v222
      %v439 = vmul.f32 %v436, %v224
      %v440 = vmul.f32 %v436, %v225
      %445 = vrot.lane.b32.xlu0 %v437, 127
      %v446 = vpop.permute.xlu0 %445
      %447 = vrot.lane.b32.xlu0 %v438, 127
      %v448 = vpop.permute.xlu0 %447
      %449 = vrot.lane.b32.xlu0 %v439, 127
      %v450 = vpop.permute.xlu0 %449
      %451 = vrot.lane.b32.xlu0 %v440, 127
      %v452 = vpop.permute.xlu0 %451
      %v457 = vadd.f32 %v431, %v446
      %v458 = vadd.f32 %v432, %v448
      %v459 = vadd.f32 %v433, %v450
      %v460 = vadd.f32 %v434, %v452
      %s461 = sld [smem:[#allocation5 + $0x8]]
      %v462 = vstv %s461
      %v463 = vmul.f32 %v462, %v221
      %v464 = vmul.f32 %v462, %v222
      %v465 = vmul.f32 %v462, %v223
      %v466 = vmul.f32 %v462, %v224
      %v467 = vmul.f32 %v462, %v225
      %v468 = vmul.f32 %v462, %v226
      %v475 = vrot.slane %v463, 1
      %v476 = vrot.slane %v464, 1
      %v477 = vsel %vm251, %v475, %v476
      %v478 = vrot.slane %v465, 1
      %v479 = vsel %vm251, %v476, %v478
      %v480 = vrot.slane %v466, 1
      %v481 = vrot.slane %v467, 1
      %v482 = vsel %vm251, %v480, %v481
      %v483 = vrot.slane %v468, 1
      %v484 = vsel %vm251, %v481, %v483
      %485 = vrot.lane.b32.xlu0 %v477, 127
      %v486 = vpop.permute.xlu0 %485
      %487 = vrot.lane.b32.xlu0 %v479, 127
      %v488 = vpop.permute.xlu0 %487
      %489 = vrot.lane.b32.xlu0 %v482, 127
      %v490 = vpop.permute.xlu0 %489
      %491 = vrot.lane.b32.xlu0 %v484, 127
      %v492 = vpop.permute.xlu0 %491
      %v497 = vadd.f32 %v457, %v486
      %v498 = vadd.f32 %v458, %v488
      %v499 = vadd.f32 %v459, %v490
      %v500 = vadd.f32 %v460, %v492
      %s501 = sld [smem:[#allocation5 + $0xf]]
      %v502 = vstv %s501
      %v503 = vmul.f32 %v502, %v221
      %v504 = vmul.f32 %v502, %v222
      %v505 = vmul.f32 %v502, %v223
      %v506 = vmul.f32 %v502, %v224
      %v507 = vmul.f32 %v502, %v225
      %v508 = vmul.f32 %v502, %v226
      %v515 = vrot.slane %v503, 2
      %v516 = vrot.slane %v504, 2
      %v517 = vsel %vm284, %v515, %v516
      %v518 = vrot.slane %v505, 2
      %v519 = vsel %vm284, %v516, %v518
      %v520 = vrot.slane %v506, 2
      %v521 = vrot.slane %v507, 2
      %v522 = vsel %vm284, %v520, %v521
      %v523 = vrot.slane %v508, 2
      %v524 = vsel %vm284, %v521, %v523
      %525 = vrot.lane.b32.xlu0 %v517, 127
      %v526 = vpop.permute.xlu0 %525
      %527 = vrot.lane.b32.xlu0 %v519, 127
      %v528 = vpop.permute.xlu0 %527
      %529 = vrot.lane.b32.xlu0 %v522, 127
      %v530 = vpop.permute.xlu0 %529
      %531 = vrot.lane.b32.xlu0 %v524, 127
      %v532 = vpop.permute.xlu0 %531
      %v537 = vadd.f32 %v497, %v526
      %v538 = vadd.f32 %v498, %v528
      %v539 = vadd.f32 %v499, %v530
      %v540 = vadd.f32 %v500, %v532
      %s541 = sld [smem:[#allocation5 + $0x16]]
      %v542 = vstv %s541
      %v543 = vmul.f32 %v542, %v221
      %v544 = vmul.f32 %v542, %v222
      %v545 = vmul.f32 %v542, %v223
      %v546 = vmul.f32 %v542, %v224
      %v547 = vmul.f32 %v542, %v225
      %v548 = vmul.f32 %v542, %v226
      %v555 = vrot.slane %v543, 3
      %v556 = vrot.slane %v544, 3
      %v557 = vsel %vm317, %v555, %v556
      %v558 = vrot.slane %v545, 3
      %v559 = vsel %vm317, %v556, %v558
      %v560 = vrot.slane %v546, 3
      %v561 = vrot.slane %v547, 3
      %v562 = vsel %vm317, %v560, %v561
      %v563 = vrot.slane %v548, 3
      %v564 = vsel %vm317, %v561, %v563
      %565 = vrot.lane.b32.xlu0 %v557, 127
      %v566 = vpop.permute.xlu0 %565
      %567 = vrot.lane.b32.xlu0 %v559, 127
      %v568 = vpop.permute.xlu0 %567
      %569 = vrot.lane.b32.xlu0 %v562, 127
      %v570 = vpop.permute.xlu0 %569
      %571 = vrot.lane.b32.xlu0 %v564, 127
      %v572 = vpop.permute.xlu0 %571
      %v577 = vadd.f32 %v537, %v566
      %v578 = vadd.f32 %v538, %v568
      %v579 = vadd.f32 %v539, %v570
      %v580 = vadd.f32 %v540, %v572
      %s581 = sld [smem:[#allocation5 + $0x1d]]
      %v582 = vstv %s581
      %v583 = vmul.f32 %v582, %v221
      %v584 = vmul.f32 %v582, %v222
      %v585 = vmul.f32 %v582, %v223
      %v586 = vmul.f32 %v582, %v224
      %v587 = vmul.f32 %v582, %v225
      %v588 = vmul.f32 %v582, %v226
      %v595 = vrot.slane %v583, 4
      %v596 = vrot.slane %v584, 4
      %v597 = vsel %vm350, %v595, %v596
      %v598 = vrot.slane %v585, 4
      %v599 = vsel %vm350, %v596, %v598
      %v600 = vrot.slane %v586, 4
      %v601 = vrot.slane %v587, 4
      %v602 = vsel %vm350, %v600, %v601
      %v603 = vrot.slane %v588, 4
      %v604 = vsel %vm350, %v601, %v603
      %605 = vrot.lane.b32.xlu0 %v597, 127
      %v606 = vpop.permute.xlu0 %605
      %607 = vrot.lane.b32.xlu0 %v599, 127
      %v608 = vpop.permute.xlu0 %607
      %609 = vrot.lane.b32.xlu0 %v602, 127
      %v610 = vpop.permute.xlu0 %609
      %611 = vrot.lane.b32.xlu0 %v604, 127
      %v612 = vpop.permute.xlu0 %611
      %v617 = vadd.f32 %v577, %v606
      %v618 = vadd.f32 %v578, %v608
      %v619 = vadd.f32 %v579, %v610
      %v620 = vadd.f32 %v580, %v612
      %s621 = sld [smem:[#allocation5 + $0x24]]
      %v622 = vstv %s621
      %v623 = vmul.f32 %v622, %v221
      %v624 = vmul.f32 %v622, %v222
      %v625 = vmul.f32 %v622, %v223
      %v626 = vmul.f32 %v622, %v224
      %v627 = vmul.f32 %v622, %v225
      %v628 = vmul.f32 %v622, %v226
      %v635 = vrot.slane %v623, 5
      %v636 = vrot.slane %v624, 5
      %v637 = vsel %vm383, %v635, %v636
      %v638 = vrot.slane %v625, 5
      %v639 = vsel %vm383, %v636, %v638
      %v640 = vrot.slane %v626, 5
      %v641 = vrot.slane %v627, 5
      %v642 = vsel %vm383, %v640, %v641
      %v643 = vrot.slane %v628, 5
      %v644 = vsel %vm383, %v641, %v643
      %645 = vrot.lane.b32.xlu0 %v637, 127
      %v646 = vpop.permute.xlu0 %645
      %647 = vrot.lane.b32.xlu0 %v639, 127
      %v648 = vpop.permute.xlu0 %647
      %649 = vrot.lane.b32.xlu0 %v642, 127
      %v650 = vpop.permute.xlu0 %649
      %651 = vrot.lane.b32.xlu0 %v644, 127
      %v652 = vpop.permute.xlu0 %651
      %v657 = vadd.f32 %v617, %v646
      %v658 = vadd.f32 %v618, %v648
      %v659 = vadd.f32 %v619, %v650
      %v660 = vadd.f32 %v620, %v652
      %s661 = sld [smem:[#allocation5 + $0x2b]]
      %v662 = vstv %s661
      %v663 = vmul.f32 %v662, %v221
      %v664 = vmul.f32 %v662, %v222
      %v665 = vmul.f32 %v662, %v223
      %v666 = vmul.f32 %v662, %v224
      %v667 = vmul.f32 %v662, %v225
      %v668 = vmul.f32 %v662, %v226
      %v675 = vrot.slane %v663, 6
      %v676 = vrot.slane %v664, 6
      %v677 = vsel %vm416, %v675, %v676
      %v678 = vrot.slane %v665, 6
      %v679 = vsel %vm416, %v676, %v678
      %v680 = vrot.slane %v666, 6
      %v681 = vrot.slane %v667, 6
      %v682 = vsel %vm416, %v680, %v681
      %v683 = vrot.slane %v668, 6
      %v684 = vsel %vm416, %v681, %v683
      %685 = vrot.lane.b32.xlu0 %v677, 127
      %v686 = vpop.permute.xlu0 %685
      %687 = vrot.lane.b32.xlu0 %v679, 127
      %v688 = vpop.permute.xlu0 %687
      %689 = vrot.lane.b32.xlu0 %v682, 127
      %v690 = vpop.permute.xlu0 %689
      %691 = vrot.lane.b32.xlu0 %v684, 127
      %v692 = vpop.permute.xlu0 %691
      %v697 = vadd.f32 %v657, %v686
      %v698 = vadd.f32 %v658, %v688
      %v699 = vadd.f32 %v659, %v690
      %v700 = vadd.f32 %v660, %v692
      %s701 = sld [smem:[#allocation5 + $0x2]]
      %v702 = vstv %s701
      %v703 = vmul.f32 %v702, %v221
      %v704 = vmul.f32 %v702, %v222
      %v705 = vmul.f32 %v702, %v224
      %v706 = vmul.f32 %v702, %v225
      %711 = vrot.lane.b32.xlu0 %v703, 126
      %v712 = vpop.permute.xlu0 %711
      %713 = vrot.lane.b32.xlu0 %v704, 126
      %v714 = vpop.permute.xlu0 %713
      %715 = vrot.lane.b32.xlu0 %v705, 126
      %v716 = vpop.permute.xlu0 %715
      %717 = vrot.lane.b32.xlu0 %v706, 126
      %v718 = vpop.permute.xlu0 %717
      %v723 = vadd.f32 %v697, %v712
      %v724 = vadd.f32 %v698, %v714
      %v725 = vadd.f32 %v699, %v716
      %v726 = vadd.f32 %v700, %v718
      %s727 = sld [smem:[#allocation5 + $0x9]]
      %v728 = vstv %s727
      %v729 = vmul.f32 %v728, %v221
      %v730 = vmul.f32 %v728, %v222
      %v731 = vmul.f32 %v728, %v223
      %v732 = vmul.f32 %v728, %v224
      %v733 = vmul.f32 %v728, %v225
      %v734 = vmul.f32 %v728, %v226
      %v741 = vrot.slane %v729, 1
      %v742 = vrot.slane %v730, 1
      %v743 = vsel %vm251, %v741, %v742
      %v744 = vrot.slane %v731, 1
      %v745 = vsel %vm251, %v742, %v744
      %v746 = vrot.slane %v732, 1
      %v747 = vrot.slane %v733, 1
      %v748 = vsel %vm251, %v746, %v747
      %v749 = vrot.slane %v734, 1
      %v750 = vsel %vm251, %v747, %v749
      %751 = vrot.lane.b32.xlu0 %v743, 126
      %v752 = vpop.permute.xlu0 %751
      %753 = vrot.lane.b32.xlu0 %v745, 126
      %v754 = vpop.permute.xlu0 %753
      %755 = vrot.lane.b32.xlu0 %v748, 126
      %v756 = vpop.permute.xlu0 %755
      %757 = vrot.lane.b32.xlu0 %v750, 126
      %v758 = vpop.permute.xlu0 %757
      %v763 = vadd.f32 %v723, %v752
      %v764 = vadd.f32 %v724, %v754
      %v765 = vadd.f32 %v725, %v756
      %v766 = vadd.f32 %v726, %v758
      %s767 = sld [smem:[#allocation5 + $0x10]]
      %v768 = vstv %s767
      %v769 = vmul.f32 %v768, %v221
      %v770 = vmul.f32 %v768, %v222
      %v771 = vmul.f32 %v768, %v223
      %v772 = vmul.f32 %v768, %v224
      %v773 = vmul.f32 %v768, %v225
      %v774 = vmul.f32 %v768, %v226
      %v781 = vrot.slane %v769, 2
      %v782 = vrot.slane %v770, 2
      %v783 = vsel %vm284, %v781, %v782
      %v784 = vrot.slane %v771, 2
      %v785 = vsel %vm284, %v782, %v784
      %v786 = vrot.slane %v772, 2
      %v787 = vrot.slane %v773, 2
      %v788 = vsel %vm284, %v786, %v787
      %v789 = vrot.slane %v774, 2
      %v790 = vsel %vm284, %v787, %v789
      %791 = vrot.lane.b32.xlu0 %v783, 126
      %v792 = vpop.permute.xlu0 %791
      %793 = vrot.lane.b32.xlu0 %v785, 126
      %v794 = vpop.permute.xlu0 %793
      %795 = vrot.lane.b32.xlu0 %v788, 126
      %v796 = vpop.permute.xlu0 %795
      %797 = vrot.lane.b32.xlu0 %v790, 126
      %v798 = vpop.permute.xlu0 %797
      %v803 = vadd.f32 %v763, %v792
      %v804 = vadd.f32 %v764, %v794
      %v805 = vadd.f32 %v765, %v796
      %v806 = vadd.f32 %v766, %v798
      %s807 = sld [smem:[#allocation5 + $0x17]]
      %v808 = vstv %s807
      %v809 = vmul.f32 %v808, %v221
      %v810 = vmul.f32 %v808, %v222
      %v811 = vmul.f32 %v808, %v223
      %v812 = vmul.f32 %v808, %v224
      %v813 = vmul.f32 %v808, %v225
      %v814 = vmul.f32 %v808, %v226
      %v821 = vrot.slane %v809, 3
      %v822 = vrot.slane %v810, 3
      %v823 = vsel %vm317, %v821, %v822
      %v824 = vrot.slane %v811, 3
      %v825 = vsel %vm317, %v822, %v824
      %v826 = vrot.slane %v812, 3
      %v827 = vrot.slane %v813, 3
      %v828 = vsel %vm317, %v826, %v827
      %v829 = vrot.slane %v814, 3
      %v830 = vsel %vm317, %v827, %v829
      %831 = vrot.lane.b32.xlu0 %v823, 126
      %v832 = vpop.permute.xlu0 %831
      %833 = vrot.lane.b32.xlu0 %v825, 126
      %v834 = vpop.permute.xlu0 %833
      %835 = vrot.lane.b32.xlu0 %v828, 126
      %v836 = vpop.permute.xlu0 %835
      %837 = vrot.lane.b32.xlu0 %v830, 126
      %v838 = vpop.permute.xlu0 %837
      %v843 = vadd.f32 %v803, %v832
      %v844 = vadd.f32 %v804, %v834
      %v845 = vadd.f32 %v805, %v836
      %v846 = vadd.f32 %v806, %v838
      %s847 = sld [smem:[#allocation5 + $0x1e]]
      %v848 = vstv %s847
      %v849 = vmul.f32 %v848, %v221
      %v850 = vmul.f32 %v848, %v222
      %v851 = vmul.f32 %v848, %v223
      %v852 = vmul.f32 %v848, %v224
      %v853 = vmul.f32 %v848, %v225
      %v854 = vmul.f32 %v848, %v226
      %v861 = vrot.slane %v849, 4
      %v862 = vrot.slane %v850, 4
      %v863 = vsel %vm350, %v861, %v862
      %v864 = vrot.slane %v851, 4
      %v865 = vsel %vm350, %v862, %v864
      %v866 = vrot.slane %v852, 4
      %v867 = vrot.slane %v853, 4
      %v868 = vsel %vm350, %v866, %v867
      %v869 = vrot.slane %v854, 4
      %v870 = vsel %vm350, %v867, %v869
      %871 = vrot.lane.b32.xlu0 %v863, 126
      %v872 = vpop.permute.xlu0 %871
      %873 = vrot.lane.b32.xlu0 %v865, 126
      %v874 = vpop.permute.xlu0 %873
      %875 = vrot.lane.b32.xlu0 %v868, 126
      %v876 = vpop.permute.xlu0 %875
      %877 = vrot.lane.b32.xlu0 %v870, 126
      %v878 = vpop.permute.xlu0 %877
      %v883 = vadd.f32 %v843, %v872
      %v884 = vadd.f32 %v844, %v874
      %v885 = vadd.f32 %v845, %v876
      %v886 = vadd.f32 %v846, %v878
      %s887 = sld [smem:[#allocation5 + $0x25]]
      %v888 = vstv %s887
      %v889 = vmul.f32 %v888, %v221
      %v890 = vmul.f32 %v888, %v222
      %v891 = vmul.f32 %v888, %v223
      %v892 = vmul.f32 %v888, %v224
      %v893 = vmul.f32 %v888, %v225
      %v894 = vmul.f32 %v888, %v226
      %v901 = vrot.slane %v889, 5
      %v902 = vrot.slane %v890, 5
      %v903 = vsel %vm383, %v901, %v902
      %v904 = vrot.slane %v891, 5
      %v905 = vsel %vm383, %v902, %v904
      %v906 = vrot.slane %v892, 5
      %v907 = vrot.slane %v893, 5
      %v908 = vsel %vm383, %v906, %v907
      %v909 = vrot.slane %v894, 5
      %v910 = vsel %vm383, %v907, %v909
      %911 = vrot.lane.b32.xlu0 %v903, 126
      %v912 = vpop.permute.xlu0 %911
      %913 = vrot.lane.b32.xlu0 %v905, 126
      %v914 = vpop.permute.xlu0 %913
      %915 = vrot.lane.b32.xlu0 %v908, 126
      %v916 = vpop.permute.xlu0 %915
      %917 = vrot.lane.b32.xlu0 %v910, 126
      %v918 = vpop.permute.xlu0 %917
      %v923 = vadd.f32 %v883, %v912
      %v924 = vadd.f32 %v884, %v914
      %v925 = vadd.f32 %v885, %v916
      %v926 = vadd.f32 %v886, %v918
      %s927 = sld [smem:[#allocation5 + $0x2c]]
      %v928 = vstv %s927
      %v929 = vmul.f32 %v928, %v221
      %v930 = vmul.f32 %v928, %v222
      %v931 = vmul.f32 %v928, %v223
      %v932 = vmul.f32 %v928, %v224
      %v933 = vmul.f32 %v928, %v225
      %v934 = vmul.f32 %v928, %v226
      %v941 = vrot.slane %v929, 6
      %v942 = vrot.slane %v930, 6
      %v943 = vsel %vm416, %v941, %v942
      %v944 = vrot.slane %v931, 6
      %v945 = vsel %vm416, %v942, %v944
      %v946 = vrot.slane %v932, 6
      %v947 = vrot.slane %v933, 6
      %v948 = vsel %vm416, %v946, %v947
      %v949 = vrot.slane %v934, 6
      %v950 = vsel %vm416, %v947, %v949
      %951 = vrot.lane.b32.xlu0 %v943, 126
      %v952 = vpop.permute.xlu0 %951
      %953 = vrot.lane.b32.xlu0 %v945, 126
      %v954 = vpop.permute.xlu0 %953
      %955 = vrot.lane.b32.xlu0 %v948, 126
      %v956 = vpop.permute.xlu0 %955
      %957 = vrot.lane.b32.xlu0 %v950, 126
      %v958 = vpop.permute.xlu0 %957
      %v963 = vadd.f32 %v923, %v952
      %v964 = vadd.f32 %v924, %v954
      %v965 = vadd.f32 %v925, %v956
      %v966 = vadd.f32 %v926, %v958
      %s967 = sld [smem:[#allocation5 + $0x3]]
      %v968 = vstv %s967
      %v969 = vmul.f32 %v968, %v221
      %v970 = vmul.f32 %v968, %v222
      %v971 = vmul.f32 %v968, %v224
      %v972 = vmul.f32 %v968, %v225
      %977 = vrot.lane.b32.xlu0 %v969, 125
      %v978 = vpop.permute.xlu0 %977
      %979 = vrot.lane.b32.xlu0 %v970, 125
      %v980 = vpop.permute.xlu0 %979
      %981 = vrot.lane.b32.xlu0 %v971, 125
      %v982 = vpop.permute.xlu0 %981
      %983 = vrot.lane.b32.xlu0 %v972, 125
      %v984 = vpop.permute.xlu0 %983
      %v989 = vadd.f32 %v963, %v978
      %v990 = vadd.f32 %v964, %v980
      %v991 = vadd.f32 %v965, %v982
      %v992 = vadd.f32 %v966, %v984
      %s993 = sld [smem:[#allocation5 + $0xa]]
      %v994 = vstv %s993
      %v995 = vmul.f32 %v994, %v221
      %v996 = vmul.f32 %v994, %v222
      %v997 = vmul.f32 %v994, %v223
      %v998 = vmul.f32 %v994, %v224
      %v999 = vmul.f32 %v994, %v225
      %v1000 = vmul.f32 %v994, %v226
      %v1007 = vrot.slane %v995, 1
      %v1008 = vrot.slane %v996, 1
      %v1009 = vsel %vm251, %v1007, %v1008
      %v1010 = vrot.slane %v997, 1
      %v1011 = vsel %vm251, %v1008, %v1010
      %v1012 = vrot.slane %v998, 1
      %v1013 = vrot.slane %v999, 1
      %v1014 = vsel %vm251, %v1012, %v1013
      %v1015 = vrot.slane %v1000, 1
      %v1016 = vsel %vm251, %v1013, %v1015
      %1017 = vrot.lane.b32.xlu0 %v1009, 125
      %v1018 = vpop.permute.xlu0 %1017
      %1019 = vrot.lane.b32.xlu0 %v1011, 125
      %v1020 = vpop.permute.xlu0 %1019
      %1021 = vrot.lane.b32.xlu0 %v1014, 125
      %v1022 = vpop.permute.xlu0 %1021
      %1023 = vrot.lane.b32.xlu0 %v1016, 125
      %v1024 = vpop.permute.xlu0 %1023
      %v1029 = vadd.f32 %v989, %v1018
      %v1030 = vadd.f32 %v990, %v1020
      %v1031 = vadd.f32 %v991, %v1022
      %v1032 = vadd.f32 %v992, %v1024
      %s1033 = sld [smem:[#allocation5 + $0x11]]
      %v1034 = vstv %s1033
      %v1035 = vmul.f32 %v1034, %v221
      %v1036 = vmul.f32 %v1034, %v222
      %v1037 = vmul.f32 %v1034, %v223
      %v1038 = vmul.f32 %v1034, %v224
      %v1039 = vmul.f32 %v1034, %v225
      %v1040 = vmul.f32 %v1034, %v226
      %v1047 = vrot.slane %v1035, 2
      %v1048 = vrot.slane %v1036, 2
      %v1049 = vsel %vm284, %v1047, %v1048
      %v1050 = vrot.slane %v1037, 2
      %v1051 = vsel %vm284, %v1048, %v1050
      %v1052 = vrot.slane %v1038, 2
      %v1053 = vrot.slane %v1039, 2
      %v1054 = vsel %vm284, %v1052, %v1053
      %v1055 = vrot.slane %v1040, 2
      %v1056 = vsel %vm284, %v1053, %v1055
      %1057 = vrot.lane.b32.xlu0 %v1049, 125
      %v1058 = vpop.permute.xlu0 %1057
      %1059 = vrot.lane.b32.xlu0 %v1051, 125
      %v1060 = vpop.permute.xlu0 %1059
      %1061 = vrot.lane.b32.xlu0 %v1054, 125
      %v1062 = vpop.permute.xlu0 %1061
      %1063 = vrot.lane.b32.xlu0 %v1056, 125
      %v1064 = vpop.permute.xlu0 %1063
      %v1069 = vadd.f32 %v1029, %v1058
      %v1070 = vadd.f32 %v1030, %v1060
      %v1071 = vadd.f32 %v1031, %v1062
      %v1072 = vadd.f32 %v1032, %v1064
      %s1073 = sld [smem:[#allocation5 + $0x18]]
      %v1074 = vstv %s1073
      %v1075 = vmul.f32 %v1074, %v221
      %v1076 = vmul.f32 %v1074, %v222
      %v1077 = vmul.f32 %v1074, %v223
      %v1078 = vmul.f32 %v1074, %v224
      %v1079 = vmul.f32 %v1074, %v225
      %v1080 = vmul.f32 %v1074, %v226
      %v1087 = vrot.slane %v1075, 3
      %v1088 = vrot.slane %v1076, 3
      %v1089 = vsel %vm317, %v1087, %v1088
      %v1090 = vrot.slane %v1077, 3
      %v1091 = vsel %vm317, %v1088, %v1090
      %v1092 = vrot.slane %v1078, 3
      %v1093 = vrot.slane %v1079, 3
      %v1094 = vsel %vm317, %v1092, %v1093
      %v1095 = vrot.slane %v1080, 3
      %v1096 = vsel %vm317, %v1093, %v1095
      %1097 = vrot.lane.b32.xlu0 %v1089, 125
      %v1098 = vpop.permute.xlu0 %1097
      %1099 = vrot.lane.b32.xlu0 %v1091, 125
      %v1100 = vpop.permute.xlu0 %1099
      %1101 = vrot.lane.b32.xlu0 %v1094, 125
      %v1102 = vpop.permute.xlu0 %1101
      %1103 = vrot.lane.b32.xlu0 %v1096, 125
      %v1104 = vpop.permute.xlu0 %1103
      %v1109 = vadd.f32 %v1069, %v1098
      %v1110 = vadd.f32 %v1070, %v1100
      %v1111 = vadd.f32 %v1071, %v1102
      %v1112 = vadd.f32 %v1072, %v1104
      %s1113 = sld [smem:[#allocation5 + $0x1f]]
      %v1114 = vstv %s1113
      %v1115 = vmul.f32 %v1114, %v221
      %v1116 = vmul.f32 %v1114, %v222
      %v1117 = vmul.f32 %v1114, %v223
      %v1118 = vmul.f32 %v1114, %v224
      %v1119 = vmul.f32 %v1114, %v225
      %v1120 = vmul.f32 %v1114, %v226
      %v1127 = vrot.slane %v1115, 4
      %v1128 = vrot.slane %v1116, 4
      %v1129 = vsel %vm350, %v1127, %v1128
      %v1130 = vrot.slane %v1117, 4
      %v1131 = vsel %vm350, %v1128, %v1130
      %v1132 = vrot.slane %v1118, 4
      %v1133 = vrot.slane %v1119, 4
      %v1134 = vsel %vm350, %v1132, %v1133
      %v1135 = vrot.slane %v1120, 4
      %v1136 = vsel %vm350, %v1133, %v1135
      %1137 = vrot.lane.b32.xlu0 %v1129, 125
      %v1138 = vpop.permute.xlu0 %1137
      %1139 = vrot.lane.b32.xlu0 %v1131, 125
      %v1140 = vpop.permute.xlu0 %1139
      %1141 = vrot.lane.b32.xlu0 %v1134, 125
      %v1142 = vpop.permute.xlu0 %1141
      %1143 = vrot.lane.b32.xlu0 %v1136, 125
      %v1144 = vpop.permute.xlu0 %1143
      %v1149 = vadd.f32 %v1109, %v1138
      %v1150 = vadd.f32 %v1110, %v1140
      %v1151 = vadd.f32 %v1111, %v1142
      %v1152 = vadd.f32 %v1112, %v1144
      %s1153 = sld [smem:[#allocation5 + $0x26]]
      %v1154 = vstv %s1153
      %v1155 = vmul.f32 %v1154, %v221
      %v1156 = vmul.f32 %v1154, %v222
      %v1157 = vmul.f32 %v1154, %v223
      %v1158 = vmul.f32 %v1154, %v224
      %v1159 = vmul.f32 %v1154, %v225
      %v1160 = vmul.f32 %v1154, %v226
      %v1167 = vrot.slane %v1155, 5
      %v1168 = vrot.slane %v1156, 5
      %v1169 = vsel %vm383, %v1167, %v1168
      %v1170 = vrot.slane %v1157, 5
      %v1171 = vsel %vm383, %v1168, %v1170
      %v1172 = vrot.slane %v1158, 5
      %v1173 = vrot.slane %v1159, 5
      %v1174 = vsel %vm383, %v1172, %v1173
      %v1175 = vrot.slane %v1160, 5
      %v1176 = vsel %vm383, %v1173, %v1175
      %1177 = vrot.lane.b32.xlu0 %v1169, 125
      %v1178 = vpop.permute.xlu0 %1177
      %1179 = vrot.lane.b32.xlu0 %v1171, 125
      %v1180 = vpop.permute.xlu0 %1179
      %1181 = vrot.lane.b32.xlu0 %v1174, 125
      %v1182 = vpop.permute.xlu0 %1181
      %1183 = vrot.lane.b32.xlu0 %v1176, 125
      %v1184 = vpop.permute.xlu0 %1183
      %v1189 = vadd.f32 %v1149, %v1178
      %v1190 = vadd.f32 %v1150, %v1180
      %v1191 = vadd.f32 %v1151, %v1182
      %v1192 = vadd.f32 %v1152, %v1184
      %s1193 = sld [smem:[#allocation5 + $0x2d]]
      %v1194 = vstv %s1193
      %v1195 = vmul.f32 %v1194, %v221
      %v1196 = vmul.f32 %v1194, %v222
      %v1197 = vmul.f32 %v1194, %v223
      %v1198 = vmul.f32 %v1194, %v224
      %v1199 = vmul.f32 %v1194, %v225
      %v1200 = vmul.f32 %v1194, %v226
      %v1207 = vrot.slane %v1195, 6
      %v1208 = vrot.slane %v1196, 6
      %v1209 = vsel %vm416, %v1207, %v1208
      %v1210 = vrot.slane %v1197, 6
      %v1211 = vsel %vm416, %v1208, %v1210
      %v1212 = vrot.slane %v1198, 6
      %v1213 = vrot.slane %v1199, 6
      %v1214 = vsel %vm416, %v1212, %v1213
      %v1215 = vrot.slane %v1200, 6
      %v1216 = vsel %vm416, %v1213, %v1215
      %1217 = vrot.lane.b32.xlu0 %v1209, 125
      %v1218 = vpop.permute.xlu0 %1217
      %1219 = vrot.lane.b32.xlu0 %v1211, 125
      %v1220 = vpop.permute.xlu0 %1219
      %1221 = vrot.lane.b32.xlu0 %v1214, 125
      %v1222 = vpop.permute.xlu0 %1221
      %1223 = vrot.lane.b32.xlu0 %v1216, 125
      %v1224 = vpop.permute.xlu0 %1223
      %v1229 = vadd.f32 %v1189, %v1218
      %v1230 = vadd.f32 %v1190, %v1220
      %v1231 = vadd.f32 %v1191, %v1222
      %v1232 = vadd.f32 %v1192, %v1224
      %s1233 = sld [smem:[#allocation5 + $0x4]]
      %v1234 = vstv %s1233
      %v1235 = vmul.f32 %v1234, %v221
      %v1236 = vmul.f32 %v1234, %v222
      %v1237 = vmul.f32 %v1234, %v224
      %v1238 = vmul.f32 %v1234, %v225
      %1243 = vrot.lane.b32.xlu0 %v1235, 124
      %v1244 = vpop.permute.xlu0 %1243
      %1245 = vrot.lane.b32.xlu0 %v1236, 124
      %v1246 = vpop.permute.xlu0 %1245
      %1247 = vrot.lane.b32.xlu0 %v1237, 124
      %v1248 = vpop.permute.xlu0 %1247
      %1249 = vrot.lane.b32.xlu0 %v1238, 124
      %v1250 = vpop.permute.xlu0 %1249
      %v1255 = vadd.f32 %v1229, %v1244
      %v1256 = vadd.f32 %v1230, %v1246
      %v1257 = vadd.f32 %v1231, %v1248
      %v1258 = vadd.f32 %v1232, %v1250
      %s1259 = sld [smem:[#allocation5 + $0xb]]
      %v1260 = vstv %s1259
      %v1261 = vmul.f32 %v1260, %v221
      %v1262 = vmul.f32 %v1260, %v222
      %v1263 = vmul.f32 %v1260, %v223
      %v1264 = vmul.f32 %v1260, %v224
      %v1265 = vmul.f32 %v1260, %v225
      %v1266 = vmul.f32 %v1260, %v226
      %v1273 = vrot.slane %v1261, 1
      %v1274 = vrot.slane %v1262, 1
      %v1275 = vsel %vm251, %v1273, %v1274
      %v1276 = vrot.slane %v1263, 1
      %v1277 = vsel %vm251, %v1274, %v1276
      %v1278 = vrot.slane %v1264, 1
      %v1279 = vrot.slane %v1265, 1
      %v1280 = vsel %vm251, %v1278, %v1279
      %v1281 = vrot.slane %v1266, 1
      %v1282 = vsel %vm251, %v1279, %v1281
      %1283 = vrot.lane.b32.xlu0 %v1275, 124
      %v1284 = vpop.permute.xlu0 %1283
      %1285 = vrot.lane.b32.xlu0 %v1277, 124
      %v1286 = vpop.permute.xlu0 %1285
      %1287 = vrot.lane.b32.xlu0 %v1280, 124
      %v1288 = vpop.permute.xlu0 %1287
      %1289 = vrot.lane.b32.xlu0 %v1282, 124
      %v1290 = vpop.permute.xlu0 %1289
      %v1295 = vadd.f32 %v1255, %v1284
      %v1296 = vadd.f32 %v1256, %v1286
      %v1297 = vadd.f32 %v1257, %v1288
      %v1298 = vadd.f32 %v1258, %v1290
      %s1299 = sld [smem:[#allocation5 + $0x12]]
      %v1300 = vstv %s1299
      %v1301 = vmul.f32 %v1300, %v221
      %v1302 = vmul.f32 %v1300, %v222
      %v1303 = vmul.f32 %v1300, %v223
      %v1304 = vmul.f32 %v1300, %v224
      %v1305 = vmul.f32 %v1300, %v225
      %v1306 = vmul.f32 %v1300, %v226
      %v1313 = vrot.slane %v1301, 2
      %v1314 = vrot.slane %v1302, 2
      %v1315 = vsel %vm284, %v1313, %v1314
      %v1316 = vrot.slane %v1303, 2
      %v1317 = vsel %vm284, %v1314, %v1316
      %v1318 = vrot.slane %v1304, 2
      %v1319 = vrot.slane %v1305, 2
      %v1320 = vsel %vm284, %v1318, %v1319
      %v1321 = vrot.slane %v1306, 2
      %v1322 = vsel %vm284, %v1319, %v1321
      %1323 = vrot.lane.b32.xlu0 %v1315, 124
      %v1324 = vpop.permute.xlu0 %1323
      %1325 = vrot.lane.b32.xlu0 %v1317, 124
      %v1326 = vpop.permute.xlu0 %1325
      %1327 = vrot.lane.b32.xlu0 %v1320, 124
      %v1328 = vpop.permute.xlu0 %1327
      %1329 = vrot.lane.b32.xlu0 %v1322, 124
      %v1330 = vpop.permute.xlu0 %1329
      %v1335 = vadd.f32 %v1295, %v1324
      %v1336 = vadd.f32 %v1296, %v1326
      %v1337 = vadd.f32 %v1297, %v1328
      %v1338 = vadd.f32 %v1298, %v1330
      %s1339 = sld [smem:[#allocation5 + $0x19]]
      %v1340 = vstv %s1339
      %v1341 = vmul.f32 %v1340, %v221
      %v1342 = vmul.f32 %v1340, %v222
      %v1343 = vmul.f32 %v1340, %v223
      %v1344 = vmul.f32 %v1340, %v224
      %v1345 = vmul.f32 %v1340, %v225
      %v1346 = vmul.f32 %v1340, %v226
      %v1353 = vrot.slane %v1341, 3
      %v1354 = vrot.slane %v1342, 3
      %v1355 = vsel %vm317, %v1353, %v1354
      %v1356 = vrot.slane %v1343, 3
      %v1357 = vsel %vm317, %v1354, %v1356
      %v1358 = vrot.slane %v1344, 3
      %v1359 = vrot.slane %v1345, 3
      %v1360 = vsel %vm317, %v1358, %v1359
      %v1361 = vrot.slane %v1346, 3
      %v1362 = vsel %vm317, %v1359, %v1361
      %1363 = vrot.lane.b32.xlu0 %v1355, 124
      %v1364 = vpop.permute.xlu0 %1363
      %1365 = vrot.lane.b32.xlu0 %v1357, 124
      %v1366 = vpop.permute.xlu0 %1365
      %1367 = vrot.lane.b32.xlu0 %v1360, 124
      %v1368 = vpop.permute.xlu0 %1367
      %1369 = vrot.lane.b32.xlu0 %v1362, 124
      %v1370 = vpop.permute.xlu0 %1369
      %v1375 = vadd.f32 %v1335, %v1364
      %v1376 = vadd.f32 %v1336, %v1366
      %v1377 = vadd.f32 %v1337, %v1368
      %v1378 = vadd.f32 %v1338, %v1370
      %s1379 = sld [smem:[#allocation5 + $0x20]]
      %v1380 = vstv %s1379
      %v1381 = vmul.f32 %v1380, %v221
      %v1382 = vmul.f32 %v1380, %v222
      %v1383 = vmul.f32 %v1380, %v223
      %v1384 = vmul.f32 %v1380, %v224
      %v1385 = vmul.f32 %v1380, %v225
      %v1386 = vmul.f32 %v1380, %v226
      %v1393 = vrot.slane %v1381, 4
      %v1394 = vrot.slane %v1382, 4
      %v1395 = vsel %vm350, %v1393, %v1394
      %v1396 = vrot.slane %v1383, 4
      %v1397 = vsel %vm350, %v1394, %v1396
      %v1398 = vrot.slane %v1384, 4
      %v1399 = vrot.slane %v1385, 4
      %v1400 = vsel %vm350, %v1398, %v1399
      %v1401 = vrot.slane %v1386, 4
      %v1402 = vsel %vm350, %v1399, %v1401
      %1403 = vrot.lane.b32.xlu0 %v1395, 124
      %v1404 = vpop.permute.xlu0 %1403
      %1405 = vrot.lane.b32.xlu0 %v1397, 124
      %v1406 = vpop.permute.xlu0 %1405
      %1407 = vrot.lane.b32.xlu0 %v1400, 124
      %v1408 = vpop.permute.xlu0 %1407
      %1409 = vrot.lane.b32.xlu0 %v1402, 124
      %v1410 = vpop.permute.xlu0 %1409
      %v1415 = vadd.f32 %v1375, %v1404
      %v1416 = vadd.f32 %v1376, %v1406
      %v1417 = vadd.f32 %v1377, %v1408
      %v1418 = vadd.f32 %v1378, %v1410
      %s1419 = sld [smem:[#allocation5 + $0x27]]
      %v1420 = vstv %s1419
      %v1421 = vmul.f32 %v1420, %v221
      %v1422 = vmul.f32 %v1420, %v222
      %v1423 = vmul.f32 %v1420, %v223
      %v1424 = vmul.f32 %v1420, %v224
      %v1425 = vmul.f32 %v1420, %v225
      %v1426 = vmul.f32 %v1420, %v226
      %v1433 = vrot.slane %v1421, 5
      %v1434 = vrot.slane %v1422, 5
      %v1435 = vsel %vm383, %v1433, %v1434
      %v1436 = vrot.slane %v1423, 5
      %v1437 = vsel %vm383, %v1434, %v1436
      %v1438 = vrot.slane %v1424, 5
      %v1439 = vrot.slane %v1425, 5
      %v1440 = vsel %vm383, %v1438, %v1439
      %v1441 = vrot.slane %v1426, 5
      %v1442 = vsel %vm383, %v1439, %v1441
      %1443 = vrot.lane.b32.xlu0 %v1435, 124
      %v1444 = vpop.permute.xlu0 %1443
      %1445 = vrot.lane.b32.xlu0 %v1437, 124
      %v1446 = vpop.permute.xlu0 %1445
      %1447 = vrot.lane.b32.xlu0 %v1440, 124
      %v1448 = vpop.permute.xlu0 %1447
      %1449 = vrot.lane.b32.xlu0 %v1442, 124
      %v1450 = vpop.permute.xlu0 %1449
      %v1455 = vadd.f32 %v1415, %v1444
      %v1456 = vadd.f32 %v1416, %v1446
      %v1457 = vadd.f32 %v1417, %v1448
      %v1458 = vadd.f32 %v1418, %v1450
      %s1459 = sld [smem:[#allocation5 + $0x2e]]
      %v1460 = vstv %s1459
      %v1461 = vmul.f32 %v1460, %v221
      %v1462 = vmul.f32 %v1460, %v222
      %v1463 = vmul.f32 %v1460, %v223
      %v1464 = vmul.f32 %v1460, %v224
      %v1465 = vmul.f32 %v1460, %v225
      %v1466 = vmul.f32 %v1460, %v226
      %v1473 = vrot.slane %v1461, 6
      %v1474 = vrot.slane %v1462, 6
      %v1475 = vsel %vm416, %v1473, %v1474
      %v1476 = vrot.slane %v1463, 6
      %v1477 = vsel %vm416, %v1474, %v1476
      %v1478 = vrot.slane %v1464, 6
      %v1479 = vrot.slane %v1465, 6
      %v1480 = vsel %vm416, %v1478, %v1479
      %v1481 = vrot.slane %v1466, 6
      %v1482 = vsel %vm416, %v1479, %v1481
      %1483 = vrot.lane.b32.xlu0 %v1475, 124
      %v1484 = vpop.permute.xlu0 %1483
      %1485 = vrot.lane.b32.xlu0 %v1477, 124
      %v1486 = vpop.permute.xlu0 %1485
      %1487 = vrot.lane.b32.xlu0 %v1480, 124
      %v1488 = vpop.permute.xlu0 %1487
      %1489 = vrot.lane.b32.xlu0 %v1482, 124
      %v1490 = vpop.permute.xlu0 %1489
      %v1495 = vadd.f32 %v1455, %v1484
      %v1496 = vadd.f32 %v1456, %v1486
      %v1497 = vadd.f32 %v1457, %v1488
      %v1498 = vadd.f32 %v1458, %v1490
      %s1499 = sld [smem:[#allocation5 + $0x5]]
      %v1500 = vstv %s1499
      %v1501 = vmul.f32 %v1500, %v221
      %v1502 = vmul.f32 %v1500, %v222
      %v1503 = vmul.f32 %v1500, %v224
      %v1504 = vmul.f32 %v1500, %v225
      %1509 = vrot.lane.b32.xlu0 %v1501, 123
      %v1510 = vpop.permute.xlu0 %1509
      %1511 = vrot.lane.b32.xlu0 %v1502, 123
      %v1512 = vpop.permute.xlu0 %1511
      %1513 = vrot.lane.b32.xlu0 %v1503, 123
      %v1514 = vpop.permute.xlu0 %1513
      %1515 = vrot.lane.b32.xlu0 %v1504, 123
      %v1516 = vpop.permute.xlu0 %1515
      %v1521 = vadd.f32 %v1495, %v1510
      %v1522 = vadd.f32 %v1496, %v1512
      %v1523 = vadd.f32 %v1497, %v1514
      %v1524 = vadd.f32 %v1498, %v1516
      %s1525 = sld [smem:[#allocation5 + $0xc]]
      %v1526 = vstv %s1525
      %v1527 = vmul.f32 %v1526, %v221
      %v1528 = vmul.f32 %v1526, %v222
      %v1529 = vmul.f32 %v1526, %v223
      %v1530 = vmul.f32 %v1526, %v224
      %v1531 = vmul.f32 %v1526, %v225
      %v1532 = vmul.f32 %v1526, %v226
      %v1539 = vrot.slane %v1527, 1
      %v1540 = vrot.slane %v1528, 1
      %v1541 = vsel %vm251, %v1539, %v1540
      %v1542 = vrot.slane %v1529, 1
      %v1543 = vsel %vm251, %v1540, %v1542
      %v1544 = vrot.slane %v1530, 1
      %v1545 = vrot.slane %v1531, 1
      %v1546 = vsel %vm251, %v1544, %v1545
      %v1547 = vrot.slane %v1532, 1
      %v1548 = vsel %vm251, %v1545, %v1547
      %1549 = vrot.lane.b32.xlu0 %v1541, 123
      %v1550 = vpop.permute.xlu0 %1549
      %1551 = vrot.lane.b32.xlu0 %v1543, 123
      %v1552 = vpop.permute.xlu0 %1551
      %1553 = vrot.lane.b32.xlu0 %v1546, 123
      %v1554 = vpop.permute.xlu0 %1553
      %1555 = vrot.lane.b32.xlu0 %v1548, 123
      %v1556 = vpop.permute.xlu0 %1555
      %v1561 = vadd.f32 %v1521, %v1550
      %v1562 = vadd.f32 %v1522, %v1552
      %v1563 = vadd.f32 %v1523, %v1554
      %v1564 = vadd.f32 %v1524, %v1556
      %s1565 = sld [smem:[#allocation5 + $0x13]]
      %v1566 = vstv %s1565
      %v1567 = vmul.f32 %v1566, %v221
      %v1568 = vmul.f32 %v1566, %v222
      %v1569 = vmul.f32 %v1566, %v223
      %v1570 = vmul.f32 %v1566, %v224
      %v1571 = vmul.f32 %v1566, %v225
      %v1572 = vmul.f32 %v1566, %v226
      %v1579 = vrot.slane %v1567, 2
      %v1580 = vrot.slane %v1568, 2
      %v1581 = vsel %vm284, %v1579, %v1580
      %v1582 = vrot.slane %v1569, 2
      %v1583 = vsel %vm284, %v1580, %v1582
      %v1584 = vrot.slane %v1570, 2
      %v1585 = vrot.slane %v1571, 2
      %v1586 = vsel %vm284, %v1584, %v1585
      %v1587 = vrot.slane %v1572, 2
      %v1588 = vsel %vm284, %v1585, %v1587
      %1589 = vrot.lane.b32.xlu0 %v1581, 123
      %v1590 = vpop.permute.xlu0 %1589
      %1591 = vrot.lane.b32.xlu0 %v1583, 123
      %v1592 = vpop.permute.xlu0 %1591
      %1593 = vrot.lane.b32.xlu0 %v1586, 123
      %v1594 = vpop.permute.xlu0 %1593
      %1595 = vrot.lane.b32.xlu0 %v1588, 123
      %v1596 = vpop.permute.xlu0 %1595
      %v1601 = vadd.f32 %v1561, %v1590
      %v1602 = vadd.f32 %v1562, %v1592
      %v1603 = vadd.f32 %v1563, %v1594
      %v1604 = vadd.f32 %v1564, %v1596
      %s1605 = sld [smem:[#allocation5 + $0x1a]]
      %v1606 = vstv %s1605
      %v1607 = vmul.f32 %v1606, %v221
      %v1608 = vmul.f32 %v1606, %v222
      %v1609 = vmul.f32 %v1606, %v223
      %v1610 = vmul.f32 %v1606, %v224
      %v1611 = vmul.f32 %v1606, %v225
      %v1612 = vmul.f32 %v1606, %v226
      %v1619 = vrot.slane %v1607, 3
      %v1620 = vrot.slane %v1608, 3
      %v1621 = vsel %vm317, %v1619, %v1620
      %v1622 = vrot.slane %v1609, 3
      %v1623 = vsel %vm317, %v1620, %v1622
      %v1624 = vrot.slane %v1610, 3
      %v1625 = vrot.slane %v1611, 3
      %v1626 = vsel %vm317, %v1624, %v1625
      %v1627 = vrot.slane %v1612, 3
      %v1628 = vsel %vm317, %v1625, %v1627
      %1629 = vrot.lane.b32.xlu0 %v1621, 123
      %v1630 = vpop.permute.xlu0 %1629
      %1631 = vrot.lane.b32.xlu0 %v1623, 123
      %v1632 = vpop.permute.xlu0 %1631
      %1633 = vrot.lane.b32.xlu0 %v1626, 123
      %v1634 = vpop.permute.xlu0 %1633
      %1635 = vrot.lane.b32.xlu0 %v1628, 123
      %v1636 = vpop.permute.xlu0 %1635
      %v1641 = vadd.f32 %v1601, %v1630
      %v1642 = vadd.f32 %v1602, %v1632
      %v1643 = vadd.f32 %v1603, %v1634
      %v1644 = vadd.f32 %v1604, %v1636
      %s1645 = sld [smem:[#allocation5 + $0x21]]
      %v1646 = vstv %s1645
      %v1647 = vmul.f32 %v1646, %v221
      %v1648 = vmul.f32 %v1646, %v222
      %v1649 = vmul.f32 %v1646, %v223
      %v1650 = vmul.f32 %v1646, %v224
      %v1651 = vmul.f32 %v1646, %v225
      %v1652 = vmul.f32 %v1646, %v226
      %v1659 = vrot.slane %v1647, 4
      %v1660 = vrot.slane %v1648, 4
      %v1661 = vsel %vm350, %v1659, %v1660
      %v1662 = vrot.slane %v1649, 4
      %v1663 = vsel %vm350, %v1660, %v1662
      %v1664 = vrot.slane %v1650, 4
      %v1665 = vrot.slane %v1651, 4
      %v1666 = vsel %vm350, %v1664, %v1665
      %v1667 = vrot.slane %v1652, 4
      %v1668 = vsel %vm350, %v1665, %v1667
      %1669 = vrot.lane.b32.xlu0 %v1661, 123
      %v1670 = vpop.permute.xlu0 %1669
      %1671 = vrot.lane.b32.xlu0 %v1663, 123
      %v1672 = vpop.permute.xlu0 %1671
      %1673 = vrot.lane.b32.xlu0 %v1666, 123
      %v1674 = vpop.permute.xlu0 %1673
      %1675 = vrot.lane.b32.xlu0 %v1668, 123
      %v1676 = vpop.permute.xlu0 %1675
      %v1681 = vadd.f32 %v1641, %v1670
      %v1682 = vadd.f32 %v1642, %v1672
      %v1683 = vadd.f32 %v1643, %v1674
      %v1684 = vadd.f32 %v1644, %v1676
      %s1685 = sld [smem:[#allocation5 + $0x28]]
      %v1686 = vstv %s1685
      %v1687 = vmul.f32 %v1686, %v221
      %v1688 = vmul.f32 %v1686, %v222
      %v1689 = vmul.f32 %v1686, %v223
      %v1690 = vmul.f32 %v1686, %v224
      %v1691 = vmul.f32 %v1686, %v225
      %v1692 = vmul.f32 %v1686, %v226
      %v1699 = vrot.slane %v1687, 5
      %v1700 = vrot.slane %v1688, 5
      %v1701 = vsel %vm383, %v1699, %v1700
      %v1702 = vrot.slane %v1689, 5
      %v1703 = vsel %vm383, %v1700, %v1702
      %v1704 = vrot.slane %v1690, 5
      %v1705 = vrot.slane %v1691, 5
      %v1706 = vsel %vm383, %v1704, %v1705
      %v1707 = vrot.slane %v1692, 5
      %v1708 = vsel %vm383, %v1705, %v1707
      %1709 = vrot.lane.b32.xlu0 %v1701, 123
      %v1710 = vpop.permute.xlu0 %1709
      %1711 = vrot.lane.b32.xlu0 %v1703, 123
      %v1712 = vpop.permute.xlu0 %1711
      %1713 = vrot.lane.b32.xlu0 %v1706, 123
      %v1714 = vpop.permute.xlu0 %1713
      %1715 = vrot.lane.b32.xlu0 %v1708, 123
      %v1716 = vpop.permute.xlu0 %1715
      %v1721 = vadd.f32 %v1681, %v1710
      %v1722 = vadd.f32 %v1682, %v1712
      %v1723 = vadd.f32 %v1683, %v1714
      %v1724 = vadd.f32 %v1684, %v1716
      %s1725 = sld [smem:[#allocation5 + $0x2f]]
      %v1726 = vstv %s1725
      %v1727 = vmul.f32 %v1726, %v221
      %v1728 = vmul.f32 %v1726, %v222
      %v1729 = vmul.f32 %v1726, %v223
      %v1730 = vmul.f32 %v1726, %v224
      %v1731 = vmul.f32 %v1726, %v225
      %v1732 = vmul.f32 %v1726, %v226
      %v1739 = vrot.slane %v1727, 6
      %v1740 = vrot.slane %v1728, 6
      %v1741 = vsel %vm416, %v1739, %v1740
      %v1742 = vrot.slane %v1729, 6
      %v1743 = vsel %vm416, %v1740, %v1742
      %v1744 = vrot.slane %v1730, 6
      %v1745 = vrot.slane %v1731, 6
      %v1746 = vsel %vm416, %v1744, %v1745
      %v1747 = vrot.slane %v1732, 6
      %v1748 = vsel %vm416, %v1745, %v1747
      %1749 = vrot.lane.b32.xlu0 %v1741, 123
      %v1750 = vpop.permute.xlu0 %1749
      %1751 = vrot.lane.b32.xlu0 %v1743, 123
      %v1752 = vpop.permute.xlu0 %1751
      %1753 = vrot.lane.b32.xlu0 %v1746, 123
      %v1754 = vpop.permute.xlu0 %1753
      %1755 = vrot.lane.b32.xlu0 %v1748, 123
      %v1756 = vpop.permute.xlu0 %1755
      %v1761 = vadd.f32 %v1721, %v1750
      %v1762 = vadd.f32 %v1722, %v1752
      %v1763 = vadd.f32 %v1723, %v1754
      %v1764 = vadd.f32 %v1724, %v1756
      %s1765 = sld [smem:[#allocation5 + $0x6]]
      %v1766 = vstv %s1765
      %v1767 = vmul.f32 %v1766, %v221
      %v1768 = vmul.f32 %v1766, %v222
      %v1769 = vmul.f32 %v1766, %v224
      %v1770 = vmul.f32 %v1766, %v225
      %1775 = vrot.lane.b32.xlu0 %v1767, 122
      %v1776 = vpop.permute.xlu0 %1775
      %1777 = vrot.lane.b32.xlu0 %v1768, 122
      %v1778 = vpop.permute.xlu0 %1777
      %1779 = vrot.lane.b32.xlu0 %v1769, 122
      %v1780 = vpop.permute.xlu0 %1779
      %1781 = vrot.lane.b32.xlu0 %v1770, 122
      %v1782 = vpop.permute.xlu0 %1781
      %v1787 = vadd.f32 %v1761, %v1776
      %v1788 = vadd.f32 %v1762, %v1778
      %v1789 = vadd.f32 %v1763, %v1780
      %v1790 = vadd.f32 %v1764, %v1782
      %s1791 = sld [smem:[#allocation5 + $0xd]]
      %v1792 = vstv %s1791
      %v1793 = vmul.f32 %v1792, %v221
      %v1794 = vmul.f32 %v1792, %v222
      %v1795 = vmul.f32 %v1792, %v223
      %v1796 = vmul.f32 %v1792, %v224
      %v1797 = vmul.f32 %v1792, %v225
      %v1798 = vmul.f32 %v1792, %v226
      %v1805 = vrot.slane %v1793, 1
      %v1806 = vrot.slane %v1794, 1
      %v1807 = vsel %vm251, %v1805, %v1806
      %v1808 = vrot.slane %v1795, 1
      %v1809 = vsel %vm251, %v1806, %v1808
      %v1810 = vrot.slane %v1796, 1
      %v1811 = vrot.slane %v1797, 1
      %v1812 = vsel %vm251, %v1810, %v1811
      %v1813 = vrot.slane %v1798, 1
      %v1814 = vsel %vm251, %v1811, %v1813
      %1815 = vrot.lane.b32.xlu0 %v1807, 122
      %v1816 = vpop.permute.xlu0 %1815
      %1817 = vrot.lane.b32.xlu0 %v1809, 122
      %v1818 = vpop.permute.xlu0 %1817
      %1819 = vrot.lane.b32.xlu0 %v1812, 122
      %v1820 = vpop.permute.xlu0 %1819
      %1821 = vrot.lane.b32.xlu0 %v1814, 122
      %v1822 = vpop.permute.xlu0 %1821
      %v1827 = vadd.f32 %v1787, %v1816
      %v1828 = vadd.f32 %v1788, %v1818
      %v1829 = vadd.f32 %v1789, %v1820
      %v1830 = vadd.f32 %v1790, %v1822
      %s1831 = sld [smem:[#allocation5 + $0x14]]
      %v1832 = vstv %s1831
      %v1833 = vmul.f32 %v1832, %v221
      %v1834 = vmul.f32 %v1832, %v222
      %v1835 = vmul.f32 %v1832, %v223
      %v1836 = vmul.f32 %v1832, %v224
      %v1837 = vmul.f32 %v1832, %v225
      %v1838 = vmul.f32 %v1832, %v226
      %v1845 = vrot.slane %v1833, 2
      %v1846 = vrot.slane %v1834, 2
      %v1847 = vsel %vm284, %v1845, %v1846
      %v1848 = vrot.slane %v1835, 2
      %v1849 = vsel %vm284, %v1846, %v1848
      %v1850 = vrot.slane %v1836, 2
      %v1851 = vrot.slane %v1837, 2
      %v1852 = vsel %vm284, %v1850, %v1851
      %v1853 = vrot.slane %v1838, 2
      %v1854 = vsel %vm284, %v1851, %v1853
      %1855 = vrot.lane.b32.xlu0 %v1847, 122
      %v1856 = vpop.permute.xlu0 %1855
      %1857 = vrot.lane.b32.xlu0 %v1849, 122
      %v1858 = vpop.permute.xlu0 %1857
      %1859 = vrot.lane.b32.xlu0 %v1852, 122
      %v1860 = vpop.permute.xlu0 %1859
      %1861 = vrot.lane.b32.xlu0 %v1854, 122
      %v1862 = vpop.permute.xlu0 %1861
      %v1867 = vadd.f32 %v1827, %v1856
      %v1868 = vadd.f32 %v1828, %v1858
      %v1869 = vadd.f32 %v1829, %v1860
      %v1870 = vadd.f32 %v1830, %v1862
      %s1871 = sld [smem:[#allocation5 + $0x1b]]
      %v1872 = vstv %s1871
      %v1873 = vmul.f32 %v1872, %v221
      %v1874 = vmul.f32 %v1872, %v222
      %v1875 = vmul.f32 %v1872, %v223
      %v1876 = vmul.f32 %v1872, %v224
      %v1877 = vmul.f32 %v1872, %v225
      %v1878 = vmul.f32 %v1872, %v226
      %v1885 = vrot.slane %v1873, 3
      %v1886 = vrot.slane %v1874, 3
      %v1887 = vsel %vm317, %v1885, %v1886
      %v1888 = vrot.slane %v1875, 3
      %v1889 = vsel %vm317, %v1886, %v1888
      %v1890 = vrot.slane %v1876, 3
      %v1891 = vrot.slane %v1877, 3
      %v1892 = vsel %vm317, %v1890, %v1891
      %v1893 = vrot.slane %v1878, 3
      %v1894 = vsel %vm317, %v1891, %v1893
      %1895 = vrot.lane.b32.xlu0 %v1887, 122
      %v1896 = vpop.permute.xlu0 %1895
      %1897 = vrot.lane.b32.xlu0 %v1889, 122
      %v1898 = vpop.permute.xlu0 %1897
      %1899 = vrot.lane.b32.xlu0 %v1892, 122
      %v1900 = vpop.permute.xlu0 %1899
      %1901 = vrot.lane.b32.xlu0 %v1894, 122
      %v1902 = vpop.permute.xlu0 %1901
      %v1907 = vadd.f32 %v1867, %v1896
      %v1908 = vadd.f32 %v1868, %v1898
      %v1909 = vadd.f32 %v1869, %v1900
      %v1910 = vadd.f32 %v1870, %v1902
      %s1911 = sld [smem:[#allocation5 + $0x22]]
      %v1912 = vstv %s1911
      %v1913 = vmul.f32 %v1912, %v221
      %v1914 = vmul.f32 %v1912, %v222
      %v1915 = vmul.f32 %v1912, %v223
      %v1916 = vmul.f32 %v1912, %v224
      %v1917 = vmul.f32 %v1912, %v225
      %v1918 = vmul.f32 %v1912, %v226
      %v1925 = vrot.slane %v1913, 4
      %v1926 = vrot.slane %v1914, 4
      %v1927 = vsel %vm350, %v1925, %v1926
      %v1928 = vrot.slane %v1915, 4
      %v1929 = vsel %vm350, %v1926, %v1928
      %v1930 = vrot.slane %v1916, 4
      %v1931 = vrot.slane %v1917, 4
      %v1932 = vsel %vm350, %v1930, %v1931
      %v1933 = vrot.slane %v1918, 4
      %v1934 = vsel %vm350, %v1931, %v1933
      %1935 = vrot.lane.b32.xlu0 %v1927, 122
      %v1936 = vpop.permute.xlu0 %1935
      %1937 = vrot.lane.b32.xlu0 %v1929, 122
      %v1938 = vpop.permute.xlu0 %1937
      %1939 = vrot.lane.b32.xlu0 %v1932, 122
      %v1940 = vpop.permute.xlu0 %1939
      %1941 = vrot.lane.b32.xlu0 %v1934, 122
      %v1942 = vpop.permute.xlu0 %1941
      %v1947 = vadd.f32 %v1907, %v1936
      %v1948 = vadd.f32 %v1908, %v1938
      %v1949 = vadd.f32 %v1909, %v1940
      %v1950 = vadd.f32 %v1910, %v1942
      %s1951 = sld [smem:[#allocation5 + $0x29]]
      %v1952 = vstv %s1951
      %v1953 = vmul.f32 %v1952, %v221
      %v1954 = vmul.f32 %v1952, %v222
      %v1955 = vmul.f32 %v1952, %v223
      %v1956 = vmul.f32 %v1952, %v224
      %v1957 = vmul.f32 %v1952, %v225
      %v1958 = vmul.f32 %v1952, %v226
      %v1965 = vrot.slane %v1953, 5
      %v1966 = vrot.slane %v1954, 5
      %v1967 = vsel %vm383, %v1965, %v1966
      %v1968 = vrot.slane %v1955, 5
      %v1969 = vsel %vm383, %v1966, %v1968
      %v1970 = vrot.slane %v1956, 5
      %v1971 = vrot.slane %v1957, 5
      %v1972 = vsel %vm383, %v1970, %v1971
      %v1973 = vrot.slane %v1958, 5
      %v1974 = vsel %vm383, %v1971, %v1973
      %1975 = vrot.lane.b32.xlu0 %v1967, 122
      %v1976 = vpop.permute.xlu0 %1975
      %1977 = vrot.lane.b32.xlu0 %v1969, 122
      %v1978 = vpop.permute.xlu0 %1977
      %1979 = vrot.lane.b32.xlu0 %v1972, 122
      %v1980 = vpop.permute.xlu0 %1979
      %1981 = vrot.lane.b32.xlu0 %v1974, 122
      %v1982 = vpop.permute.xlu0 %1981
      %v1987 = vadd.f32 %v1947, %v1976
      %v1988 = vadd.f32 %v1948, %v1978
      %v1989 = vadd.f32 %v1949, %v1980
      %v1990 = vadd.f32 %v1950, %v1982
      %s1991 = sld [smem:[#allocation5 + $0x30]]
      %v1992 = vstv %s1991
      %v1993 = vmul.f32 %v1992, %v221
      %v1994 = vmul.f32 %v1992, %v222
      %v1995 = vmul.f32 %v1992, %v223
      %v1996 = vmul.f32 %v1992, %v224
      %v1997 = vmul.f32 %v1992, %v225
      %v1998 = vmul.f32 %v1992, %v226
      %v2005 = vrot.slane %v1993, 6
      %v2006 = vrot.slane %v1994, 6
      %v2007 = vsel %vm416, %v2005, %v2006
      %v2008 = vrot.slane %v1995, 6
      %v2009 = vsel %vm416, %v2006, %v2008
      %v2010 = vrot.slane %v1996, 6
      %v2011 = vrot.slane %v1997, 6
      %v2012 = vsel %vm416, %v2010, %v2011
      %v2013 = vrot.slane %v1998, 6
      %v2014 = vsel %vm416, %v2011, %v2013
      %2015 = vrot.lane.b32.xlu0 %v2007, 122
      %v2016 = vpop.permute.xlu0 %2015
      %2017 = vrot.lane.b32.xlu0 %v2009, 122
      %v2018 = vpop.permute.xlu0 %2017
      %2019 = vrot.lane.b32.xlu0 %v2012, 122
      %v2020 = vpop.permute.xlu0 %2019
      %2021 = vrot.lane.b32.xlu0 %v2014, 122
      %v2022 = vpop.permute.xlu0 %2021
      %v2027 = vadd.f32 %v1987, %v2016
      %v2028 = vadd.f32 %v1988, %v2018
      %v2029 = vadd.f32 %v1989, %v2020
      %v2030 = vadd.f32 %v1990, %v2022
      %v2031 = vld [vmem:[%s216] sm:$0xff]
      %v2032 = vld [vmem:[%s216 + $0x8] sm:$0xff]
      %v2033 = vld [vmem:[%s216 + $0x10] sm:$0x3f]
      %v2034 = vld [vmem:[%s216 + $0x18] sm:$0xff]
      %v2035 = vld [vmem:[%s216 + $0x20] sm:$0xff]
      %v2036 = vld [vmem:[%s216 + $0x28] sm:$0x3f]
      %s2037 = sld [smem:[#allocation5 + $0x31]]
      %v2038 = vstv %s2037
      %v2039 = vmul.f32 %v2038, %v2031
      %v2040 = vmul.f32 %v2038, %v2032
      %v2041 = vmul.f32 %v2038, %v2034
      %v2042 = vmul.f32 %v2038, %v2035
      %v2043 = vadd.f32 %v2027, %v2039
      %v2044 = vadd.f32 %v2028, %v2040
      %v2045 = vadd.f32 %v2029, %v2041
      %v2046 = vadd.f32 %v2030, %v2042
      %s2047 = sld [smem:[#allocation5 + $0x38]]
      %v2048 = vstv %s2047
      %v2049 = vmul.f32 %v2048, %v2031
      %v2050 = vmul.f32 %v2048, %v2032
      %v2051 = vmul.f32 %v2048, %v2033
      %v2052 = vmul.f32 %v2048, %v2034
      %v2053 = vmul.f32 %v2048, %v2035
      %v2054 = vmul.f32 %v2048, %v2036
      %v2061 = vrot.slane %v2049, 1
      %v2062 = vrot.slane %v2050, 1
      %v2063 = vsel %vm251, %v2061, %v2062
      %v2064 = vrot.slane %v2051, 1
      %v2065 = vsel %vm251, %v2062, %v2064
      %v2066 = vrot.slane %v2052, 1
      %v2067 = vrot.slane %v2053, 1
      %v2068 = vsel %vm251, %v2066, %v2067
      %v2069 = vrot.slane %v2054, 1
      %v2070 = vsel %vm251, %v2067, %v2069
      %v2075 = vadd.f32 %v2043, %v2063
      %v2076 = vadd.f32 %v2044, %v2065
      %v2077 = vadd.f32 %v2045, %v2068
      %v2078 = vadd.f32 %v2046, %v2070
      %s2079 = sld [smem:[#allocation5 + $0x3f]]
      %v2080 = vstv %s2079
      %v2081 = vmul.f32 %v2080, %v2031
      %v2082 = vmul.f32 %v2080, %v2032
      %v2083 = vmul.f32 %v2080, %v2033
      %v2084 = vmul.f32 %v2080, %v2034
      %v2085 = vmul.f32 %v2080, %v2035
      %v2086 = vmul.f32 %v2080, %v2036
      %v2093 = vrot.slane %v2081, 2
      %v2094 = vrot.slane %v2082, 2
      %v2095 = vsel %vm284, %v2093, %v2094
      %v2096 = vrot.slane %v2083, 2
      %v2097 = vsel %vm284, %v2094, %v2096
      %v2098 = vrot.slane %v2084, 2
      %v2099 = vrot.slane %v2085, 2
      %v2100 = vsel %vm284, %v2098, %v2099
      %v2101 = vrot.slane %v2086, 2
      %v2102 = vsel %vm284, %v2099, %v2101
      %v2107 = vadd.f32 %v2075, %v2095
      %v2108 = vadd.f32 %v2076, %v2097
      %v2109 = vadd.f32 %v2077, %v2100
      %v2110 = vadd.f32 %v2078, %v2102
      %s2111 = sld [smem:[#allocation5 + $0x46]]
      %v2112 = vstv %s2111
      %v2113 = vmul.f32 %v2112, %v2031
      %v2114 = vmul.f32 %v2112, %v2032
      %v2115 = vmul.f32 %v2112, %v2033
      %v2116 = vmul.f32 %v2112, %v2034
      %v2117 = vmul.f32 %v2112, %v2035
      %v2118 = vmul.f32 %v2112, %v2036
      %v2125 = vrot.slane %v2113, 3
      %v2126 = vrot.slane %v2114, 3
      %v2127 = vsel %vm317, %v2125, %v2126
      %v2128 = vrot.slane %v2115, 3
      %v2129 = vsel %vm317, %v2126, %v2128
      %v2130 = vrot.slane %v2116, 3
      %v2131 = vrot.slane %v2117, 3
      %v2132 = vsel %vm317, %v2130, %v2131
      %v2133 = vrot.slane %v2118, 3
      %v2134 = vsel %vm317, %v2131, %v2133
      %v2139 = vadd.f32 %v2107, %v2127
      %v2140 = vadd.f32 %v2108, %v2129
      %v2141 = vadd.f32 %v2109, %v2132
      %v2142 = vadd.f32 %v2110, %v2134
      %s2143 = sld [smem:[#allocation5 + $0x4d]]
      %v2144 = vstv %s2143
      %v2145 = vmul.f32 %v2144, %v2031
      %v2146 = vmul.f32 %v2144, %v2032
      %v2147 = vmul.f32 %v2144, %v2033
      %v2148 = vmul.f32 %v2144, %v2034
      %v2149 = vmul.f32 %v2144, %v2035
      %v2150 = vmul.f32 %v2144, %v2036
      %v2157 = vrot.slane %v2145, 4
      %v2158 = vrot.slane %v2146, 4
      %v2159 = vsel %vm350, %v2157, %v2158
      %v2160 = vrot.slane %v2147, 4
      %v2161 = vsel %vm350, %v2158, %v2160
      %v2162 = vrot.slane %v2148, 4
      %v2163 = vrot.slane %v2149, 4
      %v2164 = vsel %vm350, %v2162, %v2163
      %v2165 = vrot.slane %v2150, 4
      %v2166 = vsel %vm350, %v2163, %v2165
      %v2171 = vadd.f32 %v2139, %v2159
      %v2172 = vadd.f32 %v2140, %v2161
      %v2173 = vadd.f32 %v2141, %v2164
      %v2174 = vadd.f32 %v2142, %v2166
      %s2175 = sld [smem:[#allocation5 + $0x54]]
      %v2176 = vstv %s2175
      %v2177 = vmul.f32 %v2176, %v2031
      %v2178 = vmul.f32 %v2176, %v2032
      %v2179 = vmul.f32 %v2176, %v2033
      %v2180 = vmul.f32 %v2176, %v2034
      %v2181 = vmul.f32 %v2176, %v2035
      %v2182 = vmul.f32 %v2176, %v2036
      %v2189 = vrot.slane %v2177, 5
      %v2190 = vrot.slane %v2178, 5
      %v2191 = vsel %vm383, %v2189, %v2190
      %v2192 = vrot.slane %v2179, 5
      %v2193 = vsel %vm383, %v2190, %v2192
      %v2194 = vrot.slane %v2180, 5
      %v2195 = vrot.slane %v2181, 5
      %v2196 = vsel %vm383, %v2194, %v2195
      %v2197 = vrot.slane %v2182, 5
      %v2198 = vsel %vm383, %v2195, %v2197
      %v2203 = vadd.f32 %v2171, %v2191
      %v2204 = vadd.f32 %v2172, %v2193
      %v2205 = vadd.f32 %v2173, %v2196
      %v2206 = vadd.f32 %v2174, %v2198
      %s2207 = sld [smem:[#allocation5 + $0x5b]]
      %v2208 = vstv %s2207
      %v2209 = vmul.f32 %v2208, %v2031
      %v2210 = vmul.f32 %v2208, %v2032
      %v2211 = vmul.f32 %v2208, %v2033
      %v2212 = vmul.f32 %v2208, %v2034
      %v2213 = vmul.f32 %v2208, %v2035
      %v2214 = vmul.f32 %v2208, %v2036
      %v2221 = vrot.slane %v2209, 6
      %v2222 = vrot.slane %v2210, 6
      %v2223 = vsel %vm416, %v2221, %v2222
      %v2224 = vrot.slane %v2211, 6
      %v2225 = vsel %vm416, %v2222, %v2224
      %v2226 = vrot.slane %v2212, 6
      %v2227 = vrot.slane %v2213, 6
      %v2228 = vsel %vm416, %v2226, %v2227
      %v2229 = vrot.slane %v2214, 6
      %v2230 = vsel %vm416, %v2227, %v2229
      %v2235 = vadd.f32 %v2203, %v2223
      %v2236 = vadd.f32 %v2204, %v2225
      %v2237 = vadd.f32 %v2205, %v2228
      %v2238 = vadd.f32 %v2206, %v2230
      %s2239 = sld [smem:[#allocation5 + $0x32]]
      %v2240 = vstv %s2239
      %v2241 = vmul.f32 %v2240, %v2031
      %v2242 = vmul.f32 %v2240, %v2032
      %v2243 = vmul.f32 %v2240, %v2034
      %v2244 = vmul.f32 %v2240, %v2035
      %2249 = vrot.lane.b32.xlu0 %v2241, 127
      %v2250 = vpop.permute.xlu0 %2249
      %2251 = vrot.lane.b32.xlu0 %v2242, 127
      %v2252 = vpop.permute.xlu0 %2251
      %2253 = vrot.lane.b32.xlu0 %v2243, 127
      %v2254 = vpop.permute.xlu0 %2253
      %2255 = vrot.lane.b32.xlu0 %v2244, 127
      %v2256 = vpop.permute.xlu0 %2255
      %v2261 = vadd.f32 %v2235, %v2250
      %v2262 = vadd.f32 %v2236, %v2252
      %v2263 = vadd.f32 %v2237, %v2254
      %v2264 = vadd.f32 %v2238, %v2256
      %s2265 = sld [smem:[#allocation5 + $0x39]]
      %v2266 = vstv %s2265
      %v2267 = vmul.f32 %v2266, %v2031
      %v2268 = vmul.f32 %v2266, %v2032
      %v2269 = vmul.f32 %v2266, %v2033
      %v2270 = vmul.f32 %v2266, %v2034
      %v2271 = vmul.f32 %v2266, %v2035
      %v2272 = vmul.f32 %v2266, %v2036
      %v2279 = vrot.slane %v2267, 1
      %v2280 = vrot.slane %v2268, 1
      %v2281 = vsel %vm251, %v2279, %v2280
      %v2282 = vrot.slane %v2269, 1
      %v2283 = vsel %vm251, %v2280, %v2282
      %v2284 = vrot.slane %v2270, 1
      %v2285 = vrot.slane %v2271, 1
      %v2286 = vsel %vm251, %v2284, %v2285
      %v2287 = vrot.slane %v2272, 1
      %v2288 = vsel %vm251, %v2285, %v2287
      %2289 = vrot.lane.b32.xlu0 %v2281, 127
      %v2290 = vpop.permute.xlu0 %2289
      %2291 = vrot.lane.b32.xlu0 %v2283, 127
      %v2292 = vpop.permute.xlu0 %2291
      %2293 = vrot.lane.b32.xlu0 %v2286, 127
      %v2294 = vpop.permute.xlu0 %2293
      %2295 = vrot.lane.b32.xlu0 %v2288, 127
      %v2296 = vpop.permute.xlu0 %2295
      %v2301 = vadd.f32 %v2261, %v2290
      %v2302 = vadd.f32 %v2262, %v2292
      %v2303 = vadd.f32 %v2263, %v2294
      %v2304 = vadd.f32 %v2264, %v2296
      %s2305 = sld [smem:[#allocation5 + $0x40]]
      %v2306 = vstv %s2305
      %v2307 = vmul.f32 %v2306, %v2031
      %v2308 = vmul.f32 %v2306, %v2032
      %v2309 = vmul.f32 %v2306, %v2033
      %v2310 = vmul.f32 %v2306, %v2034
      %v2311 = vmul.f32 %v2306, %v2035
      %v2312 = vmul.f32 %v2306, %v2036
      %v2319 = vrot.slane %v2307, 2
      %v2320 = vrot.slane %v2308, 2
      %v2321 = vsel %vm284, %v2319, %v2320
      %v2322 = vrot.slane %v2309, 2
      %v2323 = vsel %vm284, %v2320, %v2322
      %v2324 = vrot.slane %v2310, 2
      %v2325 = vrot.slane %v2311, 2
      %v2326 = vsel %vm284, %v2324, %v2325
      %v2327 = vrot.slane %v2312, 2
      %v2328 = vsel %vm284, %v2325, %v2327
      %2329 = vrot.lane.b32.xlu0 %v2321, 127
      %v2330 = vpop.permute.xlu0 %2329
      %2331 = vrot.lane.b32.xlu0 %v2323, 127
      %v2332 = vpop.permute.xlu0 %2331
      %2333 = vrot.lane.b32.xlu0 %v2326, 127
      %v2334 = vpop.permute.xlu0 %2333
      %2335 = vrot.lane.b32.xlu0 %v2328, 127
      %v2336 = vpop.permute.xlu0 %2335
      %v2341 = vadd.f32 %v2301, %v2330
      %v2342 = vadd.f32 %v2302, %v2332
      %v2343 = vadd.f32 %v2303, %v2334
      %v2344 = vadd.f32 %v2304, %v2336
      %s2345 = sld [smem:[#allocation5 + $0x47]]
      %v2346 = vstv %s2345
      %v2347 = vmul.f32 %v2346, %v2031
      %v2348 = vmul.f32 %v2346, %v2032
      %v2349 = vmul.f32 %v2346, %v2033
      %v2350 = vmul.f32 %v2346, %v2034
      %v2351 = vmul.f32 %v2346, %v2035
      %v2352 = vmul.f32 %v2346, %v2036
      %v2359 = vrot.slane %v2347, 3
      %v2360 = vrot.slane %v2348, 3
      %v2361 = vsel %vm317, %v2359, %v2360
      %v2362 = vrot.slane %v2349, 3
      %v2363 = vsel %vm317, %v2360, %v2362
      %v2364 = vrot.slane %v2350, 3
      %v2365 = vrot.slane %v2351, 3
      %v2366 = vsel %vm317, %v2364, %v2365
      %v2367 = vrot.slane %v2352, 3
      %v2368 = vsel %vm317, %v2365, %v2367
      %2369 = vrot.lane.b32.xlu0 %v2361, 127
      %v2370 = vpop.permute.xlu0 %2369
      %2371 = vrot.lane.b32.xlu0 %v2363, 127
      %v2372 = vpop.permute.xlu0 %2371
      %2373 = vrot.lane.b32.xlu0 %v2366, 127
      %v2374 = vpop.permute.xlu0 %2373
      %2375 = vrot.lane.b32.xlu0 %v2368, 127
      %v2376 = vpop.permute.xlu0 %2375
      %v2381 = vadd.f32 %v2341, %v2370
      %v2382 = vadd.f32 %v2342, %v2372
      %v2383 = vadd.f32 %v2343, %v2374
      %v2384 = vadd.f32 %v2344, %v2376
      %s2385 = sld [smem:[#allocation5 + $0x4e]]
      %v2386 = vstv %s2385
      %v2387 = vmul.f32 %v2386, %v2031
      %v2388 = vmul.f32 %v2386, %v2032
      %v2389 = vmul.f32 %v2386, %v2033
      %v2390 = vmul.f32 %v2386, %v2034
      %v2391 = vmul.f32 %v2386, %v2035
      %v2392 = vmul.f32 %v2386, %v2036
      %v2399 = vrot.slane %v2387, 4
      %v2400 = vrot.slane %v2388, 4
      %v2401 = vsel %vm350, %v2399, %v2400
      %v2402 = vrot.slane %v2389, 4
      %v2403 = vsel %vm350, %v2400, %v2402
      %v2404 = vrot.slane %v2390, 4
      %v2405 = vrot.slane %v2391, 4
      %v2406 = vsel %vm350, %v2404, %v2405
      %v2407 = vrot.slane %v2392, 4
      %v2408 = vsel %vm350, %v2405, %v2407
      %2409 = vrot.lane.b32.xlu0 %v2401, 127
      %v2410 = vpop.permute.xlu0 %2409
      %2411 = vrot.lane.b32.xlu0 %v2403, 127
      %v2412 = vpop.permute.xlu0 %2411
      %2413 = vrot.lane.b32.xlu0 %v2406, 127
      %v2414 = vpop.permute.xlu0 %2413
      %2415 = vrot.lane.b32.xlu0 %v2408, 127
      %v2416 = vpop.permute.xlu0 %2415
      %v2421 = vadd.f32 %v2381, %v2410
      %v2422 = vadd.f32 %v2382, %v2412
      %v2423 = vadd.f32 %v2383, %v2414
      %v2424 = vadd.f32 %v2384, %v2416
      %s2425 = sld [smem:[#allocation5 + $0x55]]
      %v2426 = vstv %s2425
      %v2427 = vmul.f32 %v2426, %v2031
      %v2428 = vmul.f32 %v2426, %v2032
      %v2429 = vmul.f32 %v2426, %v2033
      %v2430 = vmul.f32 %v2426, %v2034
      %v2431 = vmul.f32 %v2426, %v2035
      %v2432 = vmul.f32 %v2426, %v2036
      %v2439 = vrot.slane %v2427, 5
      %v2440 = vrot.slane %v2428, 5
      %v2441 = vsel %vm383, %v2439, %v2440
      %v2442 = vrot.slane %v2429, 5
      %v2443 = vsel %vm383, %v2440, %v2442
      %v2444 = vrot.slane %v2430, 5
      %v2445 = vrot.slane %v2431, 5
      %v2446 = vsel %vm383, %v2444, %v2445
      %v2447 = vrot.slane %v2432, 5
      %v2448 = vsel %vm383, %v2445, %v2447
      %2449 = vrot.lane.b32.xlu0 %v2441, 127
      %v2450 = vpop.permute.xlu0 %2449
      %2451 = vrot.lane.b32.xlu0 %v2443, 127
      %v2452 = vpop.permute.xlu0 %2451
      %2453 = vrot.lane.b32.xlu0 %v2446, 127
      %v2454 = vpop.permute.xlu0 %2453
      %2455 = vrot.lane.b32.xlu0 %v2448, 127
      %v2456 = vpop.permute.xlu0 %2455
      %v2461 = vadd.f32 %v2421, %v2450
      %v2462 = vadd.f32 %v2422, %v2452
      %v2463 = vadd.f32 %v2423, %v2454
      %v2464 = vadd.f32 %v2424, %v2456
      %s2465 = sld [smem:[#allocation5 + $0x5c]]
      %v2466 = vstv %s2465
      %v2467 = vmul.f32 %v2466, %v2031
      %v2468 = vmul.f32 %v2466, %v2032
      %v2469 = vmul.f32 %v2466, %v2033
      %v2470 = vmul.f32 %v2466, %v2034
      %v2471 = vmul.f32 %v2466, %v2035
      %v2472 = vmul.f32 %v2466, %v2036
      %v2479 = vrot.slane %v2467, 6
      %v2480 = vrot.slane %v2468, 6
      %v2481 = vsel %vm416, %v2479, %v2480
      %v2482 = vrot.slane %v2469, 6
      %v2483 = vsel %vm416, %v2480, %v2482
      %v2484 = vrot.slane %v2470, 6
      %v2485 = vrot.slane %v2471, 6
      %v2486 = vsel %vm416, %v2484, %v2485
      %v2487 = vrot.slane %v2472, 6
      %v2488 = vsel %vm416, %v2485, %v2487
      %2489 = vrot.lane.b32.xlu0 %v2481, 127
      %v2490 = vpop.permute.xlu0 %2489
      %2491 = vrot.lane.b32.xlu0 %v2483, 127
      %v2492 = vpop.permute.xlu0 %2491
      %2493 = vrot.lane.b32.xlu0 %v2486, 127
      %v2494 = vpop.permute.xlu0 %2493
      %2495 = vrot.lane.b32.xlu0 %v2488, 127
      %v2496 = vpop.permute.xlu0 %2495
      %v2501 = vadd.f32 %v2461, %v2490
      %v2502 = vadd.f32 %v2462, %v2492
      %v2503 = vadd.f32 %v2463, %v2494
      %v2504 = vadd.f32 %v2464, %v2496
      %s2505 = sld [smem:[#allocation5 + $0x33]]
      %v2506 = vstv %s2505
      %v2507 = vmul.f32 %v2506, %v2031
      %v2508 = vmul.f32 %v2506, %v2032
      %v2509 = vmul.f32 %v2506, %v2034
      %v2510 = vmul.f32 %v2506, %v2035
      %2515 = vrot.lane.b32.xlu0 %v2507, 126
      %v2516 = vpop.permute.xlu0 %2515
      %2517 = vrot.lane.b32.xlu0 %v2508, 126
      %v2518 = vpop.permute.xlu0 %2517
      %2519 = vrot.lane.b32.xlu0 %v2509, 126
      %v2520 = vpop.permute.xlu0 %2519
      %2521 = vrot.lane.b32.xlu0 %v2510, 126
      %v2522 = vpop.permute.xlu0 %2521
      %v2527 = vadd.f32 %v2501, %v2516
      %v2528 = vadd.f32 %v2502, %v2518
      %v2529 = vadd.f32 %v2503, %v2520
      %v2530 = vadd.f32 %v2504, %v2522
      %s2531 = sld [smem:[#allocation5 + $0x3a]]
      %v2532 = vstv %s2531
      %v2533 = vmul.f32 %v2532, %v2031
      %v2534 = vmul.f32 %v2532, %v2032
      %v2535 = vmul.f32 %v2532, %v2033
      %v2536 = vmul.f32 %v2532, %v2034
      %v2537 = vmul.f32 %v2532, %v2035
      %v2538 = vmul.f32 %v2532, %v2036
      %v2545 = vrot.slane %v2533, 1
      %v2546 = vrot.slane %v2534, 1
      %v2547 = vsel %vm251, %v2545, %v2546
      %v2548 = vrot.slane %v2535, 1
      %v2549 = vsel %vm251, %v2546, %v2548
      %v2550 = vrot.slane %v2536, 1
      %v2551 = vrot.slane %v2537, 1
      %v2552 = vsel %vm251, %v2550, %v2551
      %v2553 = vrot.slane %v2538, 1
      %v2554 = vsel %vm251, %v2551, %v2553
      %2555 = vrot.lane.b32.xlu0 %v2547, 126
      %v2556 = vpop.permute.xlu0 %2555
      %2557 = vrot.lane.b32.xlu0 %v2549, 126
      %v2558 = vpop.permute.xlu0 %2557
      %2559 = vrot.lane.b32.xlu0 %v2552, 126
      %v2560 = vpop.permute.xlu0 %2559
      %2561 = vrot.lane.b32.xlu0 %v2554, 126
      %v2562 = vpop.permute.xlu0 %2561
      %v2567 = vadd.f32 %v2527, %v2556
      %v2568 = vadd.f32 %v2528, %v2558
      %v2569 = vadd.f32 %v2529, %v2560
      %v2570 = vadd.f32 %v2530, %v2562
      %s2571 = sld [smem:[#allocation5 + $0x41]]
      %v2572 = vstv %s2571
      %v2573 = vmul.f32 %v2572, %v2031
      %v2574 = vmul.f32 %v2572, %v2032
      %v2575 = vmul.f32 %v2572, %v2033
      %v2576 = vmul.f32 %v2572, %v2034
      %v2577 = vmul.f32 %v2572, %v2035
      %v2578 = vmul.f32 %v2572, %v2036
      %v2585 = vrot.slane %v2573, 2
      %v2586 = vrot.slane %v2574, 2
      %v2587 = vsel %vm284, %v2585, %v2586
      %v2588 = vrot.slane %v2575, 2
      %v2589 = vsel %vm284, %v2586, %v2588
      %v2590 = vrot.slane %v2576, 2
      %v2591 = vrot.slane %v2577, 2
      %v2592 = vsel %vm284, %v2590, %v2591
      %v2593 = vrot.slane %v2578, 2
      %v2594 = vsel %vm284, %v2591, %v2593
      %2595 = vrot.lane.b32.xlu0 %v2587, 126
      %v2596 = vpop.permute.xlu0 %2595
      %2597 = vrot.lane.b32.xlu0 %v2589, 126
      %v2598 = vpop.permute.xlu0 %2597
      %2599 = vrot.lane.b32.xlu0 %v2592, 126
      %v2600 = vpop.permute.xlu0 %2599
      %2601 = vrot.lane.b32.xlu0 %v2594, 126
      %v2602 = vpop.permute.xlu0 %2601
      %v2607 = vadd.f32 %v2567, %v2596
      %v2608 = vadd.f32 %v2568, %v2598
      %v2609 = vadd.f32 %v2569, %v2600
      %v2610 = vadd.f32 %v2570, %v2602
      %s2611 = sld [smem:[#allocation5 + $0x48]]
      %v2612 = vstv %s2611
      %v2613 = vmul.f32 %v2612, %v2031
      %v2614 = vmul.f32 %v2612, %v2032
      %v2615 = vmul.f32 %v2612, %v2033
      %v2616 = vmul.f32 %v2612, %v2034
      %v2617 = vmul.f32 %v2612, %v2035
      %v2618 = vmul.f32 %v2612, %v2036
      %v2625 = vrot.slane %v2613, 3
      %v2626 = vrot.slane %v2614, 3
      %v2627 = vsel %vm317, %v2625, %v2626
      %v2628 = vrot.slane %v2615, 3
      %v2629 = vsel %vm317, %v2626, %v2628
      %v2630 = vrot.slane %v2616, 3
      %v2631 = vrot.slane %v2617, 3
      %v2632 = vsel %vm317, %v2630, %v2631
      %v2633 = vrot.slane %v2618, 3
      %v2634 = vsel %vm317, %v2631, %v2633
      %2635 = vrot.lane.b32.xlu0 %v2627, 126
      %v2636 = vpop.permute.xlu0 %2635
      %2637 = vrot.lane.b32.xlu0 %v2629, 126
      %v2638 = vpop.permute.xlu0 %2637
      %2639 = vrot.lane.b32.xlu0 %v2632, 126
      %v2640 = vpop.permute.xlu0 %2639
      %2641 = vrot.lane.b32.xlu0 %v2634, 126
      %v2642 = vpop.permute.xlu0 %2641
      %v2647 = vadd.f32 %v2607, %v2636
      %v2648 = vadd.f32 %v2608, %v2638
      %v2649 = vadd.f32 %v2609, %v2640
      %v2650 = vadd.f32 %v2610, %v2642
      %s2651 = sld [smem:[#allocation5 + $0x4f]]
      %v2652 = vstv %s2651
      %v2653 = vmul.f32 %v2652, %v2031
      %v2654 = vmul.f32 %v2652, %v2032
      %v2655 = vmul.f32 %v2652, %v2033
      %v2656 = vmul.f32 %v2652, %v2034
      %v2657 = vmul.f32 %v2652, %v2035
      %v2658 = vmul.f32 %v2652, %v2036
      %v2665 = vrot.slane %v2653, 4
      %v2666 = vrot.slane %v2654, 4
      %v2667 = vsel %vm350, %v2665, %v2666
      %v2668 = vrot.slane %v2655, 4
      %v2669 = vsel %vm350, %v2666, %v2668
      %v2670 = vrot.slane %v2656, 4
      %v2671 = vrot.slane %v2657, 4
      %v2672 = vsel %vm350, %v2670, %v2671
      %v2673 = vrot.slane %v2658, 4
      %v2674 = vsel %vm350, %v2671, %v2673
      %2675 = vrot.lane.b32.xlu0 %v2667, 126
      %v2676 = vpop.permute.xlu0 %2675
      %2677 = vrot.lane.b32.xlu0 %v2669, 126
      %v2678 = vpop.permute.xlu0 %2677
      %2679 = vrot.lane.b32.xlu0 %v2672, 126
      %v2680 = vpop.permute.xlu0 %2679
      %2681 = vrot.lane.b32.xlu0 %v2674, 126
      %v2682 = vpop.permute.xlu0 %2681
      %v2687 = vadd.f32 %v2647, %v2676
      %v2688 = vadd.f32 %v2648, %v2678
      %v2689 = vadd.f32 %v2649, %v2680
      %v2690 = vadd.f32 %v2650, %v2682
      %s2691 = sld [smem:[#allocation5 + $0x56]]
      %v2692 = vstv %s2691
      %v2693 = vmul.f32 %v2692, %v2031
      %v2694 = vmul.f32 %v2692, %v2032
      %v2695 = vmul.f32 %v2692, %v2033
      %v2696 = vmul.f32 %v2692, %v2034
      %v2697 = vmul.f32 %v2692, %v2035
      %v2698 = vmul.f32 %v2692, %v2036
      %v2705 = vrot.slane %v2693, 5
      %v2706 = vrot.slane %v2694, 5
      %v2707 = vsel %vm383, %v2705, %v2706
      %v2708 = vrot.slane %v2695, 5
      %v2709 = vsel %vm383, %v2706, %v2708
      %v2710 = vrot.slane %v2696, 5
      %v2711 = vrot.slane %v2697, 5
      %v2712 = vsel %vm383, %v2710, %v2711
      %v2713 = vrot.slane %v2698, 5
      %v2714 = vsel %vm383, %v2711, %v2713
      %2715 = vrot.lane.b32.xlu0 %v2707, 126
      %v2716 = vpop.permute.xlu0 %2715
      %2717 = vrot.lane.b32.xlu0 %v2709, 126
      %v2718 = vpop.permute.xlu0 %2717
      %2719 = vrot.lane.b32.xlu0 %v2712, 126
      %v2720 = vpop.permute.xlu0 %2719
      %2721 = vrot.lane.b32.xlu0 %v2714, 126
      %v2722 = vpop.permute.xlu0 %2721
      %v2727 = vadd.f32 %v2687, %v2716
      %v2728 = vadd.f32 %v2688, %v2718
      %v2729 = vadd.f32 %v2689, %v2720
      %v2730 = vadd.f32 %v2690, %v2722
      %s2731 = sld [smem:[#allocation5 + $0x5d]]
      %v2732 = vstv %s2731
      %v2733 = vmul.f32 %v2732, %v2031
      %v2734 = vmul.f32 %v2732, %v2032
      %v2735 = vmul.f32 %v2732, %v2033
      %v2736 = vmul.f32 %v2732, %v2034
      %v2737 = vmul.f32 %v2732, %v2035
      %v2738 = vmul.f32 %v2732, %v2036
      %v2745 = vrot.slane %v2733, 6
      %v2746 = vrot.slane %v2734, 6
      %v2747 = vsel %vm416, %v2745, %v2746
      %v2748 = vrot.slane %v2735, 6
      %v2749 = vsel %vm416, %v2746, %v2748
      %v2750 = vrot.slane %v2736, 6
      %v2751 = vrot.slane %v2737, 6
      %v2752 = vsel %vm416, %v2750, %v2751
      %v2753 = vrot.slane %v2738, 6
      %v2754 = vsel %vm416, %v2751, %v2753
      %2755 = vrot.lane.b32.xlu0 %v2747, 126
      %v2756 = vpop.permute.xlu0 %2755
      %2757 = vrot.lane.b32.xlu0 %v2749, 126
      %v2758 = vpop.permute.xlu0 %2757
      %2759 = vrot.lane.b32.xlu0 %v2752, 126
      %v2760 = vpop.permute.xlu0 %2759
      %2761 = vrot.lane.b32.xlu0 %v2754, 126
      %v2762 = vpop.permute.xlu0 %2761
      %v2767 = vadd.f32 %v2727, %v2756
      %v2768 = vadd.f32 %v2728, %v2758
      %v2769 = vadd.f32 %v2729, %v2760
      %v2770 = vadd.f32 %v2730, %v2762
      %s2771 = sld [smem:[#allocation5 + $0x34]]
      %v2772 = vstv %s2771
      %v2773 = vmul.f32 %v2772, %v2031
      %v2774 = vmul.f32 %v2772, %v2032
      %v2775 = vmul.f32 %v2772, %v2034
      %v2776 = vmul.f32 %v2772, %v2035
      %2781 = vrot.lane.b32.xlu0 %v2773, 125
      %v2782 = vpop.permute.xlu0 %2781
      %2783 = vrot.lane.b32.xlu0 %v2774, 125
      %v2784 = vpop.permute.xlu0 %2783
      %2785 = vrot.lane.b32.xlu0 %v2775, 125
      %v2786 = vpop.permute.xlu0 %2785
      %2787 = vrot.lane.b32.xlu0 %v2776, 125
      %v2788 = vpop.permute.xlu0 %2787
      %v2793 = vadd.f32 %v2767, %v2782
      %v2794 = vadd.f32 %v2768, %v2784
      %v2795 = vadd.f32 %v2769, %v2786
      %v2796 = vadd.f32 %v2770, %v2788
      %s2797 = sld [smem:[#allocation5 + $0x3b]]
      %v2798 = vstv %s2797
      %v2799 = vmul.f32 %v2798, %v2031
      %v2800 = vmul.f32 %v2798, %v2032
      %v2801 = vmul.f32 %v2798, %v2033
      %v2802 = vmul.f32 %v2798, %v2034
      %v2803 = vmul.f32 %v2798, %v2035
      %v2804 = vmul.f32 %v2798, %v2036
      %v2811 = vrot.slane %v2799, 1
      %v2812 = vrot.slane %v2800, 1
      %v2813 = vsel %vm251, %v2811, %v2812
      %v2814 = vrot.slane %v2801, 1
      %v2815 = vsel %vm251, %v2812, %v2814
      %v2816 = vrot.slane %v2802, 1
      %v2817 = vrot.slane %v2803, 1
      %v2818 = vsel %vm251, %v2816, %v2817
      %v2819 = vrot.slane %v2804, 1
      %v2820 = vsel %vm251, %v2817, %v2819
      %2821 = vrot.lane.b32.xlu0 %v2813, 125
      %v2822 = vpop.permute.xlu0 %2821
      %2823 = vrot.lane.b32.xlu0 %v2815, 125
      %v2824 = vpop.permute.xlu0 %2823
      %2825 = vrot.lane.b32.xlu0 %v2818, 125
      %v2826 = vpop.permute.xlu0 %2825
      %2827 = vrot.lane.b32.xlu0 %v2820, 125
      %v2828 = vpop.permute.xlu0 %2827
      %v2833 = vadd.f32 %v2793, %v2822
      %v2834 = vadd.f32 %v2794, %v2824
      %v2835 = vadd.f32 %v2795, %v2826
      %v2836 = vadd.f32 %v2796, %v2828
      %s2837 = sld [smem:[#allocation5 + $0x42]]
      %v2838 = vstv %s2837
      %v2839 = vmul.f32 %v2838, %v2031
      %v2840 = vmul.f32 %v2838, %v2032
      %v2841 = vmul.f32 %v2838, %v2033
      %v2842 = vmul.f32 %v2838, %v2034
      %v2843 = vmul.f32 %v2838, %v2035
      %v2844 = vmul.f32 %v2838, %v2036
      %v2851 = vrot.slane %v2839, 2
      %v2852 = vrot.slane %v2840, 2
      %v2853 = vsel %vm284, %v2851, %v2852
      %v2854 = vrot.slane %v2841, 2
      %v2855 = vsel %vm284, %v2852, %v2854
      %v2856 = vrot.slane %v2842, 2
      %v2857 = vrot.slane %v2843, 2
      %v2858 = vsel %vm284, %v2856, %v2857
      %v2859 = vrot.slane %v2844, 2
      %v2860 = vsel %vm284, %v2857, %v2859
      %2861 = vrot.lane.b32.xlu0 %v2853, 125
      %v2862 = vpop.permute.xlu0 %2861
      %2863 = vrot.lane.b32.xlu0 %v2855, 125
      %v2864 = vpop.permute.xlu0 %2863
      %2865 = vrot.lane.b32.xlu0 %v2858, 125
      %v2866 = vpop.permute.xlu0 %2865
      %2867 = vrot.lane.b32.xlu0 %v2860, 125
      %v2868 = vpop.permute.xlu0 %2867
      %v2873 = vadd.f32 %v2833, %v2862
      %v2874 = vadd.f32 %v2834, %v2864
      %v2875 = vadd.f32 %v2835, %v2866
      %v2876 = vadd.f32 %v2836, %v2868
      %s2877 = sld [smem:[#allocation5 + $0x49]]
      %v2878 = vstv %s2877
      %v2879 = vmul.f32 %v2878, %v2031
      %v2880 = vmul.f32 %v2878, %v2032
      %v2881 = vmul.f32 %v2878, %v2033
      %v2882 = vmul.f32 %v2878, %v2034
      %v2883 = vmul.f32 %v2878, %v2035
      %v2884 = vmul.f32 %v2878, %v2036
      %v2891 = vrot.slane %v2879, 3
      %v2892 = vrot.slane %v2880, 3
      %v2893 = vsel %vm317, %v2891, %v2892
      %v2894 = vrot.slane %v2881, 3
      %v2895 = vsel %vm317, %v2892, %v2894
      %v2896 = vrot.slane %v2882, 3
      %v2897 = vrot.slane %v2883, 3
      %v2898 = vsel %vm317, %v2896, %v2897
      %v2899 = vrot.slane %v2884, 3
      %v2900 = vsel %vm317, %v2897, %v2899
      %2901 = vrot.lane.b32.xlu0 %v2893, 125
      %v2902 = vpop.permute.xlu0 %2901
      %2903 = vrot.lane.b32.xlu0 %v2895, 125
      %v2904 = vpop.permute.xlu0 %2903
      %2905 = vrot.lane.b32.xlu0 %v2898, 125
      %v2906 = vpop.permute.xlu0 %2905
      %2907 = vrot.lane.b32.xlu0 %v2900, 125
      %v2908 = vpop.permute.xlu0 %2907
      %v2913 = vadd.f32 %v2873, %v2902
      %v2914 = vadd.f32 %v2874, %v2904
      %v2915 = vadd.f32 %v2875, %v2906
      %v2916 = vadd.f32 %v2876, %v2908
      %s2917 = sld [smem:[#allocation5 + $0x50]]
      %v2918 = vstv %s2917
      %v2919 = vmul.f32 %v2918, %v2031
      %v2920 = vmul.f32 %v2918, %v2032
      %v2921 = vmul.f32 %v2918, %v2033
      %v2922 = vmul.f32 %v2918, %v2034
      %v2923 = vmul.f32 %v2918, %v2035
      %v2924 = vmul.f32 %v2918, %v2036
      %v2931 = vrot.slane %v2919, 4
      %v2932 = vrot.slane %v2920, 4
      %v2933 = vsel %vm350, %v2931, %v2932
      %v2934 = vrot.slane %v2921, 4
      %v2935 = vsel %vm350, %v2932, %v2934
      %v2936 = vrot.slane %v2922, 4
      %v2937 = vrot.slane %v2923, 4
      %v2938 = vsel %vm350, %v2936, %v2937
      %v2939 = vrot.slane %v2924, 4
      %v2940 = vsel %vm350, %v2937, %v2939
      %2941 = vrot.lane.b32.xlu0 %v2933, 125
      %v2942 = vpop.permute.xlu0 %2941
      %2943 = vrot.lane.b32.xlu0 %v2935, 125
      %v2944 = vpop.permute.xlu0 %2943
      %2945 = vrot.lane.b32.xlu0 %v2938, 125
      %v2946 = vpop.permute.xlu0 %2945
      %2947 = vrot.lane.b32.xlu0 %v2940, 125
      %v2948 = vpop.permute.xlu0 %2947
      %v2953 = vadd.f32 %v2913, %v2942
      %v2954 = vadd.f32 %v2914, %v2944
      %v2955 = vadd.f32 %v2915, %v2946
      %v2956 = vadd.f32 %v2916, %v2948
      %s2957 = sld [smem:[#allocation5 + $0x57]]
      %v2958 = vstv %s2957
      %v2959 = vmul.f32 %v2958, %v2031
      %v2960 = vmul.f32 %v2958, %v2032
      %v2961 = vmul.f32 %v2958, %v2033
      %v2962 = vmul.f32 %v2958, %v2034
      %v2963 = vmul.f32 %v2958, %v2035
      %v2964 = vmul.f32 %v2958, %v2036
      %v2971 = vrot.slane %v2959, 5
      %v2972 = vrot.slane %v2960, 5
      %v2973 = vsel %vm383, %v2971, %v2972
      %v2974 = vrot.slane %v2961, 5
      %v2975 = vsel %vm383, %v2972, %v2974
      %v2976 = vrot.slane %v2962, 5
      %v2977 = vrot.slane %v2963, 5
      %v2978 = vsel %vm383, %v2976, %v2977
      %v2979 = vrot.slane %v2964, 5
      %v2980 = vsel %vm383, %v2977, %v2979
      %2981 = vrot.lane.b32.xlu0 %v2973, 125
      %v2982 = vpop.permute.xlu0 %2981
      %2983 = vrot.lane.b32.xlu0 %v2975, 125
      %v2984 = vpop.permute.xlu0 %2983
      %2985 = vrot.lane.b32.xlu0 %v2978, 125
      %v2986 = vpop.permute.xlu0 %2985
      %2987 = vrot.lane.b32.xlu0 %v2980, 125
      %v2988 = vpop.permute.xlu0 %2987
      %v2993 = vadd.f32 %v2953, %v2982
      %v2994 = vadd.f32 %v2954, %v2984
      %v2995 = vadd.f32 %v2955, %v2986
      %v2996 = vadd.f32 %v2956, %v2988
      %s2997 = sld [smem:[#allocation5 + $0x5e]]
      %v2998 = vstv %s2997
      %v2999 = vmul.f32 %v2998, %v2031
      %v3000 = vmul.f32 %v2998, %v2032
      %v3001 = vmul.f32 %v2998, %v2033
      %v3002 = vmul.f32 %v2998, %v2034
      %v3003 = vmul.f32 %v2998, %v2035
      %v3004 = vmul.f32 %v2998, %v2036
      %v3011 = vrot.slane %v2999, 6
      %v3012 = vrot.slane %v3000, 6
      %v3013 = vsel %vm416, %v3011, %v3012
      %v3014 = vrot.slane %v3001, 6
      %v3015 = vsel %vm416, %v3012, %v3014
      %v3016 = vrot.slane %v3002, 6
      %v3017 = vrot.slane %v3003, 6
      %v3018 = vsel %vm416, %v3016, %v3017
      %v3019 = vrot.slane %v3004, 6
      %v3020 = vsel %vm416, %v3017, %v3019
      %3021 = vrot.lane.b32.xlu0 %v3013, 125
      %v3022 = vpop.permute.xlu0 %3021
      %3023 = vrot.lane.b32.xlu0 %v3015, 125
      %v3024 = vpop.permute.xlu0 %3023
      %3025 = vrot.lane.b32.xlu0 %v3018, 125
      %v3026 = vpop.permute.xlu0 %3025
      %3027 = vrot.lane.b32.xlu0 %v3020, 125
      %v3028 = vpop.permute.xlu0 %3027
      %v3033 = vadd.f32 %v2993, %v3022
      %v3034 = vadd.f32 %v2994, %v3024
      %v3035 = vadd.f32 %v2995, %v3026
      %v3036 = vadd.f32 %v2996, %v3028
      %s3037 = sld [smem:[#allocation5 + $0x35]]
      %v3038 = vstv %s3037
      %v3039 = vmul.f32 %v3038, %v2031
      %v3040 = vmul.f32 %v3038, %v2032
      %v3041 = vmul.f32 %v3038, %v2034
      %v3042 = vmul.f32 %v3038, %v2035
      %3047 = vrot.lane.b32.xlu0 %v3039, 124
      %v3048 = vpop.permute.xlu0 %3047
      %3049 = vrot.lane.b32.xlu0 %v3040, 124
      %v3050 = vpop.permute.xlu0 %3049
      %3051 = vrot.lane.b32.xlu0 %v3041, 124
      %v3052 = vpop.permute.xlu0 %3051
      %3053 = vrot.lane.b32.xlu0 %v3042, 124
      %v3054 = vpop.permute.xlu0 %3053
      %v3059 = vadd.f32 %v3033, %v3048
      %v3060 = vadd.f32 %v3034, %v3050
      %v3061 = vadd.f32 %v3035, %v3052
      %v3062 = vadd.f32 %v3036, %v3054
      %s3063 = sld [smem:[#allocation5 + $0x3c]]
      %v3064 = vstv %s3063
      %v3065 = vmul.f32 %v3064, %v2031
      %v3066 = vmul.f32 %v3064, %v2032
      %v3067 = vmul.f32 %v3064, %v2033
      %v3068 = vmul.f32 %v3064, %v2034
      %v3069 = vmul.f32 %v3064, %v2035
      %v3070 = vmul.f32 %v3064, %v2036
      %v3077 = vrot.slane %v3065, 1
      %v3078 = vrot.slane %v3066, 1
      %v3079 = vsel %vm251, %v3077, %v3078
      %v3080 = vrot.slane %v3067, 1
      %v3081 = vsel %vm251, %v3078, %v3080
      %v3082 = vrot.slane %v3068, 1
      %v3083 = vrot.slane %v3069, 1
      %v3084 = vsel %vm251, %v3082, %v3083
      %v3085 = vrot.slane %v3070, 1
      %v3086 = vsel %vm251, %v3083, %v3085
      %3087 = vrot.lane.b32.xlu0 %v3079, 124
      %v3088 = vpop.permute.xlu0 %3087
      %3089 = vrot.lane.b32.xlu0 %v3081, 124
      %v3090 = vpop.permute.xlu0 %3089
      %3091 = vrot.lane.b32.xlu0 %v3084, 124
      %v3092 = vpop.permute.xlu0 %3091
      %3093 = vrot.lane.b32.xlu0 %v3086, 124
      %v3094 = vpop.permute.xlu0 %3093
      %v3099 = vadd.f32 %v3059, %v3088
      %v3100 = vadd.f32 %v3060, %v3090
      %v3101 = vadd.f32 %v3061, %v3092
      %v3102 = vadd.f32 %v3062, %v3094
      %s3103 = sld [smem:[#allocation5 + $0x43]]
      %v3104 = vstv %s3103
      %v3105 = vmul.f32 %v3104, %v2031
      %v3106 = vmul.f32 %v3104, %v2032
      %v3107 = vmul.f32 %v3104, %v2033
      %v3108 = vmul.f32 %v3104, %v2034
      %v3109 = vmul.f32 %v3104, %v2035
      %v3110 = vmul.f32 %v3104, %v2036
      %v3117 = vrot.slane %v3105, 2
      %v3118 = vrot.slane %v3106, 2
      %v3119 = vsel %vm284, %v3117, %v3118
      %v3120 = vrot.slane %v3107, 2
      %v3121 = vsel %vm284, %v3118, %v3120
      %v3122 = vrot.slane %v3108, 2
      %v3123 = vrot.slane %v3109, 2
      %v3124 = vsel %vm284, %v3122, %v3123
      %v3125 = vrot.slane %v3110, 2
      %v3126 = vsel %vm284, %v3123, %v3125
      %3127 = vrot.lane.b32.xlu0 %v3119, 124
      %v3128 = vpop.permute.xlu0 %3127
      %3129 = vrot.lane.b32.xlu0 %v3121, 124
      %v3130 = vpop.permute.xlu0 %3129
      %3131 = vrot.lane.b32.xlu0 %v3124, 124
      %v3132 = vpop.permute.xlu0 %3131
      %3133 = vrot.lane.b32.xlu0 %v3126, 124
      %v3134 = vpop.permute.xlu0 %3133
      %v3139 = vadd.f32 %v3099, %v3128
      %v3140 = vadd.f32 %v3100, %v3130
      %v3141 = vadd.f32 %v3101, %v3132
      %v3142 = vadd.f32 %v3102, %v3134
      %s3143 = sld [smem:[#allocation5 + $0x4a]]
      %v3144 = vstv %s3143
      %v3145 = vmul.f32 %v3144, %v2031
      %v3146 = vmul.f32 %v3144, %v2032
      %v3147 = vmul.f32 %v3144, %v2033
      %v3148 = vmul.f32 %v3144, %v2034
      %v3149 = vmul.f32 %v3144, %v2035
      %v3150 = vmul.f32 %v3144, %v2036
      %v3157 = vrot.slane %v3145, 3
      %v3158 = vrot.slane %v3146, 3
      %v3159 = vsel %vm317, %v3157, %v3158
      %v3160 = vrot.slane %v3147, 3
      %v3161 = vsel %vm317, %v3158, %v3160
      %v3162 = vrot.slane %v3148, 3
      %v3163 = vrot.slane %v3149, 3
      %v3164 = vsel %vm317, %v3162, %v3163
      %v3165 = vrot.slane %v3150, 3
      %v3166 = vsel %vm317, %v3163, %v3165
      %3167 = vrot.lane.b32.xlu0 %v3159, 124
      %v3168 = vpop.permute.xlu0 %3167
      %3169 = vrot.lane.b32.xlu0 %v3161, 124
      %v3170 = vpop.permute.xlu0 %3169
      %3171 = vrot.lane.b32.xlu0 %v3164, 124
      %v3172 = vpop.permute.xlu0 %3171
      %3173 = vrot.lane.b32.xlu0 %v3166, 124
      %v3174 = vpop.permute.xlu0 %3173
      %v3179 = vadd.f32 %v3139, %v3168
      %v3180 = vadd.f32 %v3140, %v3170
      %v3181 = vadd.f32 %v3141, %v3172
      %v3182 = vadd.f32 %v3142, %v3174
      %s3183 = sld [smem:[#allocation5 + $0x51]]
      %v3184 = vstv %s3183
      %v3185 = vmul.f32 %v3184, %v2031
      %v3186 = vmul.f32 %v3184, %v2032
      %v3187 = vmul.f32 %v3184, %v2033
      %v3188 = vmul.f32 %v3184, %v2034
      %v3189 = vmul.f32 %v3184, %v2035
      %v3190 = vmul.f32 %v3184, %v2036
      %v3197 = vrot.slane %v3185, 4
      %v3198 = vrot.slane %v3186, 4
      %v3199 = vsel %vm350, %v3197, %v3198
      %v3200 = vrot.slane %v3187, 4
      %v3201 = vsel %vm350, %v3198, %v3200
      %v3202 = vrot.slane %v3188, 4
      %v3203 = vrot.slane %v3189, 4
      %v3204 = vsel %vm350, %v3202, %v3203
      %v3205 = vrot.slane %v3190, 4
      %v3206 = vsel %vm350, %v3203, %v3205
      %3207 = vrot.lane.b32.xlu0 %v3199, 124
      %v3208 = vpop.permute.xlu0 %3207
      %3209 = vrot.lane.b32.xlu0 %v3201, 124
      %v3210 = vpop.permute.xlu0 %3209
      %3211 = vrot.lane.b32.xlu0 %v3204, 124
      %v3212 = vpop.permute.xlu0 %3211
      %3213 = vrot.lane.b32.xlu0 %v3206, 124
      %v3214 = vpop.permute.xlu0 %3213
      %v3219 = vadd.f32 %v3179, %v3208
      %v3220 = vadd.f32 %v3180, %v3210
      %v3221 = vadd.f32 %v3181, %v3212
      %v3222 = vadd.f32 %v3182, %v3214
      %s3223 = sld [smem:[#allocation5 + $0x58]]
      %v3224 = vstv %s3223
      %v3225 = vmul.f32 %v3224, %v2031
      %v3226 = vmul.f32 %v3224, %v2032
      %v3227 = vmul.f32 %v3224, %v2033
      %v3228 = vmul.f32 %v3224, %v2034
      %v3229 = vmul.f32 %v3224, %v2035
      %v3230 = vmul.f32 %v3224, %v2036
      %v3237 = vrot.slane %v3225, 5
      %v3238 = vrot.slane %v3226, 5
      %v3239 = vsel %vm383, %v3237, %v3238
      %v3240 = vrot.slane %v3227, 5
      %v3241 = vsel %vm383, %v3238, %v3240
      %v3242 = vrot.slane %v3228, 5
      %v3243 = vrot.slane %v3229, 5
      %v3244 = vsel %vm383, %v3242, %v3243
      %v3245 = vrot.slane %v3230, 5
      %v3246 = vsel %vm383, %v3243, %v3245
      %3247 = vrot.lane.b32.xlu0 %v3239, 124
      %v3248 = vpop.permute.xlu0 %3247
      %3249 = vrot.lane.b32.xlu0 %v3241, 124
      %v3250 = vpop.permute.xlu0 %3249
      %3251 = vrot.lane.b32.xlu0 %v3244, 124
      %v3252 = vpop.permute.xlu0 %3251
      %3253 = vrot.lane.b32.xlu0 %v3246, 124
      %v3254 = vpop.permute.xlu0 %3253
      %v3259 = vadd.f32 %v3219, %v3248
      %v3260 = vadd.f32 %v3220, %v3250
      %v3261 = vadd.f32 %v3221, %v3252
      %v3262 = vadd.f32 %v3222, %v3254
      %s3263 = sld [smem:[#allocation5 + $0x5f]]
      %v3264 = vstv %s3263
      %v3265 = vmul.f32 %v3264, %v2031
      %v3266 = vmul.f32 %v3264, %v2032
      %v3267 = vmul.f32 %v3264, %v2033
      %v3268 = vmul.f32 %v3264, %v2034
      %v3269 = vmul.f32 %v3264, %v2035
      %v3270 = vmul.f32 %v3264, %v2036
      %v3277 = vrot.slane %v3265, 6
      %v3278 = vrot.slane %v3266, 6
      %v3279 = vsel %vm416, %v3277, %v3278
      %v3280 = vrot.slane %v3267, 6
      %v3281 = vsel %vm416, %v3278, %v3280
      %v3282 = vrot.slane %v3268, 6
      %v3283 = vrot.slane %v3269, 6
      %v3284 = vsel %vm416, %v3282, %v3283
      %v3285 = vrot.slane %v3270, 6
      %v3286 = vsel %vm416, %v3283, %v3285
      %3287 = vrot.lane.b32.xlu0 %v3279, 124
      %v3288 = vpop.permute.xlu0 %3287
      %3289 = vrot.lane.b32.xlu0 %v3281, 124
      %v3290 = vpop.permute.xlu0 %3289
      %3291 = vrot.lane.b32.xlu0 %v3284, 124
      %v3292 = vpop.permute.xlu0 %3291
      %3293 = vrot.lane.b32.xlu0 %v3286, 124
      %v3294 = vpop.permute.xlu0 %3293
      %v3299 = vadd.f32 %v3259, %v3288
      %v3300 = vadd.f32 %v3260, %v3290
      %v3301 = vadd.f32 %v3261, %v3292
      %v3302 = vadd.f32 %v3262, %v3294
      %s3303 = sld [smem:[#allocation5 + $0x36]]
      %v3304 = vstv %s3303
      %v3305 = vmul.f32 %v3304, %v2031
      %v3306 = vmul.f32 %v3304, %v2032
      %v3307 = vmul.f32 %v3304, %v2034
      %v3308 = vmul.f32 %v3304, %v2035
      %3313 = vrot.lane.b32.xlu0 %v3305, 123
      %v3314 = vpop.permute.xlu0 %3313
      %3315 = vrot.lane.b32.xlu0 %v3306, 123
      %v3316 = vpop.permute.xlu0 %3315
      %3317 = vrot.lane.b32.xlu0 %v3307, 123
      %v3318 = vpop.permute.xlu0 %3317
      %3319 = vrot.lane.b32.xlu0 %v3308, 123
      %v3320 = vpop.permute.xlu0 %3319
      %v3325 = vadd.f32 %v3299, %v3314
      %v3326 = vadd.f32 %v3300, %v3316
      %v3327 = vadd.f32 %v3301, %v3318
      %v3328 = vadd.f32 %v3302, %v3320
      %s3329 = sld [smem:[#allocation5 + $0x3d]]
      %v3330 = vstv %s3329
      %v3331 = vmul.f32 %v3330, %v2031
      %v3332 = vmul.f32 %v3330, %v2032
      %v3333 = vmul.f32 %v3330, %v2033
      %v3334 = vmul.f32 %v3330, %v2034
      %v3335 = vmul.f32 %v3330, %v2035
      %v3336 = vmul.f32 %v3330, %v2036
      %v3343 = vrot.slane %v3331, 1
      %v3344 = vrot.slane %v3332, 1
      %v3345 = vsel %vm251, %v3343, %v3344
      %v3346 = vrot.slane %v3333, 1
      %v3347 = vsel %vm251, %v3344, %v3346
      %v3348 = vrot.slane %v3334, 1
      %v3349 = vrot.slane %v3335, 1
      %v3350 = vsel %vm251, %v3348, %v3349
      %v3351 = vrot.slane %v3336, 1
      %v3352 = vsel %vm251, %v3349, %v3351
      %3353 = vrot.lane.b32.xlu0 %v3345, 123
      %v3354 = vpop.permute.xlu0 %3353
      %3355 = vrot.lane.b32.xlu0 %v3347, 123
      %v3356 = vpop.permute.xlu0 %3355
      %3357 = vrot.lane.b32.xlu0 %v3350, 123
      %v3358 = vpop.permute.xlu0 %3357
      %3359 = vrot.lane.b32.xlu0 %v3352, 123
      %v3360 = vpop.permute.xlu0 %3359
      %v3365 = vadd.f32 %v3325, %v3354
      %v3366 = vadd.f32 %v3326, %v3356
      %v3367 = vadd.f32 %v3327, %v3358
      %v3368 = vadd.f32 %v3328, %v3360
      %s3369 = sld [smem:[#allocation5 + $0x44]]
      %v3370 = vstv %s3369
      %v3371 = vmul.f32 %v3370, %v2031
      %v3372 = vmul.f32 %v3370, %v2032
      %v3373 = vmul.f32 %v3370, %v2033
      %v3374 = vmul.f32 %v3370, %v2034
      %v3375 = vmul.f32 %v3370, %v2035
      %v3376 = vmul.f32 %v3370, %v2036
      %v3383 = vrot.slane %v3371, 2
      %v3384 = vrot.slane %v3372, 2
      %v3385 = vsel %vm284, %v3383, %v3384
      %v3386 = vrot.slane %v3373, 2
      %v3387 = vsel %vm284, %v3384, %v3386
      %v3388 = vrot.slane %v3374, 2
      %v3389 = vrot.slane %v3375, 2
      %v3390 = vsel %vm284, %v3388, %v3389
      %v3391 = vrot.slane %v3376, 2
      %v3392 = vsel %vm284, %v3389, %v3391
      %3393 = vrot.lane.b32.xlu0 %v3385, 123
      %v3394 = vpop.permute.xlu0 %3393
      %3395 = vrot.lane.b32.xlu0 %v3387, 123
      %v3396 = vpop.permute.xlu0 %3395
      %3397 = vrot.lane.b32.xlu0 %v3390, 123
      %v3398 = vpop.permute.xlu0 %3397
      %3399 = vrot.lane.b32.xlu0 %v3392, 123
      %v3400 = vpop.permute.xlu0 %3399
      %v3405 = vadd.f32 %v3365, %v3394
      %v3406 = vadd.f32 %v3366, %v3396
      %v3407 = vadd.f32 %v3367, %v3398
      %v3408 = vadd.f32 %v3368, %v3400
      %s3409 = sld [smem:[#allocation5 + $0x4b]]
      %v3410 = vstv %s3409
      %v3411 = vmul.f32 %v3410, %v2031
      %v3412 = vmul.f32 %v3410, %v2032
      %v3413 = vmul.f32 %v3410, %v2033
      %v3414 = vmul.f32 %v3410, %v2034
      %v3415 = vmul.f32 %v3410, %v2035
      %v3416 = vmul.f32 %v3410, %v2036
      %v3423 = vrot.slane %v3411, 3
      %v3424 = vrot.slane %v3412, 3
      %v3425 = vsel %vm317, %v3423, %v3424
      %v3426 = vrot.slane %v3413, 3
      %v3427 = vsel %vm317, %v3424, %v3426
      %v3428 = vrot.slane %v3414, 3
      %v3429 = vrot.slane %v3415, 3
      %v3430 = vsel %vm317, %v3428, %v3429
      %v3431 = vrot.slane %v3416, 3
      %v3432 = vsel %vm317, %v3429, %v3431
      %3433 = vrot.lane.b32.xlu0 %v3425, 123
      %v3434 = vpop.permute.xlu0 %3433
      %3435 = vrot.lane.b32.xlu0 %v3427, 123
      %v3436 = vpop.permute.xlu0 %3435
      %3437 = vrot.lane.b32.xlu0 %v3430, 123
      %v3438 = vpop.permute.xlu0 %3437
      %3439 = vrot.lane.b32.xlu0 %v3432, 123
      %v3440 = vpop.permute.xlu0 %3439
      %v3445 = vadd.f32 %v3405, %v3434
      %v3446 = vadd.f32 %v3406, %v3436
      %v3447 = vadd.f32 %v3407, %v3438
      %v3448 = vadd.f32 %v3408, %v3440
      %s3449 = sld [smem:[#allocation5 + $0x52]]
      %v3450 = vstv %s3449
      %v3451 = vmul.f32 %v3450, %v2031
      %v3452 = vmul.f32 %v3450, %v2032
      %v3453 = vmul.f32 %v3450, %v2033
      %v3454 = vmul.f32 %v3450, %v2034
      %v3455 = vmul.f32 %v3450, %v2035
      %v3456 = vmul.f32 %v3450, %v2036
      %v3463 = vrot.slane %v3451, 4
      %v3464 = vrot.slane %v3452, 4
      %v3465 = vsel %vm350, %v3463, %v3464
      %v3466 = vrot.slane %v3453, 4
      %v3467 = vsel %vm350, %v3464, %v3466
      %v3468 = vrot.slane %v3454, 4
      %v3469 = vrot.slane %v3455, 4
      %v3470 = vsel %vm350, %v3468, %v3469
      %v3471 = vrot.slane %v3456, 4
      %v3472 = vsel %vm350, %v3469, %v3471
      %3473 = vrot.lane.b32.xlu0 %v3465, 123
      %v3474 = vpop.permute.xlu0 %3473
      %3475 = vrot.lane.b32.xlu0 %v3467, 123
      %v3476 = vpop.permute.xlu0 %3475
      %3477 = vrot.lane.b32.xlu0 %v3470, 123
      %v3478 = vpop.permute.xlu0 %3477
      %3479 = vrot.lane.b32.xlu0 %v3472, 123
      %v3480 = vpop.permute.xlu0 %3479
      %v3485 = vadd.f32 %v3445, %v3474
      %v3486 = vadd.f32 %v3446, %v3476
      %v3487 = vadd.f32 %v3447, %v3478
      %v3488 = vadd.f32 %v3448, %v3480
      %s3489 = sld [smem:[#allocation5 + $0x59]]
      %v3490 = vstv %s3489
      %v3491 = vmul.f32 %v3490, %v2031
      %v3492 = vmul.f32 %v3490, %v2032
      %v3493 = vmul.f32 %v3490, %v2033
      %v3494 = vmul.f32 %v3490, %v2034
      %v3495 = vmul.f32 %v3490, %v2035
      %v3496 = vmul.f32 %v3490, %v2036
      %v3503 = vrot.slane %v3491, 5
      %v3504 = vrot.slane %v3492, 5
      %v3505 = vsel %vm383, %v3503, %v3504
      %v3506 = vrot.slane %v3493, 5
      %v3507 = vsel %vm383, %v3504, %v3506
      %v3508 = vrot.slane %v3494, 5
      %v3509 = vrot.slane %v3495, 5
      %v3510 = vsel %vm383, %v3508, %v3509
      %v3511 = vrot.slane %v3496, 5
      %v3512 = vsel %vm383, %v3509, %v3511
      %3513 = vrot.lane.b32.xlu0 %v3505, 123
      %v3514 = vpop.permute.xlu0 %3513
      %3515 = vrot.lane.b32.xlu0 %v3507, 123
      %v3516 = vpop.permute.xlu0 %3515
      %3517 = vrot.lane.b32.xlu0 %v3510, 123
      %v3518 = vpop.permute.xlu0 %3517
      %3519 = vrot.lane.b32.xlu0 %v3512, 123
      %v3520 = vpop.permute.xlu0 %3519
      %v3525 = vadd.f32 %v3485, %v3514
      %v3526 = vadd.f32 %v3486, %v3516
      %v3527 = vadd.f32 %v3487, %v3518
      %v3528 = vadd.f32 %v3488, %v3520
      %s3529 = sld [smem:[#allocation5 + $0x60]]
      %v3530 = vstv %s3529
      %v3531 = vmul.f32 %v3530, %v2031
      %v3532 = vmul.f32 %v3530, %v2032
      %v3533 = vmul.f32 %v3530, %v2033
      %v3534 = vmul.f32 %v3530, %v2034
      %v3535 = vmul.f32 %v3530, %v2035
      %v3536 = vmul.f32 %v3530, %v2036
      %v3543 = vrot.slane %v3531, 6
      %v3544 = vrot.slane %v3532, 6
      %v3545 = vsel %vm416, %v3543, %v3544
      %v3546 = vrot.slane %v3533, 6
      %v3547 = vsel %vm416, %v3544, %v3546
      %v3548 = vrot.slane %v3534, 6
      %v3549 = vrot.slane %v3535, 6
      %v3550 = vsel %vm416, %v3548, %v3549
      %v3551 = vrot.slane %v3536, 6
      %v3552 = vsel %vm416, %v3549, %v3551
      %3553 = vrot.lane.b32.xlu0 %v3545, 123
      %v3554 = vpop.permute.xlu0 %3553
      %3555 = vrot.lane.b32.xlu0 %v3547, 123
      %v3556 = vpop.permute.xlu0 %3555
      %3557 = vrot.lane.b32.xlu0 %v3550, 123
      %v3558 = vpop.permute.xlu0 %3557
      %3559 = vrot.lane.b32.xlu0 %v3552, 123
      %v3560 = vpop.permute.xlu0 %3559
      %v3565 = vadd.f32 %v3525, %v3554
      %v3566 = vadd.f32 %v3526, %v3556
      %v3567 = vadd.f32 %v3527, %v3558
      %v3568 = vadd.f32 %v3528, %v3560
      %s3569 = sld [smem:[#allocation5 + $0x37]]
      %v3570 = vstv %s3569
      %v3571 = vmul.f32 %v3570, %v2031
      %v3572 = vmul.f32 %v3570, %v2032
      %v3573 = vmul.f32 %v3570, %v2034
      %v3574 = vmul.f32 %v3570, %v2035
      %3579 = vrot.lane.b32.xlu0 %v3571, 122
      %v3580 = vpop.permute.xlu0 %3579
      %3581 = vrot.lane.b32.xlu0 %v3572, 122
      %v3582 = vpop.permute.xlu0 %3581
      %3583 = vrot.lane.b32.xlu0 %v3573, 122
      %v3584 = vpop.permute.xlu0 %3583
      %3585 = vrot.lane.b32.xlu0 %v3574, 122
      %v3586 = vpop.permute.xlu0 %3585
      %v3591 = vadd.f32 %v3565, %v3580
      %v3592 = vadd.f32 %v3566, %v3582
      %v3593 = vadd.f32 %v3567, %v3584
      %v3594 = vadd.f32 %v3568, %v3586
      %s3595 = sld [smem:[#allocation5 + $0x3e]]
      %v3596 = vstv %s3595
      %v3597 = vmul.f32 %v3596, %v2031
      %v3598 = vmul.f32 %v3596, %v2032
      %v3599 = vmul.f32 %v3596, %v2033
      %v3600 = vmul.f32 %v3596, %v2034
      %v3601 = vmul.f32 %v3596, %v2035
      %v3602 = vmul.f32 %v3596, %v2036
      %v3609 = vrot.slane %v3597, 1
      %v3610 = vrot.slane %v3598, 1
      %v3611 = vsel %vm251, %v3609, %v3610
      %v3612 = vrot.slane %v3599, 1
      %v3613 = vsel %vm251, %v3610, %v3612
      %v3614 = vrot.slane %v3600, 1
      %v3615 = vrot.slane %v3601, 1
      %v3616 = vsel %vm251, %v3614, %v3615
      %v3617 = vrot.slane %v3602, 1
      %v3618 = vsel %vm251, %v3615, %v3617
      %3619 = vrot.lane.b32.xlu0 %v3611, 122
      %v3620 = vpop.permute.xlu0 %3619
      %3621 = vrot.lane.b32.xlu0 %v3613, 122
      %v3622 = vpop.permute.xlu0 %3621
      %3623 = vrot.lane.b32.xlu0 %v3616, 122
      %v3624 = vpop.permute.xlu0 %3623
      %3625 = vrot.lane.b32.xlu0 %v3618, 122
      %v3626 = vpop.permute.xlu0 %3625
      %v3631 = vadd.f32 %v3591, %v3620
      %v3632 = vadd.f32 %v3592, %v3622
      %v3633 = vadd.f32 %v3593, %v3624
      %v3634 = vadd.f32 %v3594, %v3626
      %s3635 = sld [smem:[#allocation5 + $0x45]]
      %v3636 = vstv %s3635
      %v3637 = vmul.f32 %v3636, %v2031
      %v3638 = vmul.f32 %v3636, %v2032
      %v3639 = vmul.f32 %v3636, %v2033
      %v3640 = vmul.f32 %v3636, %v2034
      %v3641 = vmul.f32 %v3636, %v2035
      %v3642 = vmul.f32 %v3636, %v2036
      %v3649 = vrot.slane %v3637, 2
      %v3650 = vrot.slane %v3638, 2
      %v3651 = vsel %vm284, %v3649, %v3650
      %v3652 = vrot.slane %v3639, 2
      %v3653 = vsel %vm284, %v3650, %v3652
      %v3654 = vrot.slane %v3640, 2
      %v3655 = vrot.slane %v3641, 2
      %v3656 = vsel %vm284, %v3654, %v3655
      %v3657 = vrot.slane %v3642, 2
      %v3658 = vsel %vm284, %v3655, %v3657
      %3659 = vrot.lane.b32.xlu0 %v3651, 122
      %v3660 = vpop.permute.xlu0 %3659
      %3661 = vrot.lane.b32.xlu0 %v3653, 122
      %v3662 = vpop.permute.xlu0 %3661
      %3663 = vrot.lane.b32.xlu0 %v3656, 122
      %v3664 = vpop.permute.xlu0 %3663
      %3665 = vrot.lane.b32.xlu0 %v3658, 122
      %v3666 = vpop.permute.xlu0 %3665
      %v3671 = vadd.f32 %v3631, %v3660
      %v3672 = vadd.f32 %v3632, %v3662
      %v3673 = vadd.f32 %v3633, %v3664
      %v3674 = vadd.f32 %v3634, %v3666
      %s3675 = sld [smem:[#allocation5 + $0x4c]]
      %v3676 = vstv %s3675
      %v3677 = vmul.f32 %v3676, %v2031
      %v3678 = vmul.f32 %v3676, %v2032
      %v3679 = vmul.f32 %v3676, %v2033
      %v3680 = vmul.f32 %v3676, %v2034
      %v3681 = vmul.f32 %v3676, %v2035
      %v3682 = vmul.f32 %v3676, %v2036
      %v3689 = vrot.slane %v3677, 3
      %v3690 = vrot.slane %v3678, 3
      %v3691 = vsel %vm317, %v3689, %v3690
      %v3692 = vrot.slane %v3679, 3
      %v3693 = vsel %vm317, %v3690, %v3692
      %v3694 = vrot.slane %v3680, 3
      %v3695 = vrot.slane %v3681, 3
      %v3696 = vsel %vm317, %v3694, %v3695
      %v3697 = vrot.slane %v3682, 3
      %v3698 = vsel %vm317, %v3695, %v3697
      %3699 = vrot.lane.b32.xlu0 %v3691, 122
      %v3700 = vpop.permute.xlu0 %3699
      %3701 = vrot.lane.b32.xlu0 %v3693, 122
      %v3702 = vpop.permute.xlu0 %3701
      %3703 = vrot.lane.b32.xlu0 %v3696, 122
      %v3704 = vpop.permute.xlu0 %3703
      %3705 = vrot.lane.b32.xlu0 %v3698, 122
      %v3706 = vpop.permute.xlu0 %3705
      %v3711 = vadd.f32 %v3671, %v3700
      %v3712 = vadd.f32 %v3672, %v3702
      %v3713 = vadd.f32 %v3673, %v3704
      %v3714 = vadd.f32 %v3674, %v3706
      %s3715 = sld [smem:[#allocation5 + $0x53]]
      %v3716 = vstv %s3715
      %v3717 = vmul.f32 %v3716, %v2031
      %v3718 = vmul.f32 %v3716, %v2032
      %v3719 = vmul.f32 %v3716, %v2033
      %v3720 = vmul.f32 %v3716, %v2034
      %v3721 = vmul.f32 %v3716, %v2035
      %v3722 = vmul.f32 %v3716, %v2036
      %v3729 = vrot.slane %v3717, 4
      %v3730 = vrot.slane %v3718, 4
      %v3731 = vsel %vm350, %v3729, %v3730
      %v3732 = vrot.slane %v3719, 4
      %v3733 = vsel %vm350, %v3730, %v3732
      %v3734 = vrot.slane %v3720, 4
      %v3735 = vrot.slane %v3721, 4
      %v3736 = vsel %vm350, %v3734, %v3735
      %v3737 = vrot.slane %v3722, 4
      %v3738 = vsel %vm350, %v3735, %v3737
      %3739 = vrot.lane.b32.xlu0 %v3731, 122
      %v3740 = vpop.permute.xlu0 %3739
      %3741 = vrot.lane.b32.xlu0 %v3733, 122
      %v3742 = vpop.permute.xlu0 %3741
      %3743 = vrot.lane.b32.xlu0 %v3736, 122
      %v3744 = vpop.permute.xlu0 %3743
      %3745 = vrot.lane.b32.xlu0 %v3738, 122
      %v3746 = vpop.permute.xlu0 %3745
      %v3751 = vadd.f32 %v3711, %v3740
      %v3752 = vadd.f32 %v3712, %v3742
      %v3753 = vadd.f32 %v3713, %v3744
      %v3754 = vadd.f32 %v3714, %v3746
      %s3755 = sld [smem:[#allocation5 + $0x5a]]
      %v3756 = vstv %s3755
      %v3757 = vmul.f32 %v3756, %v2031
      %v3758 = vmul.f32 %v3756, %v2032
      %v3759 = vmul.f32 %v3756, %v2033
      %v3760 = vmul.f32 %v3756, %v2034
      %v3761 = vmul.f32 %v3756, %v2035
      %v3762 = vmul.f32 %v3756, %v2036
      %v3769 = vrot.slane %v3757, 5
      %v3770 = vrot.slane %v3758, 5
      %v3771 = vsel %vm383, %v3769, %v3770
      %v3772 = vrot.slane %v3759, 5
      %v3773 = vsel %vm383, %v3770, %v3772
      %v3774 = vrot.slane %v3760, 5
      %v3775 = vrot.slane %v3761, 5
      %v3776 = vsel %vm383, %v3774, %v3775
      %v3777 = vrot.slane %v3762, 5
      %v3778 = vsel %vm383, %v3775, %v3777
      %3779 = vrot.lane.b32.xlu0 %v3771, 122
      %v3780 = vpop.permute.xlu0 %3779
      %3781 = vrot.lane.b32.xlu0 %v3773, 122
      %v3782 = vpop.permute.xlu0 %3781
      %3783 = vrot.lane.b32.xlu0 %v3776, 122
      %v3784 = vpop.permute.xlu0 %3783
      %3785 = vrot.lane.b32.xlu0 %v3778, 122
      %v3786 = vpop.permute.xlu0 %3785
      %v3791 = vadd.f32 %v3751, %v3780
      %v3792 = vadd.f32 %v3752, %v3782
      %v3793 = vadd.f32 %v3753, %v3784
      %v3794 = vadd.f32 %v3754, %v3786
      %s3795 = sld [smem:[#allocation5 + $0x61]]
      %v3796 = vstv %s3795
      %v3797 = vmul.f32 %v3796, %v2031
      %v3798 = vmul.f32 %v3796, %v2032
      %v3799 = vmul.f32 %v3796, %v2033
      %v3800 = vmul.f32 %v3796, %v2034
      %v3801 = vmul.f32 %v3796, %v2035
      %v3802 = vmul.f32 %v3796, %v2036
      %v3809 = vrot.slane %v3797, 6
      %v3810 = vrot.slane %v3798, 6
      %v3811 = vsel %vm416, %v3809, %v3810
      %v3812 = vrot.slane %v3799, 6
      %v3813 = vsel %vm416, %v3810, %v3812
      %v3814 = vrot.slane %v3800, 6
      %v3815 = vrot.slane %v3801, 6
      %v3816 = vsel %vm416, %v3814, %v3815
      %v3817 = vrot.slane %v3802, 6
      %v3818 = vsel %vm416, %v3815, %v3817
      %3819 = vrot.lane.b32.xlu0 %v3811, 122
      %v3820 = vpop.permute.xlu0 %3819
      %3821 = vrot.lane.b32.xlu0 %v3813, 122
      %v3822 = vpop.permute.xlu0 %3821
      %3823 = vrot.lane.b32.xlu0 %v3816, 122
      %v3824 = vpop.permute.xlu0 %3823
      %3825 = vrot.lane.b32.xlu0 %v3818, 122
      %v3826 = vpop.permute.xlu0 %3825
      %v3831 = vadd.f32 %v3791, %v3820
      %v3832 = vadd.f32 %v3792, %v3822
      %v3833 = vadd.f32 %v3793, %v3824
      %v3834 = vadd.f32 %v3794, %v3826
      %v3835 = vxor.u32 %v3831, 2147483648
      %v3836 = vxor.u32 %v3832, 2147483648
      %v3837 = vxor.u32 %v3833, 2147483648
      %v3838 = vxor.u32 %v3834, 2147483648
      %v3839 = vmul.f32 %v3835, 1.442695
      %v3840 = vpow.pop %v3839
      %v3841 = vmul.f32 %v3836, 1.442695
      %v3842 = vpow.pop %v3841
      %v3843 = vmul.f32 %v3837, 1.442695
      %v3844 = vpow.pop %v3843
      %v3845 = vmul.f32 %v3838, 1.442695
      %v3846 = vpow.pop %v3845
      %v3847 = vadd.f32 %v3840, 1.0
      %v3848 = vadd.f32 %v3842, 1.0
      %v3849 = vadd.f32 %v3844, 1.0
      %v3850 = vadd.f32 %v3846, 1.0
      %v3851 = vrcp.pop %v3847
      %v3852 = vmul.f32 1.0, %v3851
      %v3853 = vrcp.pop %v3848
      %v3854 = vmul.f32 1.0, %v3853
      %v3855 = vrcp.pop %v3849
      %v3856 = vmul.f32 1.0, %v3855
      %v3857 = vrcp.pop %v3850
      %v3858 = vmul.f32 1.0, %v3857
      %3859 = vst.msk [vmem:[#allocation10] sm:$0xff] %vm53, %v3852
      %3860 = vst.msk [vmem:[#allocation10 + $0x8] sm:$0xff] %vm53, %v3854
      %3861 = vst.msk [vmem:[#allocation10 + $0x10] sm:$0xff] %vm53, %v3856
      %3862 = vst.msk [vmem:[#allocation10 + $0x18] sm:$0xff] %vm53, %v3858
    $region29: #{tpu_custom_call.1} parent=1 // pred_fallthru
      _
    // Predicated region
    $region30: #{tpu_custom_call.1} parent=1 // pred_check
      _
    $region31: #{tpu_custom_call.1} parent=1 // pred_check_branch
      %3864 = sbr.rel (0) target = $region33
    $region32: #{tpu_custom_call.1} parent=1 // pred_region
      %s3866 = ssub.s32 512, 512
      %3867 = vsyncadd [#allocation7], %s3866
      %s3868 = sshll.u32 [#allocation10], 4
      %s3869 = int_to_ptr.vmem [resolvable:$true] %s3868
      %3874 = dma.vmem_to_hbm [thread:$0]  %s3869, 512, %s2, [#allocation7], 128, 128, 8
    $region33: #{tpu_custom_call.1} parent=1 // pred_fallthru
      _
    // Predicated region
    $region34: #{tpu_custom_call.1} parent=1 // pred_check
      _
    $region35: #{tpu_custom_call.1} parent=1 // pred_check_branch
      %3876 = sbr.rel (0) target = $region37
    $region36: #{tpu_custom_call.1} parent=1 // pred_region
      %3877 = dma.done [#allocation7], 512
    $region37: #{tpu_custom_call.1} parent=1 // pred_fallthru
      _
    %3878 = vsyncpa [#allocation6], 1
    %3879 = vsyncpa [#allocation7], 1
    %3880 = vsyncpa [#allocation8], 1

</llo_original>
